<compile_context>
chip_gen: v7x
topology: tpu7x:2x2x1
jax: 0.10.0
libtpu: 0.0.40
codegen_flags: <defaults>
</compile_context>

<pallas_src>
import functools
import math

import jax
import jax.numpy as jnp
from jax import lax
from jax.experimental import pallas as pl
from jax.experimental.pallas import tpu as pltpu


# ---------------------------------------------------------------------------
# Kernel 1: momentum update of the two memory banks, in place (only B rows).
# ---------------------------------------------------------------------------
def _momentum_update_kernel(y_ref, v1_ref, v2_ref, m1_hbm, m2_hbm,
                            nm1_hbm, nm2_hbm, rows1, rows2, sem,
                            *, momentum):
    B, _ = v1_ref.shape

    # ---- gather the B selected rows of each bank (per-row DMA; handles the
    #      wrap-around of y = (arange(B)+ptr) % K and any future index pattern) ----
    copies = []
    for i in range(B):
        r = y_ref[i]
        c1 = pltpu.make_async_copy(m1_hbm.at[pl.ds(r, 1)], rows1.at[pl.ds(i, 1)], sem.at[0])
        c2 = pltpu.make_async_copy(m2_hbm.at[pl.ds(r, 1)], rows2.at[pl.ds(i, 1)], sem.at[1])
        c1.start()
        c2.start()
        copies.append(c1)
        copies.append(c2)
    for c in copies:
        c.wait()

    # ---- momentum update + L2 row renorm (VPU mul/add, EUP rsqrt) ----
    m = jnp.float32(momentum)
    om = jnp.float32(1.0 - momentum)

    def update(rows_ref, v_ref):
        u = rows_ref[...] * m + v_ref[...] * om
        inv_norm = lax.rsqrt(jnp.sum(u * u, axis=1, keepdims=True))
        rows_ref[...] = u * inv_norm

    update(rows1, v1_ref)
    update(rows2, v2_ref)

    # ---- scatter only the B updated rows back into the aliased (in-place) banks ----
    copies = []
    for i in range(B):
        r = y_ref[i]
        c1 = pltpu.make_async_copy(rows1.at[pl.ds(i, 1)], nm1_hbm.at[pl.ds(r, 1)], sem.at[0])
        c2 = pltpu.make_async_copy(rows2.at[pl.ds(i, 1)], nm2_hbm.at[pl.ds(r, 1)], sem.at[1])
        c1.start()
        c2.start()
        copies.append(c1)
        copies.append(c2)
    for c in copies:
        c.wait()


# ---------------------------------------------------------------------------
# Kernel 2: exp(v @ mem^T / T), tiled over the K (memory-bank) axis.
# ---------------------------------------------------------------------------
def _similarity_kernel(v1_ref, v2_ref, m1_ref, m2_ref, o1_ref, o2_ref, *, inv_temp):
    dims = (((1,), (1,)), ((), ()))   # contract over D; K tile lands on lanes
    # out_v2 columns: simi_v1 = v2 @ memory_v1^T    (default MXU precision)
    s1 = lax.dot_general(v2_ref[...], m1_ref[...], dims,
                         preferred_element_type=jnp.float32)
    o2_ref[...] = jnp.exp(s1 * inv_temp)
    # out_v1 columns: simi_v2 = v1 @ memory_v2^T
    s2 = lax.dot_general(v1_ref[...], m2_ref[...], dims,
                         preferred_element_type=jnp.float32)
    o1_ref[...] = jnp.exp(s2 * inv_temp)


def _choose_block_k(K, D, B):
    """Pick the K tile: lane-dense (multiple of 128) and sized for v7x's VMEM."""
    if K <= 512:
        return K                       # single tile; block dims equal full array dims
    budget = 12 * 1024 * 1024          # double-buffered tiles stay well under the
    for tk in (4096, 2048, 1024, 512, 256, 128):   # 16/32 MiB scoped VMEM defaults
        if tk > K:
            continue
        vmem = 2 * 2 * tk * D * 4 + 2 * 2 * B * tk * 4
        if vmem <= budget:
            return tk
    return 128


def contrast_memory_queue_forward(v1, v2, memory_v1, memory_v2, ptr,
                                  *, T=0.07, momentum=0.5, block_k=None):
    """Functional equivalent of ContrastMemory_queue.forward.

    Returns ((out_v1, out_v2), (new_memory_v1, new_memory_v2, new_ptr)).
    The PyTorch `y`/`idx` arguments are ignored by the reference forward (it
    regenerates y from the queue pointer), so they are not taken here.
    """
    B, D = v1.shape
    K, D2 = memory_v1.shape
    assert D == D2 and memory_v2.shape == (K, D)
    assert K > B, "outputSize must be > batchSize"

    f32 = jnp.float32
    v1 = v1.astype(f32)
    v2 = v2.astype(f32)
    memory_v1 = memory_v1.astype(f32)
    memory_v2 = memory_v2.astype(f32)

    ptr = jnp.asarray(ptr, jnp.int32)                             # trace-friendly pointer
    y = (jnp.arange(B, dtype=jnp.int32) + ptr) % jnp.int32(K)     # (B,)

    # ---- phase 1: in-place momentum update (banks aliased input -> output) ----
    anyspec = pl.BlockSpec(memory_space=pl.ANY)
    vmem = pl.BlockSpec(memory_space=pltpu.MemorySpace.VMEM)
    smem = pl.BlockSpec(memory_space=pltpu.MemorySpace.SMEM)
    new_m1, new_m2 = pl.pallas_call(
        functools.partial(_momentum_update_kernel, momentum=float(momentum)),
        out_shape=(jax.ShapeDtypeStruct((K, D), f32),
                   jax.ShapeDtypeStruct((K, D), f32)),
        in_specs=[smem, vmem, vmem, anyspec, anyspec],
        out_specs=(anyspec, anyspec),
        scratch_shapes=[pltpu.VMEM((B, D), f32),
                        pltpu.VMEM((B, D), f32),
                        pltpu.SemaphoreType.DMA((2,))],
        input_output_aliases={3: 0, 4: 1},      # memory_v1 -> new_m1, memory_v2 -> new_m2
    )(y, v1, v2, memory_v1, memory_v2)

    # ---- phase 2: similarity + exp, streamed over K tiles ----
    TK = block_k if block_k is not None else _choose_block_k(K, D, B)
    nk = pl.cdiv(K, TK)
    inv_temp = float(1.0 / T)
    o1_rest, o2_rest = pl.pallas_call(
        functools.partial(_similarity_kernel, inv_temp=inv_temp),
        out_shape=(jax.ShapeDtypeStruct((B, K), f32),
                   jax.ShapeDtypeStruct((B, K), f32)),
        grid=(nk,),
        in_specs=[pl.BlockSpec((B, D), lambda k: (0, 0)),
                  pl.BlockSpec((B, D), lambda k: (0, 0)),
                  pl.BlockSpec((TK, D), lambda k: (k, 0)),
                  pl.BlockSpec((TK, D), lambda k: (k, 0))],
        out_specs=(pl.BlockSpec((B, TK), lambda k: (0, k)),
                   pl.BlockSpec((B, TK), lambda k: (0, k))),
        compiler_params=pltpu.CompilerParams(
            dimension_semantics=("parallel",)),   # disjoint K tiles -> megacore-splittable
    )(v1, v2, new_m1, new_m2)

    # ---- own column + concat: cheap glue (gather of already-exp'd elements
    #      is elementwise-identical to exp(gather(sim))) ----
    own1 = jnp.take_along_axis(o1_rest, y[:, None], axis=1)
    own2 = jnp.take_along_axis(o2_rest, y[:, None], axis=1)
    out_v1 = jnp.concatenate([own1, o1_rest], axis=1)   # (B, K+1)
    out_v2 = jnp.concatenate([own2, o2_rest], axis=1)   # (B, K+1)

    new_ptr = (ptr + jnp.int32(B)) % jnp.int32(K)
    return (out_v1, out_v2), (new_m1, new_m2, new_ptr)


def _reference_jax(v1, v2, mem1, mem2, ptr, T, momentum):
    """Pure-JAX reference mirroring the PyTorch forward, for sanity checking."""
    B = v1.shape[0]
    K = mem1.shape[0]
    y = (jnp.arange(B, dtype=jnp.int32) + jnp.int32(ptr)) % K
    hp = lax.Precision.HIGHEST

    def upd(mem, v):
        pos = mem[y] * momentum + v * (1.0 - momentum)
        pos = pos * lax.rsqrt(jnp.sum(pos ** 2, axis=1, keepdims=True))
        return mem.at[y].set(pos)

    nm1 = upd(mem1, v1)
    nm2 = upd(mem2, v2)
    simi_v1 = jnp.matmul(v2, nm1.T, precision=hp)
    simi_v2 = jnp.matmul(v1, nm2.T, precision=hp)
    out_v2 = jnp.exp(jnp.concatenate(
        [jnp.take_along_axis(simi_v1, y[:, None], 1), simi_v1], 1) / T)
    out_v1 = jnp.exp(jnp.concatenate(
        [jnp.take_along_axis(simi_v2, y[:, None], 1), simi_v2], 1) / T)
    return (out_v1, out_v2), (nm1, nm2), (simi_v1, simi_v2)


if __name__ == "__main__":
    inputSize, K, B = 32, 1024, 8
    T, momentum = 0.07, 0.5

    key = jax.random.PRNGKey(0)
    k1, k2, k3, k4 = jax.random.split(key, 4)

    # deterministic init matching the module's __init__ semantics:
    # uniform(-stdv, stdv) rows, then L2 row normalization.
    stdv = 1.0 / math.sqrt(inputSize / 3)
    mem_v1 = jax.random.uniform(k1, (K, inputSize), jnp.float32, -stdv, stdv)
    mem_v1 = mem_v1 / jnp.sqrt(jnp.sum(mem_v1 ** 2, axis=1, keepdims=True))
    mem_v2 = jax.random.uniform(k2, (K, inputSize), jnp.float32, -stdv, stdv)
    mem_v2 = mem_v2 / jnp.sqrt(jnp.sum(mem_v2 ** 2, axis=1, keepdims=True))

    # L2-normalized batch embeddings (the usual CRCD setting)
    v1 = jax.random.normal(k3, (B, inputSize), jnp.float32)
    v1 = v1 / jnp.sqrt(jnp.sum(v1 ** 2, axis=1, keepdims=True))
    v2 = jax.random.normal(k4, (B, inputSize), jnp.float32)
    v2 = v2 / jnp.sqrt(jnp.sum(v2 ** 2, axis=1, keepdims=True))

    ptr = K - 4   # exercises wrap-around of y = (arange(B)+ptr) % K

    # reference first (it reads the original banks)
    (ref_o1, ref_o2), (ref_m1, ref_m2), (ref_s1, ref_s2) = _reference_jax(
        v1, v2, mem_v1, mem_v2, ptr, T, momentum)

    # block_k=256 deliberately exercises the multi-tile K grid at this small K.
    fwd = jax.jit(functools.partial(contrast_memory_queue_forward,
                                    T=T, momentum=momentum, block_k=256))
    (out_v1, out_v2), (new_m1, new_m2, new_ptr) = fwd(v1, v2, mem_v1, mem_v2, ptr)
    jax.block_until_ready((out_v1, out_v2, new_m1, new_m2, new_ptr))

    # --- shape / pointer checks ---
    assert out_v1.shape == (B, K + 1) and out_v2.shape == (B, K + 1)
    assert new_m1.shape == (K, inputSize) and new_m2.shape == (K, inputSize)
    assert int(new_ptr) == (ptr + B) % K

    # --- memory-bank update: slice-based, compare tightly against the reference ---
    assert jnp.allclose(new_m1, ref_m1, rtol=1e-4, atol=1e-5)
    assert jnp.allclose(new_m2, ref_m2, rtol=1e-4, atol=1e-5)

    # untouched rows must be bit-identical (only B rows were scattered back)
    y_host = (jnp.arange(B, dtype=jnp.int32) + ptr) % K
    touched = (jnp.arange(K)[:, None] == y_host[None, :]).any(axis=1)
    assert bool(jnp.all(jnp.where(touched[:, None], True, new_m1 == mem_v1)))
    assert bool(jnp.all(jnp.where(touched[:, None], True, new_m2 == mem_v2)))

    # --- logits: compare in similarity space (robust to the default-precision
    #     MXU matmul; T*log(exp(sim/T)) recovers sim) ---
    sim1_k = T * jnp.log(out_v2[:, 1:])   # == simi_v1
    sim2_k = T * jnp.log(out_v1[:, 1:])   # == simi_v2
    assert jnp.allclose(sim1_k, ref_s1, rtol=0, atol=3e-2)
    assert jnp.allclose(sim2_k, ref_s2, rtol=0, atol=3e-2)

    # --- own column is exactly the gathered column of the exp'd block ---
    assert bool(jnp.all(out_v1[:, :1] ==
                        jnp.take_along_axis(out_v1[:, 1:], y_host[:, None], axis=1)))
    assert bool(jnp.all(out_v2[:, :1] ==
                        jnp.take_along_axis(out_v2[:, 1:], y_host[:, None], axis=1)))

    print("KERNEL_OK")
</pallas_src>

<mosaic_0001>
module attributes {stable_mosaic.version = 11 : i64} {
  func.func @_momentum_update_kernel(%arg0: memref<8xi32, #tpu.memory_space<smem>>, %arg1: memref<8x32xf32, #tpu.memory_space<vmem>>, %arg2: memref<8x32xf32, #tpu.memory_space<vmem>>, %arg3: memref<1024x32xf32, #tpu.memory_space<any>>, %arg4: memref<1024x32xf32, #tpu.memory_space<any>>, %arg5: memref<1024x32xf32, #tpu.memory_space<any>>, %arg6: memref<1024x32xf32, #tpu.memory_space<any>>, %arg7: memref<8x32xf32, #tpu.memory_space<vmem>>, %arg8: memref<8x32xf32, #tpu.memory_space<vmem>>, %arg9: memref<2x!tpu.dma_semaphore, #tpu.memory_space<semaphore_mem>>) attributes {dimension_semantics = [], scalar_prefetch = 0 : i64, scratch_operands = 3 : i64, tpu.core_type = #tpu.core_type<tc>} {
    %c0 = arith.constant 0 : index
    %0 = memref.load %arg0[%c0] : memref<8xi32, #tpu.memory_space<smem>>
    %c0_i32 = arith.constant 0 : i32
    %c0_i32_0 = arith.constant 0 : i32
    %1 = tpu.memref_slice %arg3[%0, %c0_i32_0] : memref<1024x32xf32, #tpu.memory_space<any>> -> memref<1x32xf32, #tpu.memory_space<any>>
    %c0_i32_1 = arith.constant 0 : i32
    %c0_i32_2 = arith.constant 0 : i32
    %2 = tpu.memref_slice %arg7[%c0_i32_1, %c0_i32_2] : memref<8x32xf32, #tpu.memory_space<vmem>> -> memref<1x32xf32, #tpu.memory_space<vmem>>
    %3 = tpu.memref_slice %arg9[%c0_i32] : memref<2x!tpu.dma_semaphore, #tpu.memory_space<semaphore_mem>> -> memref<1x!tpu.dma_semaphore, #tpu.memory_space<semaphore_mem>>
    %4 = tpu.memref_squeeze %3 : memref<1x!tpu.dma_semaphore, #tpu.memory_space<semaphore_mem>> -> memref<!tpu.dma_semaphore, #tpu.memory_space<semaphore_mem>>
    tpu.enqueue_dma source(%1 : memref<1x32xf32, #tpu.memory_space<any>>) target(%2 : memref<1x32xf32, #tpu.memory_space<vmem>>) target_semaphore(%4 : memref<!tpu.dma_semaphore, #tpu.memory_space<semaphore_mem>>)
    %c1_i32 = arith.constant 1 : i32
    %c0_i32_3 = arith.constant 0 : i32
    %5 = tpu.memref_slice %arg4[%0, %c0_i32_3] : memref<1024x32xf32, #tpu.memory_space<any>> -> memref<1x32xf32, #tpu.memory_space<any>>
    %c0_i32_4 = arith.constant 0 : i32
    %c0_i32_5 = arith.constant 0 : i32
    %6 = tpu.memref_slice %arg8[%c0_i32_4, %c0_i32_5] : memref<8x32xf32, #tpu.memory_space<vmem>> -> memref<1x32xf32, #tpu.memory_space<vmem>>
    %7 = tpu.memref_slice %arg9[%c1_i32] : memref<2x!tpu.dma_semaphore, #tpu.memory_space<semaphore_mem>> -> memref<1x!tpu.dma_semaphore, #tpu.memory_space<semaphore_mem>>
    %8 = tpu.memref_squeeze %7 : memref<1x!tpu.dma_semaphore, #tpu.memory_space<semaphore_mem>> -> memref<!tpu.dma_semaphore, #tpu.memory_space<semaphore_mem>>
    tpu.enqueue_dma source(%5 : memref<1x32xf32, #tpu.memory_space<any>>) target(%6 : memref<1x32xf32, #tpu.memory_space<vmem>>) target_semaphore(%8 : memref<!tpu.dma_semaphore, #tpu.memory_space<semaphore_mem>>)
    %c1 = arith.constant 1 : index
    %9 = memref.load %arg0[%c1] : memref<8xi32, #tpu.memory_space<smem>>
    %c0_i32_6 = arith.constant 0 : i32
    %c0_i32_7 = arith.constant 0 : i32
    %10 = tpu.memref_slice %arg3[%9, %c0_i32_7] : memref<1024x32xf32, #tpu.memory_space<any>> -> memref<1x32xf32, #tpu.memory_space<any>>
    %c1_i32_8 = arith.constant 1 : i32
    %c0_i32_9 = arith.constant 0 : i32
    %11 = tpu.memref_slice %arg7[%c1_i32_8, %c0_i32_9] : memref<8x32xf32, #tpu.memory_space<vmem>> -> memref<1x32xf32, #tpu.memory_space<vmem>>
    %12 = tpu.memref_slice %arg9[%c0_i32_6] : memref<2x!tpu.dma_semaphore, #tpu.memory_space<semaphore_mem>> -> memref<1x!tpu.dma_semaphore, #tpu.memory_space<semaphore_mem>>
    %13 = tpu.memref_squeeze %12 : memref<1x!tpu.dma_semaphore, #tpu.memory_space<semaphore_mem>> -> memref<!tpu.dma_semaphore, #tpu.memory_space<semaphore_mem>>
    tpu.enqueue_dma source(%10 : memref<1x32xf32, #tpu.memory_space<any>>) target(%11 : memref<1x32xf32, #tpu.memory_space<vmem>>) target_semaphore(%13 : memref<!tpu.dma_semaphore, #tpu.memory_space<semaphore_mem>>)
    %c1_i32_10 = arith.constant 1 : i32
    %c0_i32_11 = arith.constant 0 : i32
    %14 = tpu.memref_slice %arg4[%9, %c0_i32_11] : memref<1024x32xf32, #tpu.memory_space<any>> -> memref<1x32xf32, #tpu.memory_space<any>>
    %c1_i32_12 = arith.constant 1 : i32
    %c0_i32_13 = arith.constant 0 : i32
    %15 = tpu.memref_slice %arg8[%c1_i32_12, %c0_i32_13] : memref<8x32xf32, #tpu.memory_space<vmem>> -> memref<1x32xf32, #tpu.memory_space<vmem>>
    %16 = tpu.memref_slice %arg9[%c1_i32_10] : memref<2x!tpu.dma_semaphore, #tpu.memory_space<semaphore_mem>> -> memref<1x!tpu.dma_semaphore, #tpu.memory_space<semaphore_mem>>
    %17 = tpu.memref_squeeze %16 : memref<1x!tpu.dma_semaphore, #tpu.memory_space<semaphore_mem>> -> memref<!tpu.dma_semaphore, #tpu.memory_space<semaphore_mem>>
    tpu.enqueue_dma source(%14 : memref<1x32xf32, #tpu.memory_space<any>>) target(%15 : memref<1x32xf32, #tpu.memory_space<vmem>>) target_semaphore(%17 : memref<!tpu.dma_semaphore, #tpu.memory_space<semaphore_mem>>)
    %c2 = arith.constant 2 : index
    %18 = memref.load %arg0[%c2] : memref<8xi32, #tpu.memory_space<smem>>
    %c0_i32_14 = arith.constant 0 : i32
    %c0_i32_15 = arith.constant 0 : i32
    %19 = tpu.memref_slice %arg3[%18, %c0_i32_15] : memref<1024x32xf32, #tpu.memory_space<any>> -> memref<1x32xf32, #tpu.memory_space<any>>
    %c2_i32 = arith.constant 2 : i32
    %c0_i32_16 = arith.constant 0 : i32
    %20 = tpu.memref_slice %arg7[%c2_i32, %c0_i32_16] : memref<8x32xf32, #tpu.memory_space<vmem>> -> memref<1x32xf32, #tpu.memory_space<vmem>>
    %21 = tpu.memref_slice %arg9[%c0_i32_14] : memref<2x!tpu.dma_semaphore, #tpu.memory_space<semaphore_mem>> -> memref<1x!tpu.dma_semaphore, #tpu.memory_space<semaphore_mem>>
    %22 = tpu.memref_squeeze %21 : memref<1x!tpu.dma_semaphore, #tpu.memory_space<semaphore_mem>> -> memref<!tpu.dma_semaphore, #tpu.memory_space<semaphore_mem>>
    tpu.enqueue_dma source(%19 : memref<1x32xf32, #tpu.memory_space<any>>) target(%20 : memref<1x32xf32, #tpu.memory_space<vmem>>) target_semaphore(%22 : memref<!tpu.dma_semaphore, #tpu.memory_space<semaphore_mem>>)
    %c1_i32_17 = arith.constant 1 : i32
    %c0_i32_18 = arith.constant 0 : i32
    %23 = tpu.memref_slice %arg4[%18, %c0_i32_18] : memref<1024x32xf32, #tpu.memory_space<any>> -> memref<1x32xf32, #tpu.memory_space<any>>
    %c2_i32_19 = arith.constant 2 : i32
    %c0_i32_20 = arith.constant 0 : i32
    %24 = tpu.memref_slice %arg8[%c2_i32_19, %c0_i32_20] : memref<8x32xf32, #tpu.memory_space<vmem>> -> memref<1x32xf32, #tpu.memory_space<vmem>>
    %25 = tpu.memref_slice %arg9[%c1_i32_17] : memref<2x!tpu.dma_semaphore, #tpu.memory_space<semaphore_mem>> -> memref<1x!tpu.dma_semaphore, #tpu.memory_space<semaphore_mem>>
    %26 = tpu.memref_squeeze %25 : memref<1x!tpu.dma_semaphore, #tpu.memory_space<semaphore_mem>> -> memref<!tpu.dma_semaphore, #tpu.memory_space<semaphore_mem>>
    tpu.enqueue_dma source(%23 : memref<1x32xf32, #tpu.memory_space<any>>) target(%24 : memref<1x32xf32, #tpu.memory_space<vmem>>) target_semaphore(%26 : memref<!tpu.dma_semaphore, #tpu.memory_space<semaphore_mem>>)
    %c3 = arith.constant 3 : index
    %27 = memref.load %arg0[%c3] : memref<8xi32, #tpu.memory_space<smem>>
    %c0_i32_21 = arith.constant 0 : i32
    %c0_i32_22 = arith.constant 0 : i32
    %28 = tpu.memref_slice %arg3[%27, %c0_i32_22] : memref<1024x32xf32, #tpu.memory_space<any>> -> memref<1x32xf32, #tpu.memory_space<any>>
    %c3_i32 = arith.constant 3 : i32
    %c0_i32_23 = arith.constant 0 : i32
    %29 = tpu.memref_slice %arg7[%c3_i32, %c0_i32_23] : memref<8x32xf32, #tpu.memory_space<vmem>> -> memref<1x32xf32, #tpu.memory_space<vmem>>
    %30 = tpu.memref_slice %arg9[%c0_i32_21] : memref<2x!tpu.dma_semaphore, #tpu.memory_space<semaphore_mem>> -> memref<1x!tpu.dma_semaphore, #tpu.memory_space<semaphore_mem>>
    %31 = tpu.memref_squeeze %30 : memref<1x!tpu.dma_semaphore, #tpu.memory_space<semaphore_mem>> -> memref<!tpu.dma_semaphore, #tpu.memory_space<semaphore_mem>>
    tpu.enqueue_dma source(%28 : memref<1x32xf32, #tpu.memory_space<any>>) target(%29 : memref<1x32xf32, #tpu.memory_space<vmem>>) target_semaphore(%31 : memref<!tpu.dma_semaphore, #tpu.memory_space<semaphore_mem>>)
    %c1_i32_24 = arith.constant 1 : i32
    %c0_i32_25 = arith.constant 0 : i32
    %32 = tpu.memref_slice %arg4[%27, %c0_i32_25] : memref<1024x32xf32, #tpu.memory_space<any>> -> memref<1x32xf32, #tpu.memory_space<any>>
    %c3_i32_26 = arith.constant 3 : i32
    %c0_i32_27 = arith.constant 0 : i32
    %33 = tpu.memref_slice %arg8[%c3_i32_26, %c0_i32_27] : memref<8x32xf32, #tpu.memory_space<vmem>> -> memref<1x32xf32, #tpu.memory_space<vmem>>
    %34 = tpu.memref_slice %arg9[%c1_i32_24] : memref<2x!tpu.dma_semaphore, #tpu.memory_space<semaphore_mem>> -> memref<1x!tpu.dma_semaphore, #tpu.memory_space<semaphore_mem>>
    %35 = tpu.memref_squeeze %34 : memref<1x!tpu.dma_semaphore, #tpu.memory_space<semaphore_mem>> -> memref<!tpu.dma_semaphore, #tpu.memory_space<semaphore_mem>>
    tpu.enqueue_dma source(%32 : memref<1x32xf32, #tpu.memory_space<any>>) target(%33 : memref<1x32xf32, #tpu.memory_space<vmem>>) target_semaphore(%35 : memref<!tpu.dma_semaphore, #tpu.memory_space<semaphore_mem>>)
    %c4 = arith.constant 4 : index
    %36 = memref.load %arg0[%c4] : memref<8xi32, #tpu.memory_space<smem>>
    %c0_i32_28 = arith.constant 0 : i32
    %c0_i32_29 = arith.constant 0 : i32
    %37 = tpu.memref_slice %arg3[%36, %c0_i32_29] : memref<1024x32xf32, #tpu.memory_space<any>> -> memref<1x32xf32, #tpu.memory_space<any>>
    %c4_i32 = arith.constant 4 : i32
    %c0_i32_30 = arith.constant 0 : i32
    %38 = tpu.memref_slice %arg7[%c4_i32, %c0_i32_30] : memref<8x32xf32, #tpu.memory_space<vmem>> -> memref<1x32xf32, #tpu.memory_space<vmem>>
    %39 = tpu.memref_slice %arg9[%c0_i32_28] : memref<2x!tpu.dma_semaphore, #tpu.memory_space<semaphore_mem>> -> memref<1x!tpu.dma_semaphore, #tpu.memory_space<semaphore_mem>>
    %40 = tpu.memref_squeeze %39 : memref<1x!tpu.dma_semaphore, #tpu.memory_space<semaphore_mem>> -> memref<!tpu.dma_semaphore, #tpu.memory_space<semaphore_mem>>
    tpu.enqueue_dma source(%37 : memref<1x32xf32, #tpu.memory_space<any>>) target(%38 : memref<1x32xf32, #tpu.memory_space<vmem>>) target_semaphore(%40 : memref<!tpu.dma_semaphore, #tpu.memory_space<semaphore_mem>>)
    %c1_i32_31 = arith.constant 1 : i32
    %c0_i32_32 = arith.constant 0 : i32
    %41 = tpu.memref_slice %arg4[%36, %c0_i32_32] : memref<1024x32xf32, #tpu.memory_space<any>> -> memref<1x32xf32, #tpu.memory_space<any>>
    %c4_i32_33 = arith.constant 4 : i32
    %c0_i32_34 = arith.constant 0 : i32
    %42 = tpu.memref_slice %arg8[%c4_i32_33, %c0_i32_34] : memref<8x32xf32, #tpu.memory_space<vmem>> -> memref<1x32xf32, #tpu.memory_space<vmem>>
    %43 = tpu.memref_slice %arg9[%c1_i32_31] : memref<2x!tpu.dma_semaphore, #tpu.memory_space<semaphore_mem>> -> memref<1x!tpu.dma_semaphore, #tpu.memory_space<semaphore_mem>>
    %44 = tpu.memref_squeeze %43 : memref<1x!tpu.dma_semaphore, #tpu.memory_space<semaphore_mem>> -> memref<!tpu.dma_semaphore, #tpu.memory_space<semaphore_mem>>
    tpu.enqueue_dma source(%41 : memref<1x32xf32, #tpu.memory_space<any>>) target(%42 : memref<1x32xf32, #tpu.memory_space<vmem>>) target_semaphore(%44 : memref<!tpu.dma_semaphore, #tpu.memory_space<semaphore_mem>>)
    %c5 = arith.constant 5 : index
    %45 = memref.load %arg0[%c5] : memref<8xi32, #tpu.memory_space<smem>>
    %c0_i32_35 = arith.constant 0 : i32
    %c0_i32_36 = arith.constant 0 : i32
    %46 = tpu.memref_slice %arg3[%45, %c0_i32_36] : memref<1024x32xf32, #tpu.memory_space<any>> -> memref<1x32xf32, #tpu.memory_space<any>>
    %c5_i32 = arith.constant 5 : i32
    %c0_i32_37 = arith.constant 0 : i32
    %47 = tpu.memref_slice %arg7[%c5_i32, %c0_i32_37] : memref<8x32xf32, #tpu.memory_space<vmem>> -> memref<1x32xf32, #tpu.memory_space<vmem>>
    %48 = tpu.memref_slice %arg9[%c0_i32_35] : memref<2x!tpu.dma_semaphore, #tpu.memory_space<semaphore_mem>> -> memref<1x!tpu.dma_semaphore, #tpu.memory_space<semaphore_mem>>
    %49 = tpu.memref_squeeze %48 : memref<1x!tpu.dma_semaphore, #tpu.memory_space<semaphore_mem>> -> memref<!tpu.dma_semaphore, #tpu.memory_space<semaphore_mem>>
    tpu.enqueue_dma source(%46 : memref<1x32xf32, #tpu.memory_space<any>>) target(%47 : memref<1x32xf32, #tpu.memory_space<vmem>>) target_semaphore(%49 : memref<!tpu.dma_semaphore, #tpu.memory_space<semaphore_mem>>)
    %c1_i32_38 = arith.constant 1 : i32
    %c0_i32_39 = arith.constant 0 : i32
    %50 = tpu.memref_slice %arg4[%45, %c0_i32_39] : memref<1024x32xf32, #tpu.memory_space<any>> -> memref<1x32xf32, #tpu.memory_space<any>>
    %c5_i32_40 = arith.constant 5 : i32
    %c0_i32_41 = arith.constant 0 : i32
    %51 = tpu.memref_slice %arg8[%c5_i32_40, %c0_i32_41] : memref<8x32xf32, #tpu.memory_space<vmem>> -> memref<1x32xf32, #tpu.memory_space<vmem>>
    %52 = tpu.memref_slice %arg9[%c1_i32_38] : memref<2x!tpu.dma_semaphore, #tpu.memory_space<semaphore_mem>> -> memref<1x!tpu.dma_semaphore, #tpu.memory_space<semaphore_mem>>
    %53 = tpu.memref_squeeze %52 : memref<1x!tpu.dma_semaphore, #tpu.memory_space<semaphore_mem>> -> memref<!tpu.dma_semaphore, #tpu.memory_space<semaphore_mem>>
    tpu.enqueue_dma source(%50 : memref<1x32xf32, #tpu.memory_space<any>>) target(%51 : memref<1x32xf32, #tpu.memory_space<vmem>>) target_semaphore(%53 : memref<!tpu.dma_semaphore, #tpu.memory_space<semaphore_mem>>)
    %c6 = arith.constant 6 : index
    %54 = memref.load %arg0[%c6] : memref<8xi32, #tpu.memory_space<smem>>
    %c0_i32_42 = arith.constant 0 : i32
    %c0_i32_43 = arith.constant 0 : i32
    %55 = tpu.memref_slice %arg3[%54, %c0_i32_43] : memref<1024x32xf32, #tpu.memory_space<any>> -> memref<1x32xf32, #tpu.memory_space<any>>
    %c6_i32 = arith.constant 6 : i32
    %c0_i32_44 = arith.constant 0 : i32
    %56 = tpu.memref_slice %arg7[%c6_i32, %c0_i32_44] : memref<8x32xf32, #tpu.memory_space<vmem>> -> memref<1x32xf32, #tpu.memory_space<vmem>>
    %57 = tpu.memref_slice %arg9[%c0_i32_42] : memref<2x!tpu.dma_semaphore, #tpu.memory_space<semaphore_mem>> -> memref<1x!tpu.dma_semaphore, #tpu.memory_space<semaphore_mem>>
    %58 = tpu.memref_squeeze %57 : memref<1x!tpu.dma_semaphore, #tpu.memory_space<semaphore_mem>> -> memref<!tpu.dma_semaphore, #tpu.memory_space<semaphore_mem>>
    tpu.enqueue_dma source(%55 : memref<1x32xf32, #tpu.memory_space<any>>) target(%56 : memref<1x32xf32, #tpu.memory_space<vmem>>) target_semaphore(%58 : memref<!tpu.dma_semaphore, #tpu.memory_space<semaphore_mem>>)
    %c1_i32_45 = arith.constant 1 : i32
    %c0_i32_46 = arith.constant 0 : i32
    %59 = tpu.memref_slice %arg4[%54, %c0_i32_46] : memref<1024x32xf32, #tpu.memory_space<any>> -> memref<1x32xf32, #tpu.memory_space<any>>
    %c6_i32_47 = arith.constant 6 : i32
    %c0_i32_48 = arith.constant 0 : i32
    %60 = tpu.memref_slice %arg8[%c6_i32_47, %c0_i32_48] : memref<8x32xf32, #tpu.memory_space<vmem>> -> memref<1x32xf32, #tpu.memory_space<vmem>>
    %61 = tpu.memref_slice %arg9[%c1_i32_45] : memref<2x!tpu.dma_semaphore, #tpu.memory_space<semaphore_mem>> -> memref<1x!tpu.dma_semaphore, #tpu.memory_space<semaphore_mem>>
    %62 = tpu.memref_squeeze %61 : memref<1x!tpu.dma_semaphore, #tpu.memory_space<semaphore_mem>> -> memref<!tpu.dma_semaphore, #tpu.memory_space<semaphore_mem>>
    tpu.enqueue_dma source(%59 : memref<1x32xf32, #tpu.memory_space<any>>) target(%60 : memref<1x32xf32, #tpu.memory_space<vmem>>) target_semaphore(%62 : memref<!tpu.dma_semaphore, #tpu.memory_space<semaphore_mem>>)
    %c7 = arith.constant 7 : index
    %63 = memref.load %arg0[%c7] : memref<8xi32, #tpu.memory_space<smem>>
    %c0_i32_49 = arith.constant 0 : i32
    %c0_i32_50 = arith.constant 0 : i32
    %64 = tpu.memref_slice %arg3[%63, %c0_i32_50] : memref<1024x32xf32, #tpu.memory_space<any>> -> memref<1x32xf32, #tpu.memory_space<any>>
    %c7_i32 = arith.constant 7 : i32
    %c0_i32_51 = arith.constant 0 : i32
    %65 = tpu.memref_slice %arg7[%c7_i32, %c0_i32_51] : memref<8x32xf32, #tpu.memory_space<vmem>> -> memref<1x32xf32, #tpu.memory_space<vmem>>
    %66 = tpu.memref_slice %arg9[%c0_i32_49] : memref<2x!tpu.dma_semaphore, #tpu.memory_space<semaphore_mem>> -> memref<1x!tpu.dma_semaphore, #tpu.memory_space<semaphore_mem>>
    %67 = tpu.memref_squeeze %66 : memref<1x!tpu.dma_semaphore, #tpu.memory_space<semaphore_mem>> -> memref<!tpu.dma_semaphore, #tpu.memory_space<semaphore_mem>>
    tpu.enqueue_dma source(%64 : memref<1x32xf32, #tpu.memory_space<any>>) target(%65 : memref<1x32xf32, #tpu.memory_space<vmem>>) target_semaphore(%67 : memref<!tpu.dma_semaphore, #tpu.memory_space<semaphore_mem>>)
    %c1_i32_52 = arith.constant 1 : i32
    %c0_i32_53 = arith.constant 0 : i32
    %68 = tpu.memref_slice %arg4[%63, %c0_i32_53] : memref<1024x32xf32, #tpu.memory_space<any>> -> memref<1x32xf32, #tpu.memory_space<any>>
    %c7_i32_54 = arith.constant 7 : i32
    %c0_i32_55 = arith.constant 0 : i32
    %69 = tpu.memref_slice %arg8[%c7_i32_54, %c0_i32_55] : memref<8x32xf32, #tpu.memory_space<vmem>> -> memref<1x32xf32, #tpu.memory_space<vmem>>
    %70 = tpu.memref_slice %arg9[%c1_i32_52] : memref<2x!tpu.dma_semaphore, #tpu.memory_space<semaphore_mem>> -> memref<1x!tpu.dma_semaphore, #tpu.memory_space<semaphore_mem>>
    %71 = tpu.memref_squeeze %70 : memref<1x!tpu.dma_semaphore, #tpu.memory_space<semaphore_mem>> -> memref<!tpu.dma_semaphore, #tpu.memory_space<semaphore_mem>>
    tpu.enqueue_dma source(%68 : memref<1x32xf32, #tpu.memory_space<any>>) target(%69 : memref<1x32xf32, #tpu.memory_space<vmem>>) target_semaphore(%71 : memref<!tpu.dma_semaphore, #tpu.memory_space<semaphore_mem>>)
    %c0_i32_56 = arith.constant 0 : i32
    %c0_i32_57 = arith.constant 0 : i32
    %72 = tpu.memref_slice %arg3[%0, %c0_i32_57] : memref<1024x32xf32, #tpu.memory_space<any>> -> memref<1x32xf32, #tpu.memory_space<any>>
    %c0_i32_58 = arith.constant 0 : i32
    %c0_i32_59 = arith.constant 0 : i32
    %73 = tpu.memref_slice %arg7[%c0_i32_58, %c0_i32_59] : memref<8x32xf32, #tpu.memory_space<vmem>> -> memref<1x32xf32, #tpu.memory_space<vmem>>
    %74 = tpu.memref_slice %arg9[%c0_i32_56] : memref<2x!tpu.dma_semaphore, #tpu.memory_space<semaphore_mem>> -> memref<1x!tpu.dma_semaphore, #tpu.memory_space<semaphore_mem>>
    %75 = tpu.memref_squeeze %74 : memref<1x!tpu.dma_semaphore, #tpu.memory_space<semaphore_mem>> -> memref<!tpu.dma_semaphore, #tpu.memory_space<semaphore_mem>>
    tpu.wait_dma2 semaphore(%75 : memref<!tpu.dma_semaphore, #tpu.memory_space<semaphore_mem>>) src(%72 : memref<1x32xf32, #tpu.memory_space<any>>) dst(%73 : memref<1x32xf32, #tpu.memory_space<vmem>>)
    %c1_i32_60 = arith.constant 1 : i32
    %c0_i32_61 = arith.constant 0 : i32
    %76 = tpu.memref_slice %arg4[%0, %c0_i32_61] : memref<1024x32xf32, #tpu.memory_space<any>> -> memref<1x32xf32, #tpu.memory_space<any>>
    %c0_i32_62 = arith.constant 0 : i32
    %c0_i32_63 = arith.constant 0 : i32
    %77 = tpu.memref_slice %arg8[%c0_i32_62, %c0_i32_63] : memref<8x32xf32, #tpu.memory_space<vmem>> -> memref<1x32xf32, #tpu.memory_space<vmem>>
    %78 = tpu.memref_slice %arg9[%c1_i32_60] : memref<2x!tpu.dma_semaphore, #tpu.memory_space<semaphore_mem>> -> memref<1x!tpu.dma_semaphore, #tpu.memory_space<semaphore_mem>>
    %79 = tpu.memref_squeeze %78 : memref<1x!tpu.dma_semaphore, #tpu.memory_space<semaphore_mem>> -> memref<!tpu.dma_semaphore, #tpu.memory_space<semaphore_mem>>
    tpu.wait_dma2 semaphore(%79 : memref<!tpu.dma_semaphore, #tpu.memory_space<semaphore_mem>>) src(%76 : memref<1x32xf32, #tpu.memory_space<any>>) dst(%77 : memref<1x32xf32, #tpu.memory_space<vmem>>)
    %c0_i32_64 = arith.constant 0 : i32
    %c0_i32_65 = arith.constant 0 : i32
    %80 = tpu.memref_slice %arg3[%9, %c0_i32_65] : memref<1024x32xf32, #tpu.memory_space<any>> -> memref<1x32xf32, #tpu.memory_space<any>>
    %c1_i32_66 = arith.constant 1 : i32
    %c0_i32_67 = arith.constant 0 : i32
    %81 = tpu.memref_slice %arg7[%c1_i32_66, %c0_i32_67] : memref<8x32xf32, #tpu.memory_space<vmem>> -> memref<1x32xf32, #tpu.memory_space<vmem>>
    %82 = tpu.memref_slice %arg9[%c0_i32_64] : memref<2x!tpu.dma_semaphore, #tpu.memory_space<semaphore_mem>> -> memref<1x!tpu.dma_semaphore, #tpu.memory_space<semaphore_mem>>
    %83 = tpu.memref_squeeze %82 : memref<1x!tpu.dma_semaphore, #tpu.memory_space<semaphore_mem>> -> memref<!tpu.dma_semaphore, #tpu.memory_space<semaphore_mem>>
    tpu.wait_dma2 semaphore(%83 : memref<!tpu.dma_semaphore, #tpu.memory_space<semaphore_mem>>) src(%80 : memref<1x32xf32, #tpu.memory_space<any>>) dst(%81 : memref<1x32xf32, #tpu.memory_space<vmem>>)
    %c1_i32_68 = arith.constant 1 : i32
    %c0_i32_69 = arith.constant 0 : i32
    %84 = tpu.memref_slice %arg4[%9, %c0_i32_69] : memref<1024x32xf32, #tpu.memory_space<any>> -> memref<1x32xf32, #tpu.memory_space<any>>
    %c1_i32_70 = arith.constant 1 : i32
    %c0_i32_71 = arith.constant 0 : i32
    %85 = tpu.memref_slice %arg8[%c1_i32_70, %c0_i32_71] : memref<8x32xf32, #tpu.memory_space<vmem>> -> memref<1x32xf32, #tpu.memory_space<vmem>>
    %86 = tpu.memref_slice %arg9[%c1_i32_68] : memref<2x!tpu.dma_semaphore, #tpu.memory_space<semaphore_mem>> -> memref<1x!tpu.dma_semaphore, #tpu.memory_space<semaphore_mem>>
    %87 = tpu.memref_squeeze %86 : memref<1x!tpu.dma_semaphore, #tpu.memory_space<semaphore_mem>> -> memref<!tpu.dma_semaphore, #tpu.memory_space<semaphore_mem>>
    tpu.wait_dma2 semaphore(%87 : memref<!tpu.dma_semaphore, #tpu.memory_space<semaphore_mem>>) src(%84 : memref<1x32xf32, #tpu.memory_space<any>>) dst(%85 : memref<1x32xf32, #tpu.memory_space<vmem>>)
    %c0_i32_72 = arith.constant 0 : i32
    %c0_i32_73 = arith.constant 0 : i32
    %88 = tpu.memref_slice %arg3[%18, %c0_i32_73] : memref<1024x32xf32, #tpu.memory_space<any>> -> memref<1x32xf32, #tpu.memory_space<any>>
    %c2_i32_74 = arith.constant 2 : i32
    %c0_i32_75 = arith.constant 0 : i32
    %89 = tpu.memref_slice %arg7[%c2_i32_74, %c0_i32_75] : memref<8x32xf32, #tpu.memory_space<vmem>> -> memref<1x32xf32, #tpu.memory_space<vmem>>
    %90 = tpu.memref_slice %arg9[%c0_i32_72] : memref<2x!tpu.dma_semaphore, #tpu.memory_space<semaphore_mem>> -> memref<1x!tpu.dma_semaphore, #tpu.memory_space<semaphore_mem>>
    %91 = tpu.memref_squeeze %90 : memref<1x!tpu.dma_semaphore, #tpu.memory_space<semaphore_mem>> -> memref<!tpu.dma_semaphore, #tpu.memory_space<semaphore_mem>>
    tpu.wait_dma2 semaphore(%91 : memref<!tpu.dma_semaphore, #tpu.memory_space<semaphore_mem>>) src(%88 : memref<1x32xf32, #tpu.memory_space<any>>) dst(%89 : memref<1x32xf32, #tpu.memory_space<vmem>>)
    %c1_i32_76 = arith.constant 1 : i32
    %c0_i32_77 = arith.constant 0 : i32
    %92 = tpu.memref_slice %arg4[%18, %c0_i32_77] : memref<1024x32xf32, #tpu.memory_space<any>> -> memref<1x32xf32, #tpu.memory_space<any>>
    %c2_i32_78 = arith.constant 2 : i32
    %c0_i32_79 = arith.constant 0 : i32
    %93 = tpu.memref_slice %arg8[%c2_i32_78, %c0_i32_79] : memref<8x32xf32, #tpu.memory_space<vmem>> -> memref<1x32xf32, #tpu.memory_space<vmem>>
    %94 = tpu.memref_slice %arg9[%c1_i32_76] : memref<2x!tpu.dma_semaphore, #tpu.memory_space<semaphore_mem>> -> memref<1x!tpu.dma_semaphore, #tpu.memory_space<semaphore_mem>>
    %95 = tpu.memref_squeeze %94 : memref<1x!tpu.dma_semaphore, #tpu.memory_space<semaphore_mem>> -> memref<!tpu.dma_semaphore, #tpu.memory_space<semaphore_mem>>
    tpu.wait_dma2 semaphore(%95 : memref<!tpu.dma_semaphore, #tpu.memory_space<semaphore_mem>>) src(%92 : memref<1x32xf32, #tpu.memory_space<any>>) dst(%93 : memref<1x32xf32, #tpu.memory_space<vmem>>)
    %c0_i32_80 = arith.constant 0 : i32
    %c0_i32_81 = arith.constant 0 : i32
    %96 = tpu.memref_slice %arg3[%27, %c0_i32_81] : memref<1024x32xf32, #tpu.memory_space<any>> -> memref<1x32xf32, #tpu.memory_space<any>>
    %c3_i32_82 = arith.constant 3 : i32
    %c0_i32_83 = arith.constant 0 : i32
    %97 = tpu.memref_slice %arg7[%c3_i32_82, %c0_i32_83] : memref<8x32xf32, #tpu.memory_space<vmem>> -> memref<1x32xf32, #tpu.memory_space<vmem>>
    %98 = tpu.memref_slice %arg9[%c0_i32_80] : memref<2x!tpu.dma_semaphore, #tpu.memory_space<semaphore_mem>> -> memref<1x!tpu.dma_semaphore, #tpu.memory_space<semaphore_mem>>
    %99 = tpu.memref_squeeze %98 : memref<1x!tpu.dma_semaphore, #tpu.memory_space<semaphore_mem>> -> memref<!tpu.dma_semaphore, #tpu.memory_space<semaphore_mem>>
    tpu.wait_dma2 semaphore(%99 : memref<!tpu.dma_semaphore, #tpu.memory_space<semaphore_mem>>) src(%96 : memref<1x32xf32, #tpu.memory_space<any>>) dst(%97 : memref<1x32xf32, #tpu.memory_space<vmem>>)
    %c1_i32_84 = arith.constant 1 : i32
    %c0_i32_85 = arith.constant 0 : i32
    %100 = tpu.memref_slice %arg4[%27, %c0_i32_85] : memref<1024x32xf32, #tpu.memory_space<any>> -> memref<1x32xf32, #tpu.memory_space<any>>
    %c3_i32_86 = arith.constant 3 : i32
    %c0_i32_87 = arith.constant 0 : i32
    %101 = tpu.memref_slice %arg8[%c3_i32_86, %c0_i32_87] : memref<8x32xf32, #tpu.memory_space<vmem>> -> memref<1x32xf32, #tpu.memory_space<vmem>>
    %102 = tpu.memref_slice %arg9[%c1_i32_84] : memref<2x!tpu.dma_semaphore, #tpu.memory_space<semaphore_mem>> -> memref<1x!tpu.dma_semaphore, #tpu.memory_space<semaphore_mem>>
    %103 = tpu.memref_squeeze %102 : memref<1x!tpu.dma_semaphore, #tpu.memory_space<semaphore_mem>> -> memref<!tpu.dma_semaphore, #tpu.memory_space<semaphore_mem>>
    tpu.wait_dma2 semaphore(%103 : memref<!tpu.dma_semaphore, #tpu.memory_space<semaphore_mem>>) src(%100 : memref<1x32xf32, #tpu.memory_space<any>>) dst(%101 : memref<1x32xf32, #tpu.memory_space<vmem>>)
    %c0_i32_88 = arith.constant 0 : i32
    %c0_i32_89 = arith.constant 0 : i32
    %104 = tpu.memref_slice %arg3[%36, %c0_i32_89] : memref<1024x32xf32, #tpu.memory_space<any>> -> memref<1x32xf32, #tpu.memory_space<any>>
    %c4_i32_90 = arith.constant 4 : i32
    %c0_i32_91 = arith.constant 0 : i32
    %105 = tpu.memref_slice %arg7[%c4_i32_90, %c0_i32_91] : memref<8x32xf32, #tpu.memory_space<vmem>> -> memref<1x32xf32, #tpu.memory_space<vmem>>
    %106 = tpu.memref_slice %arg9[%c0_i32_88] : memref<2x!tpu.dma_semaphore, #tpu.memory_space<semaphore_mem>> -> memref<1x!tpu.dma_semaphore, #tpu.memory_space<semaphore_mem>>
    %107 = tpu.memref_squeeze %106 : memref<1x!tpu.dma_semaphore, #tpu.memory_space<semaphore_mem>> -> memref<!tpu.dma_semaphore, #tpu.memory_space<semaphore_mem>>
    tpu.wait_dma2 semaphore(%107 : memref<!tpu.dma_semaphore, #tpu.memory_space<semaphore_mem>>) src(%104 : memref<1x32xf32, #tpu.memory_space<any>>) dst(%105 : memref<1x32xf32, #tpu.memory_space<vmem>>)
    %c1_i32_92 = arith.constant 1 : i32
    %c0_i32_93 = arith.constant 0 : i32
    %108 = tpu.memref_slice %arg4[%36, %c0_i32_93] : memref<1024x32xf32, #tpu.memory_space<any>> -> memref<1x32xf32, #tpu.memory_space<any>>
    %c4_i32_94 = arith.constant 4 : i32
    %c0_i32_95 = arith.constant 0 : i32
    %109 = tpu.memref_slice %arg8[%c4_i32_94, %c0_i32_95] : memref<8x32xf32, #tpu.memory_space<vmem>> -> memref<1x32xf32, #tpu.memory_space<vmem>>
    %110 = tpu.memref_slice %arg9[%c1_i32_92] : memref<2x!tpu.dma_semaphore, #tpu.memory_space<semaphore_mem>> -> memref<1x!tpu.dma_semaphore, #tpu.memory_space<semaphore_mem>>
    %111 = tpu.memref_squeeze %110 : memref<1x!tpu.dma_semaphore, #tpu.memory_space<semaphore_mem>> -> memref<!tpu.dma_semaphore, #tpu.memory_space<semaphore_mem>>
    tpu.wait_dma2 semaphore(%111 : memref<!tpu.dma_semaphore, #tpu.memory_space<semaphore_mem>>) src(%108 : memref<1x32xf32, #tpu.memory_space<any>>) dst(%109 : memref<1x32xf32, #tpu.memory_space<vmem>>)
    %c0_i32_96 = arith.constant 0 : i32
    %c0_i32_97 = arith.constant 0 : i32
    %112 = tpu.memref_slice %arg3[%45, %c0_i32_97] : memref<1024x32xf32, #tpu.memory_space<any>> -> memref<1x32xf32, #tpu.memory_space<any>>
    %c5_i32_98 = arith.constant 5 : i32
    %c0_i32_99 = arith.constant 0 : i32
    %113 = tpu.memref_slice %arg7[%c5_i32_98, %c0_i32_99] : memref<8x32xf32, #tpu.memory_space<vmem>> -> memref<1x32xf32, #tpu.memory_space<vmem>>
    %114 = tpu.memref_slice %arg9[%c0_i32_96] : memref<2x!tpu.dma_semaphore, #tpu.memory_space<semaphore_mem>> -> memref<1x!tpu.dma_semaphore, #tpu.memory_space<semaphore_mem>>
    %115 = tpu.memref_squeeze %114 : memref<1x!tpu.dma_semaphore, #tpu.memory_space<semaphore_mem>> -> memref<!tpu.dma_semaphore, #tpu.memory_space<semaphore_mem>>
    tpu.wait_dma2 semaphore(%115 : memref<!tpu.dma_semaphore, #tpu.memory_space<semaphore_mem>>) src(%112 : memref<1x32xf32, #tpu.memory_space<any>>) dst(%113 : memref<1x32xf32, #tpu.memory_space<vmem>>)
    %c1_i32_100 = arith.constant 1 : i32
    %c0_i32_101 = arith.constant 0 : i32
    %116 = tpu.memref_slice %arg4[%45, %c0_i32_101] : memref<1024x32xf32, #tpu.memory_space<any>> -> memref<1x32xf32, #tpu.memory_space<any>>
    %c5_i32_102 = arith.constant 5 : i32
    %c0_i32_103 = arith.constant 0 : i32
    %117 = tpu.memref_slice %arg8[%c5_i32_102, %c0_i32_103] : memref<8x32xf32, #tpu.memory_space<vmem>> -> memref<1x32xf32, #tpu.memory_space<vmem>>
    %118 = tpu.memref_slice %arg9[%c1_i32_100] : memref<2x!tpu.dma_semaphore, #tpu.memory_space<semaphore_mem>> -> memref<1x!tpu.dma_semaphore, #tpu.memory_space<semaphore_mem>>
    %119 = tpu.memref_squeeze %118 : memref<1x!tpu.dma_semaphore, #tpu.memory_space<semaphore_mem>> -> memref<!tpu.dma_semaphore, #tpu.memory_space<semaphore_mem>>
    tpu.wait_dma2 semaphore(%119 : memref<!tpu.dma_semaphore, #tpu.memory_space<semaphore_mem>>) src(%116 : memref<1x32xf32, #tpu.memory_space<any>>) dst(%117 : memref<1x32xf32, #tpu.memory_space<vmem>>)
    %c0_i32_104 = arith.constant 0 : i32
    %c0_i32_105 = arith.constant 0 : i32
    %120 = tpu.memref_slice %arg3[%54, %c0_i32_105] : memref<1024x32xf32, #tpu.memory_space<any>> -> memref<1x32xf32, #tpu.memory_space<any>>
    %c6_i32_106 = arith.constant 6 : i32
    %c0_i32_107 = arith.constant 0 : i32
    %121 = tpu.memref_slice %arg7[%c6_i32_106, %c0_i32_107] : memref<8x32xf32, #tpu.memory_space<vmem>> -> memref<1x32xf32, #tpu.memory_space<vmem>>
    %122 = tpu.memref_slice %arg9[%c0_i32_104] : memref<2x!tpu.dma_semaphore, #tpu.memory_space<semaphore_mem>> -> memref<1x!tpu.dma_semaphore, #tpu.memory_space<semaphore_mem>>
    %123 = tpu.memref_squeeze %122 : memref<1x!tpu.dma_semaphore, #tpu.memory_space<semaphore_mem>> -> memref<!tpu.dma_semaphore, #tpu.memory_space<semaphore_mem>>
    tpu.wait_dma2 semaphore(%123 : memref<!tpu.dma_semaphore, #tpu.memory_space<semaphore_mem>>) src(%120 : memref<1x32xf32, #tpu.memory_space<any>>) dst(%121 : memref<1x32xf32, #tpu.memory_space<vmem>>)
    %c1_i32_108 = arith.constant 1 : i32
    %c0_i32_109 = arith.constant 0 : i32
    %124 = tpu.memref_slice %arg4[%54, %c0_i32_109] : memref<1024x32xf32, #tpu.memory_space<any>> -> memref<1x32xf32, #tpu.memory_space<any>>
    %c6_i32_110 = arith.constant 6 : i32
    %c0_i32_111 = arith.constant 0 : i32
    %125 = tpu.memref_slice %arg8[%c6_i32_110, %c0_i32_111] : memref<8x32xf32, #tpu.memory_space<vmem>> -> memref<1x32xf32, #tpu.memory_space<vmem>>
    %126 = tpu.memref_slice %arg9[%c1_i32_108] : memref<2x!tpu.dma_semaphore, #tpu.memory_space<semaphore_mem>> -> memref<1x!tpu.dma_semaphore, #tpu.memory_space<semaphore_mem>>
    %127 = tpu.memref_squeeze %126 : memref<1x!tpu.dma_semaphore, #tpu.memory_space<semaphore_mem>> -> memref<!tpu.dma_semaphore, #tpu.memory_space<semaphore_mem>>
    tpu.wait_dma2 semaphore(%127 : memref<!tpu.dma_semaphore, #tpu.memory_space<semaphore_mem>>) src(%124 : memref<1x32xf32, #tpu.memory_space<any>>) dst(%125 : memref<1x32xf32, #tpu.memory_space<vmem>>)
    %c0_i32_112 = arith.constant 0 : i32
    %c0_i32_113 = arith.constant 0 : i32
    %128 = tpu.memref_slice %arg3[%63, %c0_i32_113] : memref<1024x32xf32, #tpu.memory_space<any>> -> memref<1x32xf32, #tpu.memory_space<any>>
    %c7_i32_114 = arith.constant 7 : i32
    %c0_i32_115 = arith.constant 0 : i32
    %129 = tpu.memref_slice %arg7[%c7_i32_114, %c0_i32_115] : memref<8x32xf32, #tpu.memory_space<vmem>> -> memref<1x32xf32, #tpu.memory_space<vmem>>
    %130 = tpu.memref_slice %arg9[%c0_i32_112] : memref<2x!tpu.dma_semaphore, #tpu.memory_space<semaphore_mem>> -> memref<1x!tpu.dma_semaphore, #tpu.memory_space<semaphore_mem>>
    %131 = tpu.memref_squeeze %130 : memref<1x!tpu.dma_semaphore, #tpu.memory_space<semaphore_mem>> -> memref<!tpu.dma_semaphore, #tpu.memory_space<semaphore_mem>>
    tpu.wait_dma2 semaphore(%131 : memref<!tpu.dma_semaphore, #tpu.memory_space<semaphore_mem>>) src(%128 : memref<1x32xf32, #tpu.memory_space<any>>) dst(%129 : memref<1x32xf32, #tpu.memory_space<vmem>>)
    %c1_i32_116 = arith.constant 1 : i32
    %c0_i32_117 = arith.constant 0 : i32
    %132 = tpu.memref_slice %arg4[%63, %c0_i32_117] : memref<1024x32xf32, #tpu.memory_space<any>> -> memref<1x32xf32, #tpu.memory_space<any>>
    %c7_i32_118 = arith.constant 7 : i32
    %c0_i32_119 = arith.constant 0 : i32
    %133 = tpu.memref_slice %arg8[%c7_i32_118, %c0_i32_119] : memref<8x32xf32, #tpu.memory_space<vmem>> -> memref<1x32xf32, #tpu.memory_space<vmem>>
    %134 = tpu.memref_slice %arg9[%c1_i32_116] : memref<2x!tpu.dma_semaphore, #tpu.memory_space<semaphore_mem>> -> memref<1x!tpu.dma_semaphore, #tpu.memory_space<semaphore_mem>>
    %135 = tpu.memref_squeeze %134 : memref<1x!tpu.dma_semaphore, #tpu.memory_space<semaphore_mem>> -> memref<!tpu.dma_semaphore, #tpu.memory_space<semaphore_mem>>
    tpu.wait_dma2 semaphore(%135 : memref<!tpu.dma_semaphore, #tpu.memory_space<semaphore_mem>>) src(%132 : memref<1x32xf32, #tpu.memory_space<any>>) dst(%133 : memref<1x32xf32, #tpu.memory_space<vmem>>)
    %c0_120 = arith.constant 0 : index
    %c0_121 = arith.constant 0 : index
    %136 = vector.load %arg7[%c0_120, %c0_121] : memref<8x32xf32, #tpu.memory_space<vmem>>, vector<8x32xf32>
    %cst = arith.constant 5.000000e-01 : f32
    %137 = vector.broadcast %cst : f32 to vector<8x32xf32>
    %138 = arith.mulf %136, %137 : vector<8x32xf32>
    %c0_122 = arith.constant 0 : index
    %c0_123 = arith.constant 0 : index
    %139 = vector.load %arg1[%c0_122, %c0_123] : memref<8x32xf32, #tpu.memory_space<vmem>>, vector<8x32xf32>
    %cst_124 = arith.constant 5.000000e-01 : f32
    %140 = vector.broadcast %cst_124 : f32 to vector<8x32xf32>
    %141 = arith.mulf %139, %140 : vector<8x32xf32>
    %142 = arith.addf %138, %141 : vector<8x32xf32>
    %143 = arith.mulf %142, %142 : vector<8x32xf32>
    %cst_125 = arith.constant dense<0.000000e+00> : vector<8xf32>
    %144 = vector.multi_reduction <add>, %143, %cst_125 [1] : vector<8x32xf32> to vector<8xf32>
    %145 = vector.shape_cast %144 : vector<8xf32> to vector<8x1xf32>
    %146 = math.rsqrt %145 : vector<8x1xf32>
    %147 = vector.broadcast %146 : vector<8x1xf32> to vector<8x32xf32>
    %148 = arith.mulf %142, %147 : vector<8x32xf32>
    %c0_126 = arith.constant 0 : index
    %c0_127 = arith.constant 0 : index
    %149 = vector.load %arg7[%c0_126, %c0_127] : memref<8x32xf32, #tpu.memory_space<vmem>>, vector<8x32xf32>
    tpu.vector_store %arg7[%c0_126, %c0_127], %148 {strides = array<i32>} : memref<8x32xf32, #tpu.memory_space<vmem>>, vector<8x32xf32>,
    %c0_128 = arith.constant 0 : index
    %c0_129 = arith.constant 0 : index
    %150 = vector.load %arg8[%c0_128, %c0_129] : memref<8x32xf32, #tpu.memory_space<vmem>>, vector<8x32xf32>
    %cst_130 = arith.constant 5.000000e-01 : f32
    %151 = vector.broadcast %cst_130 : f32 to vector<8x32xf32>
    %152 = arith.mulf %150, %151 : vector<8x32xf32>
    %c0_131 = arith.constant 0 : index
    %c0_132 = arith.constant 0 : index
    %153 = vector.load %arg2[%c0_131, %c0_132] : memref<8x32xf32, #tpu.memory_space<vmem>>, vector<8x32xf32>
    %cst_133 = arith.constant 5.000000e-01 : f32
    %154 = vector.broadcast %cst_133 : f32 to vector<8x32xf32>
    %155 = arith.mulf %153, %154 : vector<8x32xf32>
    %156 = arith.addf %152, %155 : vector<8x32xf32>
    %157 = arith.mulf %156, %156 : vector<8x32xf32>
    %cst_134 = arith.constant dense<0.000000e+00> : vector<8xf32>
    %158 = vector.multi_reduction <add>, %157, %cst_134 [1] : vector<8x32xf32> to vector<8xf32>
    %159 = vector.shape_cast %158 : vector<8xf32> to vector<8x1xf32>
    %160 = math.rsqrt %159 : vector<8x1xf32>
    %161 = vector.broadcast %160 : vector<8x1xf32> to vector<8x32xf32>
    %162 = arith.mulf %156, %161 : vector<8x32xf32>
    %c0_135 = arith.constant 0 : index
    %c0_136 = arith.constant 0 : index
    %163 = vector.load %arg8[%c0_135, %c0_136] : memref<8x32xf32, #tpu.memory_space<vmem>>, vector<8x32xf32>
    tpu.vector_store %arg8[%c0_135, %c0_136], %162 {strides = array<i32>} : memref<8x32xf32, #tpu.memory_space<vmem>>, vector<8x32xf32>,
    %c0_137 = arith.constant 0 : index
    %164 = memref.load %arg0[%c0_137] : memref<8xi32, #tpu.memory_space<smem>>
    %c0_i32_138 = arith.constant 0 : i32
    %c0_i32_139 = arith.constant 0 : i32
    %c0_i32_140 = arith.constant 0 : i32
    %165 = tpu.memref_slice %arg7[%c0_i32_139, %c0_i32_140] : memref<8x32xf32, #tpu.memory_space<vmem>> -> memref<1x32xf32, #tpu.memory_space<vmem>>
    %c0_i32_141 = arith.constant 0 : i32
    %166 = tpu.memref_slice %arg5[%164, %c0_i32_141] : memref<1024x32xf32, #tpu.memory_space<any>> -> memref<1x32xf32, #tpu.memory_space<any>>
    %167 = tpu.memref_slice %arg9[%c0_i32_138] : memref<2x!tpu.dma_semaphore, #tpu.memory_space<semaphore_mem>> -> memref<1x!tpu.dma_semaphore, #tpu.memory_space<semaphore_mem>>
    %168 = tpu.memref_squeeze %167 : memref<1x!tpu.dma_semaphore, #tpu.memory_space<semaphore_mem>> -> memref<!tpu.dma_semaphore, #tpu.memory_space<semaphore_mem>>
    tpu.enqueue_dma source(%165 : memref<1x32xf32, #tpu.memory_space<vmem>>) target(%166 : memref<1x32xf32, #tpu.memory_space<any>>) target_semaphore(%168 : memref<!tpu.dma_semaphore, #tpu.memory_space<semaphore_mem>>)
    %c1_i32_142 = arith.constant 1 : i32
    %c0_i32_143 = arith.constant 0 : i32
    %c0_i32_144 = arith.constant 0 : i32
    %169 = tpu.memref_slice %arg8[%c0_i32_143, %c0_i32_144] : memref<8x32xf32, #tpu.memory_space<vmem>> -> memref<1x32xf32, #tpu.memory_space<vmem>>
    %c0_i32_145 = arith.constant 0 : i32
    %170 = tpu.memref_slice %arg6[%164, %c0_i32_145] : memref<1024x32xf32, #tpu.memory_space<any>> -> memref<1x32xf32, #tpu.memory_space<any>>
    %171 = tpu.memref_slice %arg9[%c1_i32_142] : memref<2x!tpu.dma_semaphore, #tpu.memory_space<semaphore_mem>> -> memref<1x!tpu.dma_semaphore, #tpu.memory_space<semaphore_mem>>
    %172 = tpu.memref_squeeze %171 : memref<1x!tpu.dma_semaphore, #tpu.memory_space<semaphore_mem>> -> memref<!tpu.dma_semaphore, #tpu.memory_space<semaphore_mem>>
    tpu.enqueue_dma source(%169 : memref<1x32xf32, #tpu.memory_space<vmem>>) target(%170 : memref<1x32xf32, #tpu.memory_space<any>>) target_semaphore(%172 : memref<!tpu.dma_semaphore, #tpu.memory_space<semaphore_mem>>)
    %c1_146 = arith.constant 1 : index
    %173 = memref.load %arg0[%c1_146] : memref<8xi32, #tpu.memory_space<smem>>
    %c0_i32_147 = arith.constant 0 : i32
    %c1_i32_148 = arith.constant 1 : i32
    %c0_i32_149 = arith.constant 0 : i32
    %174 = tpu.memref_slice %arg7[%c1_i32_148, %c0_i32_149] : memref<8x32xf32, #tpu.memory_space<vmem>> -> memref<1x32xf32, #tpu.memory_space<vmem>>
    %c0_i32_150 = arith.constant 0 : i32
    %175 = tpu.memref_slice %arg5[%173, %c0_i32_150] : memref<1024x32xf32, #tpu.memory_space<any>> -> memref<1x32xf32, #tpu.memory_space<any>>
    %176 = tpu.memref_slice %arg9[%c0_i32_147] : memref<2x!tpu.dma_semaphore, #tpu.memory_space<semaphore_mem>> -> memref<1x!tpu.dma_semaphore, #tpu.memory_space<semaphore_mem>>
    %177 = tpu.memref_squeeze %176 : memref<1x!tpu.dma_semaphore, #tpu.memory_space<semaphore_mem>> -> memref<!tpu.dma_semaphore, #tpu.memory_space<semaphore_mem>>
    tpu.enqueue_dma source(%174 : memref<1x32xf32, #tpu.memory_space<vmem>>) target(%175 : memref<1x32xf32, #tpu.memory_space<any>>) target_semaphore(%177 : memref<!tpu.dma_semaphore, #tpu.memory_space<semaphore_mem>>)
    %c1_i32_151 = arith.constant 1 : i32
    %c1_i32_152 = arith.constant 1 : i32
    %c0_i32_153 = arith.constant 0 : i32
    %178 = tpu.memref_slice %arg8[%c1_i32_152, %c0_i32_153] : memref<8x32xf32, #tpu.memory_space<vmem>> -> memref<1x32xf32, #tpu.memory_space<vmem>>
    %c0_i32_154 = arith.constant 0 : i32
    %179 = tpu.memref_slice %arg6[%173, %c0_i32_154] : memref<1024x32xf32, #tpu.memory_space<any>> -> memref<1x32xf32, #tpu.memory_space<any>>
    %180 = tpu.memref_slice %arg9[%c1_i32_151] : memref<2x!tpu.dma_semaphore, #tpu.memory_space<semaphore_mem>> -> memref<1x!tpu.dma_semaphore, #tpu.memory_space<semaphore_mem>>
    %181 = tpu.memref_squeeze %180 : memref<1x!tpu.dma_semaphore, #tpu.memory_space<semaphore_mem>> -> memref<!tpu.dma_semaphore, #tpu.memory_space<semaphore_mem>>
    tpu.enqueue_dma source(%178 : memref<1x32xf32, #tpu.memory_space<vmem>>) target(%179 : memref<1x32xf32, #tpu.memory_space<any>>) target_semaphore(%181 : memref<!tpu.dma_semaphore, #tpu.memory_space<semaphore_mem>>)
    %c2_155 = arith.constant 2 : index
    %182 = memref.load %arg0[%c2_155] : memref<8xi32, #tpu.memory_space<smem>>
    %c0_i32_156 = arith.constant 0 : i32
    %c2_i32_157 = arith.constant 2 : i32
    %c0_i32_158 = arith.constant 0 : i32
    %183 = tpu.memref_slice %arg7[%c2_i32_157, %c0_i32_158] : memref<8x32xf32, #tpu.memory_space<vmem>> -> memref<1x32xf32, #tpu.memory_space<vmem>>
    %c0_i32_159 = arith.constant 0 : i32
    %184 = tpu.memref_slice %arg5[%182, %c0_i32_159] : memref<1024x32xf32, #tpu.memory_space<any>> -> memref<1x32xf32, #tpu.memory_space<any>>
    %185 = tpu.memref_slice %arg9[%c0_i32_156] : memref<2x!tpu.dma_semaphore, #tpu.memory_space<semaphore_mem>> -> memref<1x!tpu.dma_semaphore, #tpu.memory_space<semaphore_mem>>
    %186 = tpu.memref_squeeze %185 : memref<1x!tpu.dma_semaphore, #tpu.memory_space<semaphore_mem>> -> memref<!tpu.dma_semaphore, #tpu.memory_space<semaphore_mem>>
    tpu.enqueue_dma source(%183 : memref<1x32xf32, #tpu.memory_space<vmem>>) target(%184 : memref<1x32xf32, #tpu.memory_space<any>>) target_semaphore(%186 : memref<!tpu.dma_semaphore, #tpu.memory_space<semaphore_mem>>)
    %c1_i32_160 = arith.constant 1 : i32
    %c2_i32_161 = arith.constant 2 : i32
    %c0_i32_162 = arith.constant 0 : i32
    %187 = tpu.memref_slice %arg8[%c2_i32_161, %c0_i32_162] : memref<8x32xf32, #tpu.memory_space<vmem>> -> memref<1x32xf32, #tpu.memory_space<vmem>>
    %c0_i32_163 = arith.constant 0 : i32
    %188 = tpu.memref_slice %arg6[%182, %c0_i32_163] : memref<1024x32xf32, #tpu.memory_space<any>> -> memref<1x32xf32, #tpu.memory_space<any>>
    %189 = tpu.memref_slice %arg9[%c1_i32_160] : memref<2x!tpu.dma_semaphore, #tpu.memory_space<semaphore_mem>> -> memref<1x!tpu.dma_semaphore, #tpu.memory_space<semaphore_mem>>
    %190 = tpu.memref_squeeze %189 : memref<1x!tpu.dma_semaphore, #tpu.memory_space<semaphore_mem>> -> memref<!tpu.dma_semaphore, #tpu.memory_space<semaphore_mem>>
    tpu.enqueue_dma source(%187 : memref<1x32xf32, #tpu.memory_space<vmem>>) target(%188 : memref<1x32xf32, #tpu.memory_space<any>>) target_semaphore(%190 : memref<!tpu.dma_semaphore, #tpu.memory_space<semaphore_mem>>)
    %c3_164 = arith.constant 3 : index
    %191 = memref.load %arg0[%c3_164] : memref<8xi32, #tpu.memory_space<smem>>
    %c0_i32_165 = arith.constant 0 : i32
    %c3_i32_166 = arith.constant 3 : i32
    %c0_i32_167 = arith.constant 0 : i32
    %192 = tpu.memref_slice %arg7[%c3_i32_166, %c0_i32_167] : memref<8x32xf32, #tpu.memory_space<vmem>> -> memref<1x32xf32, #tpu.memory_space<vmem>>
    %c0_i32_168 = arith.constant 0 : i32
    %193 = tpu.memref_slice %arg5[%191, %c0_i32_168] : memref<1024x32xf32, #tpu.memory_space<any>> -> memref<1x32xf32, #tpu.memory_space<any>>
    %194 = tpu.memref_slice %arg9[%c0_i32_165] : memref<2x!tpu.dma_semaphore, #tpu.memory_space<semaphore_mem>> -> memref<1x!tpu.dma_semaphore, #tpu.memory_space<semaphore_mem>>
    %195 = tpu.memref_squeeze %194 : memref<1x!tpu.dma_semaphore, #tpu.memory_space<semaphore_mem>> -> memref<!tpu.dma_semaphore, #tpu.memory_space<semaphore_mem>>
    tpu.enqueue_dma source(%192 : memref<1x32xf32, #tpu.memory_space<vmem>>) target(%193 : memref<1x32xf32, #tpu.memory_space<any>>) target_semaphore(%195 : memref<!tpu.dma_semaphore, #tpu.memory_space<semaphore_mem>>)
    %c1_i32_169 = arith.constant 1 : i32
    %c3_i32_170 = arith.constant 3 : i32
    %c0_i32_171 = arith.constant 0 : i32
    %196 = tpu.memref_slice %arg8[%c3_i32_170, %c0_i32_171] : memref<8x32xf32, #tpu.memory_space<vmem>> -> memref<1x32xf32, #tpu.memory_space<vmem>>
    %c0_i32_172 = arith.constant 0 : i32
    %197 = tpu.memref_slice %arg6[%191, %c0_i32_172] : memref<1024x32xf32, #tpu.memory_space<any>> -> memref<1x32xf32, #tpu.memory_space<any>>
    %198 = tpu.memref_slice %arg9[%c1_i32_169] : memref<2x!tpu.dma_semaphore, #tpu.memory_space<semaphore_mem>> -> memref<1x!tpu.dma_semaphore, #tpu.memory_space<semaphore_mem>>
    %199 = tpu.memref_squeeze %198 : memref<1x!tpu.dma_semaphore, #tpu.memory_space<semaphore_mem>> -> memref<!tpu.dma_semaphore, #tpu.memory_space<semaphore_mem>>
    tpu.enqueue_dma source(%196 : memref<1x32xf32, #tpu.memory_space<vmem>>) target(%197 : memref<1x32xf32, #tpu.memory_space<any>>) target_semaphore(%199 : memref<!tpu.dma_semaphore, #tpu.memory_space<semaphore_mem>>)
    %c4_173 = arith.constant 4 : index
    %200 = memref.load %arg0[%c4_173] : memref<8xi32, #tpu.memory_space<smem>>
    %c0_i32_174 = arith.constant 0 : i32
    %c4_i32_175 = arith.constant 4 : i32
    %c0_i32_176 = arith.constant 0 : i32
    %201 = tpu.memref_slice %arg7[%c4_i32_175, %c0_i32_176] : memref<8x32xf32, #tpu.memory_space<vmem>> -> memref<1x32xf32, #tpu.memory_space<vmem>>
    %c0_i32_177 = arith.constant 0 : i32
    %202 = tpu.memref_slice %arg5[%200, %c0_i32_177] : memref<1024x32xf32, #tpu.memory_space<any>> -> memref<1x32xf32, #tpu.memory_space<any>>
    %203 = tpu.memref_slice %arg9[%c0_i32_174] : memref<2x!tpu.dma_semaphore, #tpu.memory_space<semaphore_mem>> -> memref<1x!tpu.dma_semaphore, #tpu.memory_space<semaphore_mem>>
    %204 = tpu.memref_squeeze %203 : memref<1x!tpu.dma_semaphore, #tpu.memory_space<semaphore_mem>> -> memref<!tpu.dma_semaphore, #tpu.memory_space<semaphore_mem>>
    tpu.enqueue_dma source(%201 : memref<1x32xf32, #tpu.memory_space<vmem>>) target(%202 : memref<1x32xf32, #tpu.memory_space<any>>) target_semaphore(%204 : memref<!tpu.dma_semaphore, #tpu.memory_space<semaphore_mem>>)
    %c1_i32_178 = arith.constant 1 : i32
    %c4_i32_179 = arith.constant 4 : i32
    %c0_i32_180 = arith.constant 0 : i32
    %205 = tpu.memref_slice %arg8[%c4_i32_179, %c0_i32_180] : memref<8x32xf32, #tpu.memory_space<vmem>> -> memref<1x32xf32, #tpu.memory_space<vmem>>
    %c0_i32_181 = arith.constant 0 : i32
    %206 = tpu.memref_slice %arg6[%200, %c0_i32_181] : memref<1024x32xf32, #tpu.memory_space<any>> -> memref<1x32xf32, #tpu.memory_space<any>>
    %207 = tpu.memref_slice %arg9[%c1_i32_178] : memref<2x!tpu.dma_semaphore, #tpu.memory_space<semaphore_mem>> -> memref<1x!tpu.dma_semaphore, #tpu.memory_space<semaphore_mem>>
    %208 = tpu.memref_squeeze %207 : memref<1x!tpu.dma_semaphore, #tpu.memory_space<semaphore_mem>> -> memref<!tpu.dma_semaphore, #tpu.memory_space<semaphore_mem>>
    tpu.enqueue_dma source(%205 : memref<1x32xf32, #tpu.memory_space<vmem>>) target(%206 : memref<1x32xf32, #tpu.memory_space<any>>) target_semaphore(%208 : memref<!tpu.dma_semaphore, #tpu.memory_space<semaphore_mem>>)
    %c5_182 = arith.constant 5 : index
    %209 = memref.load %arg0[%c5_182] : memref<8xi32, #tpu.memory_space<smem>>
    %c0_i32_183 = arith.constant 0 : i32
    %c5_i32_184 = arith.constant 5 : i32
    %c0_i32_185 = arith.constant 0 : i32
    %210 = tpu.memref_slice %arg7[%c5_i32_184, %c0_i32_185] : memref<8x32xf32, #tpu.memory_space<vmem>> -> memref<1x32xf32, #tpu.memory_space<vmem>>
    %c0_i32_186 = arith.constant 0 : i32
    %211 = tpu.memref_slice %arg5[%209, %c0_i32_186] : memref<1024x32xf32, #tpu.memory_space<any>> -> memref<1x32xf32, #tpu.memory_space<any>>
    %212 = tpu.memref_slice %arg9[%c0_i32_183] : memref<2x!tpu.dma_semaphore, #tpu.memory_space<semaphore_mem>> -> memref<1x!tpu.dma_semaphore, #tpu.memory_space<semaphore_mem>>
    %213 = tpu.memref_squeeze %212 : memref<1x!tpu.dma_semaphore, #tpu.memory_space<semaphore_mem>> -> memref<!tpu.dma_semaphore, #tpu.memory_space<semaphore_mem>>
    tpu.enqueue_dma source(%210 : memref<1x32xf32, #tpu.memory_space<vmem>>) target(%211 : memref<1x32xf32, #tpu.memory_space<any>>) target_semaphore(%213 : memref<!tpu.dma_semaphore, #tpu.memory_space<semaphore_mem>>)
    %c1_i32_187 = arith.constant 1 : i32
    %c5_i32_188 = arith.constant 5 : i32
    %c0_i32_189 = arith.constant 0 : i32
    %214 = tpu.memref_slice %arg8[%c5_i32_188, %c0_i32_189] : memref<8x32xf32, #tpu.memory_space<vmem>> -> memref<1x32xf32, #tpu.memory_space<vmem>>
    %c0_i32_190 = arith.constant 0 : i32
    %215 = tpu.memref_slice %arg6[%209, %c0_i32_190] : memref<1024x32xf32, #tpu.memory_space<any>> -> memref<1x32xf32, #tpu.memory_space<any>>
    %216 = tpu.memref_slice %arg9[%c1_i32_187] : memref<2x!tpu.dma_semaphore, #tpu.memory_space<semaphore_mem>> -> memref<1x!tpu.dma_semaphore, #tpu.memory_space<semaphore_mem>>
    %217 = tpu.memref_squeeze %216 : memref<1x!tpu.dma_semaphore, #tpu.memory_space<semaphore_mem>> -> memref<!tpu.dma_semaphore, #tpu.memory_space<semaphore_mem>>
    tpu.enqueue_dma source(%214 : memref<1x32xf32, #tpu.memory_space<vmem>>) target(%215 : memref<1x32xf32, #tpu.memory_space<any>>) target_semaphore(%217 : memref<!tpu.dma_semaphore, #tpu.memory_space<semaphore_mem>>)
    %c6_191 = arith.constant 6 : index
    %218 = memref.load %arg0[%c6_191] : memref<8xi32, #tpu.memory_space<smem>>
    %c0_i32_192 = arith.constant 0 : i32
    %c6_i32_193 = arith.constant 6 : i32
    %c0_i32_194 = arith.constant 0 : i32
    %219 = tpu.memref_slice %arg7[%c6_i32_193, %c0_i32_194] : memref<8x32xf32, #tpu.memory_space<vmem>> -> memref<1x32xf32, #tpu.memory_space<vmem>>
    %c0_i32_195 = arith.constant 0 : i32
    %220 = tpu.memref_slice %arg5[%218, %c0_i32_195] : memref<1024x32xf32, #tpu.memory_space<any>> -> memref<1x32xf32, #tpu.memory_space<any>>
    %221 = tpu.memref_slice %arg9[%c0_i32_192] : memref<2x!tpu.dma_semaphore, #tpu.memory_space<semaphore_mem>> -> memref<1x!tpu.dma_semaphore, #tpu.memory_space<semaphore_mem>>
    %222 = tpu.memref_squeeze %221 : memref<1x!tpu.dma_semaphore, #tpu.memory_space<semaphore_mem>> -> memref<!tpu.dma_semaphore, #tpu.memory_space<semaphore_mem>>
    tpu.enqueue_dma source(%219 : memref<1x32xf32, #tpu.memory_space<vmem>>) target(%220 : memref<1x32xf32, #tpu.memory_space<any>>) target_semaphore(%222 : memref<!tpu.dma_semaphore, #tpu.memory_space<semaphore_mem>>)
    %c1_i32_196 = arith.constant 1 : i32
    %c6_i32_197 = arith.constant 6 : i32
    %c0_i32_198 = arith.constant 0 : i32
    %223 = tpu.memref_slice %arg8[%c6_i32_197, %c0_i32_198] : memref<8x32xf32, #tpu.memory_space<vmem>> -> memref<1x32xf32, #tpu.memory_space<vmem>>
    %c0_i32_199 = arith.constant 0 : i32
    %224 = tpu.memref_slice %arg6[%218, %c0_i32_199] : memref<1024x32xf32, #tpu.memory_space<any>> -> memref<1x32xf32, #tpu.memory_space<any>>
    %225 = tpu.memref_slice %arg9[%c1_i32_196] : memref<2x!tpu.dma_semaphore, #tpu.memory_space<semaphore_mem>> -> memref<1x!tpu.dma_semaphore, #tpu.memory_space<semaphore_mem>>
    %226 = tpu.memref_squeeze %225 : memref<1x!tpu.dma_semaphore, #tpu.memory_space<semaphore_mem>> -> memref<!tpu.dma_semaphore, #tpu.memory_space<semaphore_mem>>
    tpu.enqueue_dma source(%223 : memref<1x32xf32, #tpu.memory_space<vmem>>) target(%224 : memref<1x32xf32, #tpu.memory_space<any>>) target_semaphore(%226 : memref<!tpu.dma_semaphore, #tpu.memory_space<semaphore_mem>>)
    %c7_200 = arith.constant 7 : index
    %227 = memref.load %arg0[%c7_200] : memref<8xi32, #tpu.memory_space<smem>>
    %c0_i32_201 = arith.constant 0 : i32
    %c7_i32_202 = arith.constant 7 : i32
    %c0_i32_203 = arith.constant 0 : i32
    %228 = tpu.memref_slice %arg7[%c7_i32_202, %c0_i32_203] : memref<8x32xf32, #tpu.memory_space<vmem>> -> memref<1x32xf32, #tpu.memory_space<vmem>>
    %c0_i32_204 = arith.constant 0 : i32
    %229 = tpu.memref_slice %arg5[%227, %c0_i32_204] : memref<1024x32xf32, #tpu.memory_space<any>> -> memref<1x32xf32, #tpu.memory_space<any>>
    %230 = tpu.memref_slice %arg9[%c0_i32_201] : memref<2x!tpu.dma_semaphore, #tpu.memory_space<semaphore_mem>> -> memref<1x!tpu.dma_semaphore, #tpu.memory_space<semaphore_mem>>
    %231 = tpu.memref_squeeze %230 : memref<1x!tpu.dma_semaphore, #tpu.memory_space<semaphore_mem>> -> memref<!tpu.dma_semaphore, #tpu.memory_space<semaphore_mem>>
    tpu.enqueue_dma source(%228 : memref<1x32xf32, #tpu.memory_space<vmem>>) target(%229 : memref<1x32xf32, #tpu.memory_space<any>>) target_semaphore(%231 : memref<!tpu.dma_semaphore, #tpu.memory_space<semaphore_mem>>)
    %c1_i32_205 = arith.constant 1 : i32
    %c7_i32_206 = arith.constant 7 : i32
    %c0_i32_207 = arith.constant 0 : i32
    %232 = tpu.memref_slice %arg8[%c7_i32_206, %c0_i32_207] : memref<8x32xf32, #tpu.memory_space<vmem>> -> memref<1x32xf32, #tpu.memory_space<vmem>>
    %c0_i32_208 = arith.constant 0 : i32
    %233 = tpu.memref_slice %arg6[%227, %c0_i32_208] : memref<1024x32xf32, #tpu.memory_space<any>> -> memref<1x32xf32, #tpu.memory_space<any>>
    %234 = tpu.memref_slice %arg9[%c1_i32_205] : memref<2x!tpu.dma_semaphore, #tpu.memory_space<semaphore_mem>> -> memref<1x!tpu.dma_semaphore, #tpu.memory_space<semaphore_mem>>
    %235 = tpu.memref_squeeze %234 : memref<1x!tpu.dma_semaphore, #tpu.memory_space<semaphore_mem>> -> memref<!tpu.dma_semaphore, #tpu.memory_space<semaphore_mem>>
    tpu.enqueue_dma source(%232 : memref<1x32xf32, #tpu.memory_space<vmem>>) target(%233 : memref<1x32xf32, #tpu.memory_space<any>>) target_semaphore(%235 : memref<!tpu.dma_semaphore, #tpu.memory_space<semaphore_mem>>)
    %c0_i32_209 = arith.constant 0 : i32
    %c0_i32_210 = arith.constant 0 : i32
    %c0_i32_211 = arith.constant 0 : i32
    %236 = tpu.memref_slice %arg7[%c0_i32_210, %c0_i32_211] : memref<8x32xf32, #tpu.memory_space<vmem>> -> memref<1x32xf32, #tpu.memory_space<vmem>>
    %c0_i32_212 = arith.constant 0 : i32
    %237 = tpu.memref_slice %arg5[%164, %c0_i32_212] : memref<1024x32xf32, #tpu.memory_space<any>> -> memref<1x32xf32, #tpu.memory_space<any>>
    %238 = tpu.memref_slice %arg9[%c0_i32_209] : memref<2x!tpu.dma_semaphore, #tpu.memory_space<semaphore_mem>> -> memref<1x!tpu.dma_semaphore, #tpu.memory_space<semaphore_mem>>
    %239 = tpu.memref_squeeze %238 : memref<1x!tpu.dma_semaphore, #tpu.memory_space<semaphore_mem>> -> memref<!tpu.dma_semaphore, #tpu.memory_space<semaphore_mem>>
    tpu.wait_dma2 semaphore(%239 : memref<!tpu.dma_semaphore, #tpu.memory_space<semaphore_mem>>) src(%236 : memref<1x32xf32, #tpu.memory_space<vmem>>) dst(%237 : memref<1x32xf32, #tpu.memory_space<any>>)
    %c1_i32_213 = arith.constant 1 : i32
    %c0_i32_214 = arith.constant 0 : i32
    %c0_i32_215 = arith.constant 0 : i32
    %240 = tpu.memref_slice %arg8[%c0_i32_214, %c0_i32_215] : memref<8x32xf32, #tpu.memory_space<vmem>> -> memref<1x32xf32, #tpu.memory_space<vmem>>
    %c0_i32_216 = arith.constant 0 : i32
    %241 = tpu.memref_slice %arg6[%164, %c0_i32_216] : memref<1024x32xf32, #tpu.memory_space<any>> -> memref<1x32xf32, #tpu.memory_space<any>>
    %242 = tpu.memref_slice %arg9[%c1_i32_213] : memref<2x!tpu.dma_semaphore, #tpu.memory_space<semaphore_mem>> -> memref<1x!tpu.dma_semaphore, #tpu.memory_space<semaphore_mem>>
    %243 = tpu.memref_squeeze %242 : memref<1x!tpu.dma_semaphore, #tpu.memory_space<semaphore_mem>> -> memref<!tpu.dma_semaphore, #tpu.memory_space<semaphore_mem>>
    tpu.wait_dma2 semaphore(%243 : memref<!tpu.dma_semaphore, #tpu.memory_space<semaphore_mem>>) src(%240 : memref<1x32xf32, #tpu.memory_space<vmem>>) dst(%241 : memref<1x32xf32, #tpu.memory_space<any>>)
    %c0_i32_217 = arith.constant 0 : i32
    %c1_i32_218 = arith.constant 1 : i32
    %c0_i32_219 = arith.constant 0 : i32
    %244 = tpu.memref_slice %arg7[%c1_i32_218, %c0_i32_219] : memref<8x32xf32, #tpu.memory_space<vmem>> -> memref<1x32xf32, #tpu.memory_space<vmem>>
    %c0_i32_220 = arith.constant 0 : i32
    %245 = tpu.memref_slice %arg5[%173, %c0_i32_220] : memref<1024x32xf32, #tpu.memory_space<any>> -> memref<1x32xf32, #tpu.memory_space<any>>
    %246 = tpu.memref_slice %arg9[%c0_i32_217] : memref<2x!tpu.dma_semaphore, #tpu.memory_space<semaphore_mem>> -> memref<1x!tpu.dma_semaphore, #tpu.memory_space<semaphore_mem>>
    %247 = tpu.memref_squeeze %246 : memref<1x!tpu.dma_semaphore, #tpu.memory_space<semaphore_mem>> -> memref<!tpu.dma_semaphore, #tpu.memory_space<semaphore_mem>>
    tpu.wait_dma2 semaphore(%247 : memref<!tpu.dma_semaphore, #tpu.memory_space<semaphore_mem>>) src(%244 : memref<1x32xf32, #tpu.memory_space<vmem>>) dst(%245 : memref<1x32xf32, #tpu.memory_space<any>>)
    %c1_i32_221 = arith.constant 1 : i32
    %c1_i32_222 = arith.constant 1 : i32
    %c0_i32_223 = arith.constant 0 : i32
    %248 = tpu.memref_slice %arg8[%c1_i32_222, %c0_i32_223] : memref<8x32xf32, #tpu.memory_space<vmem>> -> memref<1x32xf32, #tpu.memory_space<vmem>>
    %c0_i32_224 = arith.constant 0 : i32
    %249 = tpu.memref_slice %arg6[%173, %c0_i32_224] : memref<1024x32xf32, #tpu.memory_space<any>> -> memref<1x32xf32, #tpu.memory_space<any>>
    %250 = tpu.memref_slice %arg9[%c1_i32_221] : memref<2x!tpu.dma_semaphore, #tpu.memory_space<semaphore_mem>> -> memref<1x!tpu.dma_semaphore, #tpu.memory_space<semaphore_mem>>
    %251 = tpu.memref_squeeze %250 : memref<1x!tpu.dma_semaphore, #tpu.memory_space<semaphore_mem>> -> memref<!tpu.dma_semaphore, #tpu.memory_space<semaphore_mem>>
    tpu.wait_dma2 semaphore(%251 : memref<!tpu.dma_semaphore, #tpu.memory_space<semaphore_mem>>) src(%248 : memref<1x32xf32, #tpu.memory_space<vmem>>) dst(%249 : memref<1x32xf32, #tpu.memory_space<any>>)
    %c0_i32_225 = arith.constant 0 : i32
    %c2_i32_226 = arith.constant 2 : i32
    %c0_i32_227 = arith.constant 0 : i32
    %252 = tpu.memref_slice %arg7[%c2_i32_226, %c0_i32_227] : memref<8x32xf32, #tpu.memory_space<vmem>> -> memref<1x32xf32, #tpu.memory_space<vmem>>
    %c0_i32_228 = arith.constant 0 : i32
    %253 = tpu.memref_slice %arg5[%182, %c0_i32_228] : memref<1024x32xf32, #tpu.memory_space<any>> -> memref<1x32xf32, #tpu.memory_space<any>>
    %254 = tpu.memref_slice %arg9[%c0_i32_225] : memref<2x!tpu.dma_semaphore, #tpu.memory_space<semaphore_mem>> -> memref<1x!tpu.dma_semaphore, #tpu.memory_space<semaphore_mem>>
    %255 = tpu.memref_squeeze %254 : memref<1x!tpu.dma_semaphore, #tpu.memory_space<semaphore_mem>> -> memref<!tpu.dma_semaphore, #tpu.memory_space<semaphore_mem>>
    tpu.wait_dma2 semaphore(%255 : memref<!tpu.dma_semaphore, #tpu.memory_space<semaphore_mem>>) src(%252 : memref<1x32xf32, #tpu.memory_space<vmem>>) dst(%253 : memref<1x32xf32, #tpu.memory_space<any>>)
    %c1_i32_229 = arith.constant 1 : i32
    %c2_i32_230 = arith.constant 2 : i32
    %c0_i32_231 = arith.constant 0 : i32
    %256 = tpu.memref_slice %arg8[%c2_i32_230, %c0_i32_231] : memref<8x32xf32, #tpu.memory_space<vmem>> -> memref<1x32xf32, #tpu.memory_space<vmem>>
    %c0_i32_232 = arith.constant 0 : i32
    %257 = tpu.memref_slice %arg6[%182, %c0_i32_232] : memref<1024x32xf32, #tpu.memory_space<any>> -> memref<1x32xf32, #tpu.memory_space<any>>
    %258 = tpu.memref_slice %arg9[%c1_i32_229] : memref<2x!tpu.dma_semaphore, #tpu.memory_space<semaphore_mem>> -> memref<1x!tpu.dma_semaphore, #tpu.memory_space<semaphore_mem>>
    %259 = tpu.memref_squeeze %258 : memref<1x!tpu.dma_semaphore, #tpu.memory_space<semaphore_mem>> -> memref<!tpu.dma_semaphore, #tpu.memory_space<semaphore_mem>>
    tpu.wait_dma2 semaphore(%259 : memref<!tpu.dma_semaphore, #tpu.memory_space<semaphore_mem>>) src(%256 : memref<1x32xf32, #tpu.memory_space<vmem>>) dst(%257 : memref<1x32xf32, #tpu.memory_space<any>>)
    %c0_i32_233 = arith.constant 0 : i32
    %c3_i32_234 = arith.constant 3 : i32
    %c0_i32_235 = arith.constant 0 : i32
    %260 = tpu.memref_slice %arg7[%c3_i32_234, %c0_i32_235] : memref<8x32xf32, #tpu.memory_space<vmem>> -> memref<1x32xf32, #tpu.memory_space<vmem>>
    %c0_i32_236 = arith.constant 0 : i32
    %261 = tpu.memref_slice %arg5[%191, %c0_i32_236] : memref<1024x32xf32, #tpu.memory_space<any>> -> memref<1x32xf32, #tpu.memory_space<any>>
    %262 = tpu.memref_slice %arg9[%c0_i32_233] : memref<2x!tpu.dma_semaphore, #tpu.memory_space<semaphore_mem>> -> memref<1x!tpu.dma_semaphore, #tpu.memory_space<semaphore_mem>>
    %263 = tpu.memref_squeeze %262 : memref<1x!tpu.dma_semaphore, #tpu.memory_space<semaphore_mem>> -> memref<!tpu.dma_semaphore, #tpu.memory_space<semaphore_mem>>
    tpu.wait_dma2 semaphore(%263 : memref<!tpu.dma_semaphore, #tpu.memory_space<semaphore_mem>>) src(%260 : memref<1x32xf32, #tpu.memory_space<vmem>>) dst(%261 : memref<1x32xf32, #tpu.memory_space<any>>)
    %c1_i32_237 = arith.constant 1 : i32
    %c3_i32_238 = arith.constant 3 : i32
    %c0_i32_239 = arith.constant 0 : i32
    %264 = tpu.memref_slice %arg8[%c3_i32_238, %c0_i32_239] : memref<8x32xf32, #tpu.memory_space<vmem>> -> memref<1x32xf32, #tpu.memory_space<vmem>>
    %c0_i32_240 = arith.constant 0 : i32
    %265 = tpu.memref_slice %arg6[%191, %c0_i32_240] : memref<1024x32xf32, #tpu.memory_space<any>> -> memref<1x32xf32, #tpu.memory_space<any>>
    %266 = tpu.memref_slice %arg9[%c1_i32_237] : memref<2x!tpu.dma_semaphore, #tpu.memory_space<semaphore_mem>> -> memref<1x!tpu.dma_semaphore, #tpu.memory_space<semaphore_mem>>
    %267 = tpu.memref_squeeze %266 : memref<1x!tpu.dma_semaphore, #tpu.memory_space<semaphore_mem>> -> memref<!tpu.dma_semaphore, #tpu.memory_space<semaphore_mem>>
    tpu.wait_dma2 semaphore(%267 : memref<!tpu.dma_semaphore, #tpu.memory_space<semaphore_mem>>) src(%264 : memref<1x32xf32, #tpu.memory_space<vmem>>) dst(%265 : memref<1x32xf32, #tpu.memory_space<any>>)
    %c0_i32_241 = arith.constant 0 : i32
    %c4_i32_242 = arith.constant 4 : i32
    %c0_i32_243 = arith.constant 0 : i32
    %268 = tpu.memref_slice %arg7[%c4_i32_242, %c0_i32_243] : memref<8x32xf32, #tpu.memory_space<vmem>> -> memref<1x32xf32, #tpu.memory_space<vmem>>
    %c0_i32_244 = arith.constant 0 : i32
    %269 = tpu.memref_slice %arg5[%200, %c0_i32_244] : memref<1024x32xf32, #tpu.memory_space<any>> -> memref<1x32xf32, #tpu.memory_space<any>>
    %270 = tpu.memref_slice %arg9[%c0_i32_241] : memref<2x!tpu.dma_semaphore, #tpu.memory_space<semaphore_mem>> -> memref<1x!tpu.dma_semaphore, #tpu.memory_space<semaphore_mem>>
    %271 = tpu.memref_squeeze %270 : memref<1x!tpu.dma_semaphore, #tpu.memory_space<semaphore_mem>> -> memref<!tpu.dma_semaphore, #tpu.memory_space<semaphore_mem>>
    tpu.wait_dma2 semaphore(%271 : memref<!tpu.dma_semaphore, #tpu.memory_space<semaphore_mem>>) src(%268 : memref<1x32xf32, #tpu.memory_space<vmem>>) dst(%269 : memref<1x32xf32, #tpu.memory_space<any>>)
    %c1_i32_245 = arith.constant 1 : i32
    %c4_i32_246 = arith.constant 4 : i32
    %c0_i32_247 = arith.constant 0 : i32
    %272 = tpu.memref_slice %arg8[%c4_i32_246, %c0_i32_247] : memref<8x32xf32, #tpu.memory_space<vmem>> -> memref<1x32xf32, #tpu.memory_space<vmem>>
    %c0_i32_248 = arith.constant 0 : i32
    %273 = tpu.memref_slice %arg6[%200, %c0_i32_248] : memref<1024x32xf32, #tpu.memory_space<any>> -> memref<1x32xf32, #tpu.memory_space<any>>
    %274 = tpu.memref_slice %arg9[%c1_i32_245] : memref<2x!tpu.dma_semaphore, #tpu.memory_space<semaphore_mem>> -> memref<1x!tpu.dma_semaphore, #tpu.memory_space<semaphore_mem>>
    %275 = tpu.memref_squeeze %274 : memref<1x!tpu.dma_semaphore, #tpu.memory_space<semaphore_mem>> -> memref<!tpu.dma_semaphore, #tpu.memory_space<semaphore_mem>>
    tpu.wait_dma2 semaphore(%275 : memref<!tpu.dma_semaphore, #tpu.memory_space<semaphore_mem>>) src(%272 : memref<1x32xf32, #tpu.memory_space<vmem>>) dst(%273 : memref<1x32xf32, #tpu.memory_space<any>>)
    %c0_i32_249 = arith.constant 0 : i32
    %c5_i32_250 = arith.constant 5 : i32
    %c0_i32_251 = arith.constant 0 : i32
    %276 = tpu.memref_slice %arg7[%c5_i32_250, %c0_i32_251] : memref<8x32xf32, #tpu.memory_space<vmem>> -> memref<1x32xf32, #tpu.memory_space<vmem>>
    %c0_i32_252 = arith.constant 0 : i32
    %277 = tpu.memref_slice %arg5[%209, %c0_i32_252] : memref<1024x32xf32, #tpu.memory_space<any>> -> memref<1x32xf32, #tpu.memory_space<any>>
    %278 = tpu.memref_slice %arg9[%c0_i32_249] : memref<2x!tpu.dma_semaphore, #tpu.memory_space<semaphore_mem>> -> memref<1x!tpu.dma_semaphore, #tpu.memory_space<semaphore_mem>>
    %279 = tpu.memref_squeeze %278 : memref<1x!tpu.dma_semaphore, #tpu.memory_space<semaphore_mem>> -> memref<!tpu.dma_semaphore, #tpu.memory_space<semaphore_mem>>
    tpu.wait_dma2 semaphore(%279 : memref<!tpu.dma_semaphore, #tpu.memory_space<semaphore_mem>>) src(%276 : memref<1x32xf32, #tpu.memory_space<vmem>>) dst(%277 : memref<1x32xf32, #tpu.memory_space<any>>)
    %c1_i32_253 = arith.constant 1 : i32
    %c5_i32_254 = arith.constant 5 : i32
    %c0_i32_255 = arith.constant 0 : i32
    %280 = tpu.memref_slice %arg8[%c5_i32_254, %c0_i32_255] : memref<8x32xf32, #tpu.memory_space<vmem>> -> memref<1x32xf32, #tpu.memory_space<vmem>>
    %c0_i32_256 = arith.constant 0 : i32
    %281 = tpu.memref_slice %arg6[%209, %c0_i32_256] : memref<1024x32xf32, #tpu.memory_space<any>> -> memref<1x32xf32, #tpu.memory_space<any>>
    %282 = tpu.memref_slice %arg9[%c1_i32_253] : memref<2x!tpu.dma_semaphore, #tpu.memory_space<semaphore_mem>> -> memref<1x!tpu.dma_semaphore, #tpu.memory_space<semaphore_mem>>
    %283 = tpu.memref_squeeze %282 : memref<1x!tpu.dma_semaphore, #tpu.memory_space<semaphore_mem>> -> memref<!tpu.dma_semaphore, #tpu.memory_space<semaphore_mem>>
    tpu.wait_dma2 semaphore(%283 : memref<!tpu.dma_semaphore, #tpu.memory_space<semaphore_mem>>) src(%280 : memref<1x32xf32, #tpu.memory_space<vmem>>) dst(%281 : memref<1x32xf32, #tpu.memory_space<any>>)
    %c0_i32_257 = arith.constant 0 : i32
    %c6_i32_258 = arith.constant 6 : i32
    %c0_i32_259 = arith.constant 0 : i32
    %284 = tpu.memref_slice %arg7[%c6_i32_258, %c0_i32_259] : memref<8x32xf32, #tpu.memory_space<vmem>> -> memref<1x32xf32, #tpu.memory_space<vmem>>
    %c0_i32_260 = arith.constant 0 : i32
    %285 = tpu.memref_slice %arg5[%218, %c0_i32_260] : memref<1024x32xf32, #tpu.memory_space<any>> -> memref<1x32xf32, #tpu.memory_space<any>>
    %286 = tpu.memref_slice %arg9[%c0_i32_257] : memref<2x!tpu.dma_semaphore, #tpu.memory_space<semaphore_mem>> -> memref<1x!tpu.dma_semaphore, #tpu.memory_space<semaphore_mem>>
    %287 = tpu.memref_squeeze %286 : memref<1x!tpu.dma_semaphore, #tpu.memory_space<semaphore_mem>> -> memref<!tpu.dma_semaphore, #tpu.memory_space<semaphore_mem>>
    tpu.wait_dma2 semaphore(%287 : memref<!tpu.dma_semaphore, #tpu.memory_space<semaphore_mem>>) src(%284 : memref<1x32xf32, #tpu.memory_space<vmem>>) dst(%285 : memref<1x32xf32, #tpu.memory_space<any>>)
    %c1_i32_261 = arith.constant 1 : i32
    %c6_i32_262 = arith.constant 6 : i32
    %c0_i32_263 = arith.constant 0 : i32
    %288 = tpu.memref_slice %arg8[%c6_i32_262, %c0_i32_263] : memref<8x32xf32, #tpu.memory_space<vmem>> -> memref<1x32xf32, #tpu.memory_space<vmem>>
    %c0_i32_264 = arith.constant 0 : i32
    %289 = tpu.memref_slice %arg6[%218, %c0_i32_264] : memref<1024x32xf32, #tpu.memory_space<any>> -> memref<1x32xf32, #tpu.memory_space<any>>
    %290 = tpu.memref_slice %arg9[%c1_i32_261] : memref<2x!tpu.dma_semaphore, #tpu.memory_space<semaphore_mem>> -> memref<1x!tpu.dma_semaphore, #tpu.memory_space<semaphore_mem>>
    %291 = tpu.memref_squeeze %290 : memref<1x!tpu.dma_semaphore, #tpu.memory_space<semaphore_mem>> -> memref<!tpu.dma_semaphore, #tpu.memory_space<semaphore_mem>>
    tpu.wait_dma2 semaphore(%291 : memref<!tpu.dma_semaphore, #tpu.memory_space<semaphore_mem>>) src(%288 : memref<1x32xf32, #tpu.memory_space<vmem>>) dst(%289 : memref<1x32xf32, #tpu.memory_space<any>>)
    %c0_i32_265 = arith.constant 0 : i32
    %c7_i32_266 = arith.constant 7 : i32
    %c0_i32_267 = arith.constant 0 : i32
    %292 = tpu.memref_slice %arg7[%c7_i32_266, %c0_i32_267] : memref<8x32xf32, #tpu.memory_space<vmem>> -> memref<1x32xf32, #tpu.memory_space<vmem>>
    %c0_i32_268 = arith.constant 0 : i32
    %293 = tpu.memref_slice %arg5[%227, %c0_i32_268] : memref<1024x32xf32, #tpu.memory_space<any>> -> memref<1x32xf32, #tpu.memory_space<any>>
    %294 = tpu.memref_slice %arg9[%c0_i32_265] : memref<2x!tpu.dma_semaphore, #tpu.memory_space<semaphore_mem>> -> memref<1x!tpu.dma_semaphore, #tpu.memory_space<semaphore_mem>>
    %295 = tpu.memref_squeeze %294 : memref<1x!tpu.dma_semaphore, #tpu.memory_space<semaphore_mem>> -> memref<!tpu.dma_semaphore, #tpu.memory_space<semaphore_mem>>
    tpu.wait_dma2 semaphore(%295 : memref<!tpu.dma_semaphore, #tpu.memory_space<semaphore_mem>>) src(%292 : memref<1x32xf32, #tpu.memory_space<vmem>>) dst(%293 : memref<1x32xf32, #tpu.memory_space<any>>)
    %c1_i32_269 = arith.constant 1 : i32
    %c7_i32_270 = arith.constant 7 : i32
    %c0_i32_271 = arith.constant 0 : i32
    %296 = tpu.memref_slice %arg8[%c7_i32_270, %c0_i32_271] : memref<8x32xf32, #tpu.memory_space<vmem>> -> memref<1x32xf32, #tpu.memory_space<vmem>>
    %c0_i32_272 = arith.constant 0 : i32
    %297 = tpu.memref_slice %arg6[%227, %c0_i32_272] : memref<1024x32xf32, #tpu.memory_space<any>> -> memref<1x32xf32, #tpu.memory_space<any>>
    %298 = tpu.memref_slice %arg9[%c1_i32_269] : memref<2x!tpu.dma_semaphore, #tpu.memory_space<semaphore_mem>> -> memref<1x!tpu.dma_semaphore, #tpu.memory_space<semaphore_mem>>
    %299 = tpu.memref_squeeze %298 : memref<1x!tpu.dma_semaphore, #tpu.memory_space<semaphore_mem>> -> memref<!tpu.dma_semaphore, #tpu.memory_space<semaphore_mem>>
    tpu.wait_dma2 semaphore(%299 : memref<!tpu.dma_semaphore, #tpu.memory_space<semaphore_mem>>) src(%296 : memref<1x32xf32, #tpu.memory_space<vmem>>) dst(%297 : memref<1x32xf32, #tpu.memory_space<any>>)
    return
  }
}

module attributes {stable_mosaic.version = 11 : i64} {
  func.func @_similarity_kernel(%arg0: i32, %arg1: memref<8x32xf32, #tpu.memory_space<vmem>>, %arg2: memref<8x32xf32, #tpu.memory_space<vmem>>, %arg3: memref<256x32xf32, #tpu.memory_space<vmem>>, %arg4: memref<256x32xf32, #tpu.memory_space<vmem>>, %arg5: memref<8x256xf32, #tpu.memory_space<vmem>>, %arg6: memref<8x256xf32, #tpu.memory_space<vmem>>) attributes {dimension_semantics = [#tpu.dimension_semantics<parallel>], iteration_bounds = array<i64: 4>, scalar_prefetch = 0 : i64, scratch_operands = 0 : i64, tpu.core_type = #tpu.core_type<tc>, window_params = [{pipeline_mode = #tpu.pipeline_mode<synchronous>, transform_indices = @transform_0, window_bounds = array<i64: 8, 32>}, {pipeline_mode = #tpu.pipeline_mode<synchronous>, transform_indices = @transform_1, window_bounds = array<i64: 8, 32>}, {transform_indices = @transform_2, window_bounds = array<i64: 256, 32>}, {transform_indices = @transform_3, window_bounds = array<i64: 256, 32>}, {transform_indices = @transform_4, window_bounds = array<i64: 8, 256>}, {transform_indices = @transform_5, window_bounds = array<i64: 8, 256>}]} {
    %c0 = arith.constant 0 : index
    %c0_0 = arith.constant 0 : index
    %0 = vector.load %arg2[%c0, %c0_0] : memref<8x32xf32, #tpu.memory_space<vmem>>, vector<8x32xf32>
    %c0_1 = arith.constant 0 : index
    %c0_2 = arith.constant 0 : index
    %1 = vector.load %arg3[%c0_1, %c0_2] : memref<256x32xf32, #tpu.memory_space<vmem>>, vector<256x32xf32>
    %cst = arith.constant dense<0.000000e+00> : vector<8x256xf32>
    %2 = tpu.matmul %0, %1, %cst {dimension_numbers = #tpu.dot_dimension_numbers<[1], [1], [0], [0], [0, 0, 1, 0], [], []>} : vector<8x32xf32>, vector<256x32xf32>, vector<8x256xf32> -> vector<8x256xf32>
    %cst_3 = arith.constant 14.2857141 : f32
    %3 = vector.broadcast %cst_3 : f32 to vector<8x256xf32>
    %4 = arith.mulf %2, %3 : vector<8x256xf32>
    %5 = math.exp %4 : vector<8x256xf32>
    %c0_4 = arith.constant 0 : index
    %c0_5 = arith.constant 0 : index
    %6 = vector.load %arg6[%c0_4, %c0_5] : memref<8x256xf32, #tpu.memory_space<vmem>>, vector<8x256xf32>
    tpu.vector_store %arg6[%c0_4, %c0_5], %5 {strides = array<i32>} : memref<8x256xf32, #tpu.memory_space<vmem>>, vector<8x256xf32>,
    %c0_6 = arith.constant 0 : index
    %c0_7 = arith.constant 0 : index
    %7 = vector.load %arg1[%c0_6, %c0_7] : memref<8x32xf32, #tpu.memory_space<vmem>>, vector<8x32xf32>
    %c0_8 = arith.constant 0 : index
    %c0_9 = arith.constant 0 : index
    %8 = vector.load %arg4[%c0_8, %c0_9] : memref<256x32xf32, #tpu.memory_space<vmem>>, vector<256x32xf32>
    %cst_10 = arith.constant dense<0.000000e+00> : vector<8x256xf32>
    %9 = tpu.matmul %7, %8, %cst_10 {dimension_numbers = #tpu.dot_dimension_numbers<[1], [1], [0], [0], [0, 0, 1, 0], [], []>} : vector<8x32xf32>, vector<256x32xf32>, vector<8x256xf32> -> vector<8x256xf32>
    %cst_11 = arith.constant 14.2857141 : f32
    %10 = vector.broadcast %cst_11 : f32 to vector<8x256xf32>
    %11 = arith.mulf %9, %10 : vector<8x256xf32>
    %12 = math.exp %11 : vector<8x256xf32>
    %c0_12 = arith.constant 0 : index
    %c0_13 = arith.constant 0 : index
    %13 = vector.load %arg5[%c0_12, %c0_13] : memref<8x256xf32, #tpu.memory_space<vmem>>, vector<8x256xf32>
    tpu.vector_store %arg5[%c0_12, %c0_13], %12 {strides = array<i32>} : memref<8x256xf32, #tpu.memory_space<vmem>>, vector<8x256xf32>,
    return
  }
  func.func @transform_0(%arg0: i32) -> (i32, i32) {
    %c0_i32 = arith.constant 0 : i32
    %c0_i32_0 = arith.constant 0 : i32
    %c0_i32_1 = arith.constant 0 : i32
    return %c0_i32, %c0_i32_0 : i32, i32
  }
  func.func @transform_1(%arg0: i32) -> (i32, i32) {
    %c0_i32 = arith.constant 0 : i32
    %c0_i32_0 = arith.constant 0 : i32
    %c0_i32_1 = arith.constant 0 : i32
    return %c0_i32, %c0_i32_0 : i32, i32
  }
  func.func @transform_2(%arg0: i32) -> (i32, i32) {
    %c0_i32 = arith.constant 0 : i32
    %c0_i32_0 = arith.constant 0 : i32
    return %arg0, %c0_i32 : i32, i32
  }
  func.func @transform_3(%arg0: i32) -> (i32, i32) {
    %c0_i32 = arith.constant 0 : i32
    %c0_i32_0 = arith.constant 0 : i32
    return %arg0, %c0_i32 : i32, i32
  }
  func.func @transform_4(%arg0: i32) -> (i32, i32) {
    %c0_i32 = arith.constant 0 : i32
    %c0_i32_0 = arith.constant 0 : i32
    return %c0_i32, %arg0 : i32, i32
  }
  func.func @transform_5(%arg0: i32) -> (i32, i32) {
    %c0_i32 = arith.constant 0 : i32
    %c0_i32_0 = arith.constant 0 : i32
    return %c0_i32, %arg0 : i32, i32
  }
}

</mosaic_0001>

<llo_original>
// kernel: contrast_memory_queue_forward.2
$region0: #{contrast_memory_queue_forward.2}
  #allocation0 [shape = 'u32[]', space=smem, size = 0x4, offset = 0x4, fixed_abs, tag = 'smem constant byte address 0x4 - core index']
  #allocation1 [shape = 'u32[144,128]{1,0:T(1,128)}', space=vmem, size = 0x12000, scoped, tag = 'internal scratch']
  #allocation2 [shape = 'f32[8,32]{1,0:T(8,128)}', space=vmem, size = 0x1000, scoped, tag = 'scratch operand']
  #allocation3 [shape = 'f32[8,32]{1,0:T(8,128)}', space=vmem, size = 0x1000, scoped, tag = 'scratch operand']
  #allocation4 [shape = 's32[2]{0}', space=sflag, size = 0x8, scoped, tag = 'scratch operand']
  #allocation7 [shape = 's32[]', space=sflag, size = 0x4, offset = 0, fixed_abs, tag = 'sflag constant byte address 0x0 - dummy sync flag']
  #allocation8 [shape = 's32[]', space=sflag, size = 0x4, offset = 0, fixed_abs, tag = 'sflag constant byte address 0x0 - dummy sync flag']
  #allocation9 [shape = 's32[]', space=sflag, size = 0x4, offset = 0, fixed_abs, tag = 'sflag constant byte address 0x0 - dummy sync flag']
  #allocation10 [shape = 's32[]', space=sflag, size = 0x4, offset = 0, fixed_abs, tag = 'sflag constant byte address 0x0 - dummy sync flag']
  #allocation11 [shape = 's32[]', space=sflag, size = 0x4, offset = 0, fixed_abs, tag = 'sflag constant byte address 0x0 - dummy sync flag']
  #allocation12 [shape = 's32[]', space=sflag, size = 0x4, offset = 0, fixed_abs, tag = 'sflag constant byte address 0x0 - dummy sync flag']
  #allocation13 [shape = 's32[]', space=sflag, size = 0x4, offset = 0, fixed_abs, tag = 'sflag constant byte address 0x0 - dummy sync flag']
  #allocation14 [shape = 's32[]', space=sflag, size = 0x4, offset = 0, fixed_abs, tag = 'sflag constant byte address 0x0 - dummy sync flag']
  #allocation15 [shape = 's32[]', space=sflag, size = 0x4, offset = 0, fixed_abs, tag = 'sflag constant byte address 0x0 - dummy sync flag']
  #allocation16 [shape = 's32[]', space=sflag, size = 0x4, offset = 0, fixed_abs, tag = 'sflag constant byte address 0x0 - dummy sync flag']
  #allocation17 [shape = 's32[]', space=sflag, size = 0x4, offset = 0, fixed_abs, tag = 'sflag constant byte address 0x0 - dummy sync flag']
  #allocation18 [shape = 's32[]', space=sflag, size = 0x4, offset = 0, fixed_abs, tag = 'sflag constant byte address 0x0 - dummy sync flag']
  #allocation19 [shape = 's32[]', space=sflag, size = 0x4, offset = 0, fixed_abs, tag = 'sflag constant byte address 0x0 - dummy sync flag']
  #allocation20 [shape = 's32[]', space=sflag, size = 0x4, offset = 0, fixed_abs, tag = 'sflag constant byte address 0x0 - dummy sync flag']
  #allocation21 [shape = 's32[]', space=sflag, size = 0x4, offset = 0, fixed_abs, tag = 'sflag constant byte address 0x0 - dummy sync flag']
  #allocation22 [shape = 's32[]', space=sflag, size = 0x4, offset = 0, fixed_abs, tag = 'sflag constant byte address 0x0 - dummy sync flag']
  #allocation23 [shape = 's32[]', space=sflag, size = 0x4, offset = 0, fixed_abs, tag = 'sflag constant byte address 0x0 - dummy sync flag']
  #allocation24 [shape = 's32[]', space=sflag, size = 0x4, offset = 0, fixed_abs, tag = 'sflag constant byte address 0x0 - dummy sync flag']
  #allocation25 [shape = 's32[]', space=sflag, size = 0x4, offset = 0, fixed_abs, tag = 'sflag constant byte address 0x0 - dummy sync flag']
  #allocation26 [shape = 's32[]', space=sflag, size = 0x4, offset = 0, fixed_abs, tag = 'sflag constant byte address 0x0 - dummy sync flag']
  #allocation27 [shape = 's32[]', space=sflag, size = 0x4, offset = 0, fixed_abs, tag = 'sflag constant byte address 0x0 - dummy sync flag']
  #allocation28 [shape = 's32[]', space=sflag, size = 0x4, offset = 0, fixed_abs, tag = 'sflag constant byte address 0x0 - dummy sync flag']
  #allocation29 [shape = 's32[]', space=sflag, size = 0x4, offset = 0, fixed_abs, tag = 'sflag constant byte address 0x0 - dummy sync flag']
  #allocation30 [shape = 's32[]', space=sflag, size = 0x4, offset = 0, fixed_abs, tag = 'sflag constant byte address 0x0 - dummy sync flag']
  #allocation31 [shape = 's32[]', space=sflag, size = 0x4, offset = 0, fixed_abs, tag = 'sflag constant byte address 0x0 - dummy sync flag']
  #allocation32 [shape = 's32[]', space=sflag, size = 0x4, offset = 0, fixed_abs, tag = 'sflag constant byte address 0x0 - dummy sync flag']
  #allocation33 [shape = 's32[]', space=sflag, size = 0x4, offset = 0, fixed_abs, tag = 'sflag constant byte address 0x0 - dummy sync flag']
  #allocation34 [shape = 's32[]', space=sflag, size = 0x4, offset = 0, fixed_abs, tag = 'sflag constant byte address 0x0 - dummy sync flag']
  #allocation35 [shape = 's32[]', space=sflag, size = 0x4, offset = 0, fixed_abs, tag = 'sflag constant byte address 0x0 - dummy sync flag']
  #allocation36 [shape = 's32[]', space=sflag, size = 0x4, offset = 0, fixed_abs, tag = 'sflag constant byte address 0x0 - dummy sync flag']
  #allocation37 [shape = 's32[]', space=sflag, size = 0x4, offset = 0, fixed_abs, tag = 'sflag constant byte address 0x0 - dummy sync flag']
  #allocation38 [shape = 's32[]', space=sflag, size = 0x4, offset = 0, fixed_abs, tag = 'sflag constant byte address 0x0 - dummy sync flag']
  %s0 = inlined_call_operand.vmem [shape: s32[8], index: 0, kind: input, shape index: {}]
  %s1 = inlined_call_operand.vmem [shape: f32[8,32], index: 1, kind: input, shape index: {}]
  %s2 = inlined_call_operand.vmem [shape: f32[8,32], index: 2, kind: input, shape index: {}]
  %s3 = inlined_call_operand.vmem [shape: f32[1024,32], index: 3, kind: input, shape index: {}, may-alias: {3,5}]
  %s4 = inlined_call_operand.vmem [shape: f32[1024,32], index: 4, kind: input, shape index: {}, may-alias: {4,6}]
  %s5 = inlined_call_operand.vmem [shape: f32[1024,32], index: 5, kind: output, shape index: {0}, may-alias: {3,5}]
  %s6 = inlined_call_operand.vmem [shape: f32[1024,32], index: 6, kind: output, shape index: {1}, may-alias: {4,6}]
  %7 = xla_tuple %s5, %s6
  %s8 = sld [smem:[#allocation0]]
  $region978: #{contrast_memory_queue_forward.2} parent=0
    _
  %s10 = ssub.s32 1, %s8
  %s11 = scalar_select 0, %s10, %s8
  $region1: #{contrast_memory_queue_forward.2} parent=0
    #allocation5 [shape = 'u8[512]{0}', space=smem, size = 0x200, scoped, tag = 'input window, operand 0, single buffered']
    #allocation6 [shape = 's32[1]{0}', space=sflag, size = 0x4, scoped, tag = 'scoped memory for contrast_memory_queue_forward.2']
    %12 = vsyncpa [#allocation6], 0
    // Predicated region
    $region2: #{contrast_memory_queue_forward.2} parent=1 // pred_check
      _
    $region3: #{contrast_memory_queue_forward.2} parent=1 // pred_check_branch
      %14 = sbr.rel (0) target = $region5
    $region4: #{contrast_memory_queue_forward.2} parent=1 // pred_region
      %s16 = ssub.s32 16, 16
      %17 = vsyncadd [#allocation6], %s16
      %s19 = sshll.u32 %s0, 4
      %s20 = int_to_ptr.vmem [resolvable:$true] %s19
      %22 = dma.vmem_to_smem %s20, 16, [#allocation5], [#allocation6]
    $region5: #{contrast_memory_queue_forward.2} parent=1 // pred_fallthru
      _
    // Predicated region
    $region6: #{contrast_memory_queue_forward.2} parent=1 // pred_check
      _
    $region7: #{contrast_memory_queue_forward.2} parent=1 // pred_check_branch
      %24 = sbr.rel (0) target = $region9
    $region8: #{contrast_memory_queue_forward.2} parent=1 // pred_region
      _
    $region9: #{contrast_memory_queue_forward.2} parent=1 // pred_fallthru
      _
    // Predicated region
    $region10: #{contrast_memory_queue_forward.2} parent=1 // pred_check
      _
    $region11: #{contrast_memory_queue_forward.2} parent=1 // pred_check_branch
      %26 = sbr.rel (0) target = $region13
    $region12: #{contrast_memory_queue_forward.2} parent=1 // pred_region
      _
    $region13: #{contrast_memory_queue_forward.2} parent=1 // pred_fallthru
      _
    // Predicated region
    $region14: #{contrast_memory_queue_forward.2} parent=1 // pred_check
      _
    $region15: #{contrast_memory_queue_forward.2} parent=1 // pred_check_branch
      %28 = sbr.rel (0) target = $region17
    $region16: #{contrast_memory_queue_forward.2} parent=1 // pred_region
      %29 = dma.done [#allocation6], 16
    $region17: #{contrast_memory_queue_forward.2} parent=1 // pred_fallthru
      _
    %30 = sfence
    %s31 = sld [smem:[#allocation5]]
    %s32 = scalar_lea.vmem %s3, %s31
    %p34 = scmp.lt.u32.totalorder 1, 8
    %p35 = pneg %p34
    // Predicated region
    $region18: #{contrast_memory_queue_forward.2} parent=1 // pred_check
      _
    $region19: #{contrast_memory_queue_forward.2} parent=1 // pred_check_branch
      %37 = sbr.rel (%p34) target = $region21
    $region20: #{contrast_memory_queue_forward.2} parent=1 // pred_region
      %s52 = sand.u32 1, 7
      %p53 = scmp.eq.s32.totalorder %s52, 0
      %p54 = pneg %p53
      // Predicated region
      $region33: #{contrast_memory_queue_forward.2} parent=20 // pred_check
        _
      $region34: #{contrast_memory_queue_forward.2} parent=20 // pred_check_branch
        %56 = sbr.rel (%p53) target = $region36
      $region35: #{contrast_memory_queue_forward.2} parent=20 // pred_region
        %s57 = sand.u32 1, 7
        %s58 = ssub.s32 1, %s57
        %s59 = scalar_lea.vmem %s32, %s58
        %s60 = ssub.s32 1, %s57
        %s61 = scalar_lea.vmem [#allocation2], %s60
        %s62 = sshllo.u32 0, %s57
        loop: start=0, step=1, limit=1
        $region37: #{contrast_memory_queue_forward.2} parent=35 // loop_pre_header
          _
        $region38: #{contrast_memory_queue_forward.2} parent=35 // loop_header
          %s64 = sphi 0, %s68
          %p65 = scmp.ge.s32.totalorder %s64, 1
          %s69 = sphi %s59, %s59
          %s70 = sphi %s61, %s61
        $region39: #{contrast_memory_queue_forward.2} parent=35 // loop_header_branch
          %67 = sbr.rel (%p65) target = $region43
        $region40: #{contrast_memory_queue_forward.2} parent=35 // loop_body
          %v71 = vld [vmem:[%s69] sm:%s62]
          %72 = vst [vmem:[%s70] sm:%s62] %v71
        $region41: #{contrast_memory_queue_forward.2} parent=35 // loop_footer
          %s68 = sadd.s32 1, %s64
        $region42: #{contrast_memory_queue_forward.2} parent=35 // loop_footer_branch
          %63 = sbr.rel target = $region38
        $region43: #{contrast_memory_queue_forward.2} parent=35 // loop_exit
          _
      $region36: #{contrast_memory_queue_forward.2} parent=20 // pred_fallthru
        _
    $region21: #{contrast_memory_queue_forward.2} parent=1 // pred_fallthru
      _
    // Predicated region
    $region22: #{contrast_memory_queue_forward.2} parent=1 // pred_check
      %p38 = pneg %p34
    $region23: #{contrast_memory_queue_forward.2} parent=1 // pred_check_branch
      %40 = sbr.rel (%p38) target = $region25
    $region24: #{contrast_memory_queue_forward.2} parent=1 // pred_region
      %s41 = sshllo.u32 0, 1
      loop: start=0, step=1, limit=1
      $region26: #{contrast_memory_queue_forward.2} parent=24 // loop_pre_header
        _
      $region27: #{contrast_memory_queue_forward.2} parent=24 // loop_header
        %s43 = sphi 0, %s47
        %p44 = scmp.ge.s32.totalorder %s43, 1
        %s48 = sphi %s32, %s32
        %s49 = sphi [#allocation2], [#allocation2]
      $region28: #{contrast_memory_queue_forward.2} parent=24 // loop_header_branch
        %46 = sbr.rel (%p44) target = $region32
      $region29: #{contrast_memory_queue_forward.2} parent=24 // loop_body
        %v50 = vld [vmem:[%s48] sm:%s41]
        %51 = vst [vmem:[%s49] sm:%s41] %v50
      $region30: #{contrast_memory_queue_forward.2} parent=24 // loop_footer
        %s47 = sadd.s32 1, %s43
      $region31: #{contrast_memory_queue_forward.2} parent=24 // loop_footer_branch
        %42 = sbr.rel target = $region27
      $region32: #{contrast_memory_queue_forward.2} parent=24 // loop_exit
        _
    $region25: #{contrast_memory_queue_forward.2} parent=1 // pred_fallthru
      _
    // Predicated region
    $region44: #{contrast_memory_queue_forward.2} parent=1 // pred_check
      _
    $region45: #{contrast_memory_queue_forward.2} parent=1 // pred_check_branch
      %75 = sbr.rel (0) target = $region47
    $region46: #{contrast_memory_queue_forward.2} parent=1 // pred_region
      %76 = vsyncadd [#allocation4], 16
    $region47: #{contrast_memory_queue_forward.2} parent=1 // pred_fallthru
      _
    %s77 = scalar_lea.vmem %s4, %s31
    %s78 = scalar_lea.sflag [#allocation4], 1
    %p80 = scmp.lt.u32.totalorder 1, 8
    %p81 = pneg %p80
    // Predicated region
    $region48: #{contrast_memory_queue_forward.2} parent=1 // pred_check
      _
    $region49: #{contrast_memory_queue_forward.2} parent=1 // pred_check_branch
      %83 = sbr.rel (%p80) target = $region51
    $region50: #{contrast_memory_queue_forward.2} parent=1 // pred_region
      %s98 = sand.u32 1, 7
      %p99 = scmp.eq.s32.totalorder %s98, 0
      %p100 = pneg %p99
      // Predicated region
      $region63: #{contrast_memory_queue_forward.2} parent=50 // pred_check
        _
      $region64: #{contrast_memory_queue_forward.2} parent=50 // pred_check_branch
        %102 = sbr.rel (%p99) target = $region66
      $region65: #{contrast_memory_queue_forward.2} parent=50 // pred_region
        %s103 = sand.u32 1, 7
        %s104 = ssub.s32 1, %s103
        %s105 = scalar_lea.vmem %s77, %s104
        %s106 = ssub.s32 1, %s103
        %s107 = scalar_lea.vmem [#allocation3], %s106
        %s108 = sshllo.u32 0, %s103
        loop: start=0, step=1, limit=1
        $region67: #{contrast_memory_queue_forward.2} parent=65 // loop_pre_header
          _
        $region68: #{contrast_memory_queue_forward.2} parent=65 // loop_header
          %s110 = sphi 0, %s114
          %p111 = scmp.ge.s32.totalorder %s110, 1
          %s115 = sphi %s105, %s105
          %s116 = sphi %s107, %s107
        $region69: #{contrast_memory_queue_forward.2} parent=65 // loop_header_branch
          %113 = sbr.rel (%p111) target = $region73
        $region70: #{contrast_memory_queue_forward.2} parent=65 // loop_body
          %v117 = vld [vmem:[%s115] sm:%s108]
          %118 = vst [vmem:[%s116] sm:%s108] %v117
        $region71: #{contrast_memory_queue_forward.2} parent=65 // loop_footer
          %s114 = sadd.s32 1, %s110
        $region72: #{contrast_memory_queue_forward.2} parent=65 // loop_footer_branch
          %109 = sbr.rel target = $region68
        $region73: #{contrast_memory_queue_forward.2} parent=65 // loop_exit
          _
      $region66: #{contrast_memory_queue_forward.2} parent=50 // pred_fallthru
        _
    $region51: #{contrast_memory_queue_forward.2} parent=1 // pred_fallthru
      _
    // Predicated region
    $region52: #{contrast_memory_queue_forward.2} parent=1 // pred_check
      %p84 = pneg %p80
    $region53: #{contrast_memory_queue_forward.2} parent=1 // pred_check_branch
      %86 = sbr.rel (%p84) target = $region55
    $region54: #{contrast_memory_queue_forward.2} parent=1 // pred_region
      %s87 = sshllo.u32 0, 1
      loop: start=0, step=1, limit=1
      $region56: #{contrast_memory_queue_forward.2} parent=54 // loop_pre_header
        _
      $region57: #{contrast_memory_queue_forward.2} parent=54 // loop_header
        %s89 = sphi 0, %s93
        %p90 = scmp.ge.s32.totalorder %s89, 1
        %s94 = sphi %s77, %s77
        %s95 = sphi [#allocation3], [#allocation3]
      $region58: #{contrast_memory_queue_forward.2} parent=54 // loop_header_branch
        %92 = sbr.rel (%p90) target = $region62
      $region59: #{contrast_memory_queue_forward.2} parent=54 // loop_body
        %v96 = vld [vmem:[%s94] sm:%s87]
        %97 = vst [vmem:[%s95] sm:%s87] %v96
      $region60: #{contrast_memory_queue_forward.2} parent=54 // loop_footer
        %s93 = sadd.s32 1, %s89
      $region61: #{contrast_memory_queue_forward.2} parent=54 // loop_footer_branch
        %88 = sbr.rel target = $region57
      $region62: #{contrast_memory_queue_forward.2} parent=54 // loop_exit
        _
    $region55: #{contrast_memory_queue_forward.2} parent=1 // pred_fallthru
      _
    // Predicated region
    $region74: #{contrast_memory_queue_forward.2} parent=1 // pred_check
      _
    $region75: #{contrast_memory_queue_forward.2} parent=1 // pred_check_branch
      %121 = sbr.rel (0) target = $region77
    $region76: #{contrast_memory_queue_forward.2} parent=1 // pred_region
      %122 = vsyncadd %s78, 16
    $region77: #{contrast_memory_queue_forward.2} parent=1 // pred_fallthru
      _
    %s123 = sld [smem:[#allocation5 + $0x1]]
    %s124 = scalar_lea.vmem %s3, %s123
    %s125 = scalar_lea.vmem [#allocation2], 1
    %p127 = scmp.lt.u32.totalorder 1, 8
    %p128 = pneg %p127
    // Predicated region
    $region78: #{contrast_memory_queue_forward.2} parent=1 // pred_check
      _
    $region79: #{contrast_memory_queue_forward.2} parent=1 // pred_check_branch
      %130 = sbr.rel (%p127) target = $region81
    $region80: #{contrast_memory_queue_forward.2} parent=1 // pred_region
      %s145 = sand.u32 1, 7
      %p146 = scmp.eq.s32.totalorder %s145, 0
      %p147 = pneg %p146
      // Predicated region
      $region93: #{contrast_memory_queue_forward.2} parent=80 // pred_check
        _
      $region94: #{contrast_memory_queue_forward.2} parent=80 // pred_check_branch
        %149 = sbr.rel (%p146) target = $region96
      $region95: #{contrast_memory_queue_forward.2} parent=80 // pred_region
        %s150 = sand.u32 1, 7
        %s151 = ssub.s32 1, %s150
        %s152 = scalar_lea.vmem %s124, %s151
        %s153 = ssub.s32 1, %s150
        %s154 = scalar_lea.vmem %s125, %s153 [#allocation2]
        %s155 = sshllo.u32 0, %s150
        loop: start=0, step=1, limit=1
        $region97: #{contrast_memory_queue_forward.2} parent=95 // loop_pre_header
          _
        $region98: #{contrast_memory_queue_forward.2} parent=95 // loop_header
          %s157 = sphi 0, %s161
          %p158 = scmp.ge.s32.totalorder %s157, 1
          %s162 = sphi %s152, %s152
          %s163 = sphi %s154, %s154
        $region99: #{contrast_memory_queue_forward.2} parent=95 // loop_header_branch
          %160 = sbr.rel (%p158) target = $region103
        $region100: #{contrast_memory_queue_forward.2} parent=95 // loop_body
          %v164 = vld [vmem:[%s162] sm:%s155]
          %165 = vst [vmem:[%s163] sm:%s155] %v164
        $region101: #{contrast_memory_queue_forward.2} parent=95 // loop_footer
          %s161 = sadd.s32 1, %s157
        $region102: #{contrast_memory_queue_forward.2} parent=95 // loop_footer_branch
          %156 = sbr.rel target = $region98
        $region103: #{contrast_memory_queue_forward.2} parent=95 // loop_exit
          _
      $region96: #{contrast_memory_queue_forward.2} parent=80 // pred_fallthru
        _
    $region81: #{contrast_memory_queue_forward.2} parent=1 // pred_fallthru
      _
    // Predicated region
    $region82: #{contrast_memory_queue_forward.2} parent=1 // pred_check
      %p131 = pneg %p127
    $region83: #{contrast_memory_queue_forward.2} parent=1 // pred_check_branch
      %133 = sbr.rel (%p131) target = $region85
    $region84: #{contrast_memory_queue_forward.2} parent=1 // pred_region
      %s134 = sshllo.u32 0, 1
      loop: start=0, step=1, limit=1
      $region86: #{contrast_memory_queue_forward.2} parent=84 // loop_pre_header
        _
      $region87: #{contrast_memory_queue_forward.2} parent=84 // loop_header
        %s136 = sphi 0, %s140
        %p137 = scmp.ge.s32.totalorder %s136, 1
        %s141 = sphi %s124, %s124
        %s142 = sphi %s125, %s125
      $region88: #{contrast_memory_queue_forward.2} parent=84 // loop_header_branch
        %139 = sbr.rel (%p137) target = $region92
      $region89: #{contrast_memory_queue_forward.2} parent=84 // loop_body
        %v143 = vld [vmem:[%s141] sm:%s134]
        %144 = vst [vmem:[%s142] sm:%s134] %v143
      $region90: #{contrast_memory_queue_forward.2} parent=84 // loop_footer
        %s140 = sadd.s32 1, %s136
      $region91: #{contrast_memory_queue_forward.2} parent=84 // loop_footer_branch
        %135 = sbr.rel target = $region87
      $region92: #{contrast_memory_queue_forward.2} parent=84 // loop_exit
        _
    $region85: #{contrast_memory_queue_forward.2} parent=1 // pred_fallthru
      _
    // Predicated region
    $region104: #{contrast_memory_queue_forward.2} parent=1 // pred_check
      _
    $region105: #{contrast_memory_queue_forward.2} parent=1 // pred_check_branch
      %168 = sbr.rel (0) target = $region107
    $region106: #{contrast_memory_queue_forward.2} parent=1 // pred_region
      %169 = vsyncadd [#allocation4], 16
    $region107: #{contrast_memory_queue_forward.2} parent=1 // pred_fallthru
      _
    %s170 = scalar_lea.vmem %s4, %s123
    %s171 = scalar_lea.vmem [#allocation3], 1
    %p173 = scmp.lt.u32.totalorder 1, 8
    %p174 = pneg %p173
    // Predicated region
    $region108: #{contrast_memory_queue_forward.2} parent=1 // pred_check
      _
    $region109: #{contrast_memory_queue_forward.2} parent=1 // pred_check_branch
      %176 = sbr.rel (%p173) target = $region111
    $region110: #{contrast_memory_queue_forward.2} parent=1 // pred_region
      %s191 = sand.u32 1, 7
      %p192 = scmp.eq.s32.totalorder %s191, 0
      %p193 = pneg %p192
      // Predicated region
      $region123: #{contrast_memory_queue_forward.2} parent=110 // pred_check
        _
      $region124: #{contrast_memory_queue_forward.2} parent=110 // pred_check_branch
        %195 = sbr.rel (%p192) target = $region126
      $region125: #{contrast_memory_queue_forward.2} parent=110 // pred_region
        %s196 = sand.u32 1, 7
        %s197 = ssub.s32 1, %s196
        %s198 = scalar_lea.vmem %s170, %s197
        %s199 = ssub.s32 1, %s196
        %s200 = scalar_lea.vmem %s171, %s199 [#allocation3]
        %s201 = sshllo.u32 0, %s196
        loop: start=0, step=1, limit=1
        $region127: #{contrast_memory_queue_forward.2} parent=125 // loop_pre_header
          _
        $region128: #{contrast_memory_queue_forward.2} parent=125 // loop_header
          %s203 = sphi 0, %s207
          %p204 = scmp.ge.s32.totalorder %s203, 1
          %s208 = sphi %s198, %s198
          %s209 = sphi %s200, %s200
        $region129: #{contrast_memory_queue_forward.2} parent=125 // loop_header_branch
          %206 = sbr.rel (%p204) target = $region133
        $region130: #{contrast_memory_queue_forward.2} parent=125 // loop_body
          %v210 = vld [vmem:[%s208] sm:%s201]
          %211 = vst [vmem:[%s209] sm:%s201] %v210
        $region131: #{contrast_memory_queue_forward.2} parent=125 // loop_footer
          %s207 = sadd.s32 1, %s203
        $region132: #{contrast_memory_queue_forward.2} parent=125 // loop_footer_branch
          %202 = sbr.rel target = $region128
        $region133: #{contrast_memory_queue_forward.2} parent=125 // loop_exit
          _
      $region126: #{contrast_memory_queue_forward.2} parent=110 // pred_fallthru
        _
    $region111: #{contrast_memory_queue_forward.2} parent=1 // pred_fallthru
      _
    // Predicated region
    $region112: #{contrast_memory_queue_forward.2} parent=1 // pred_check
      %p177 = pneg %p173
    $region113: #{contrast_memory_queue_forward.2} parent=1 // pred_check_branch
      %179 = sbr.rel (%p177) target = $region115
    $region114: #{contrast_memory_queue_forward.2} parent=1 // pred_region
      %s180 = sshllo.u32 0, 1
      loop: start=0, step=1, limit=1
      $region116: #{contrast_memory_queue_forward.2} parent=114 // loop_pre_header
        _
      $region117: #{contrast_memory_queue_forward.2} parent=114 // loop_header
        %s182 = sphi 0, %s186
        %p183 = scmp.ge.s32.totalorder %s182, 1
        %s187 = sphi %s170, %s170
        %s188 = sphi %s171, %s171
      $region118: #{contrast_memory_queue_forward.2} parent=114 // loop_header_branch
        %185 = sbr.rel (%p183) target = $region122
      $region119: #{contrast_memory_queue_forward.2} parent=114 // loop_body
        %v189 = vld [vmem:[%s187] sm:%s180]
        %190 = vst [vmem:[%s188] sm:%s180] %v189
      $region120: #{contrast_memory_queue_forward.2} parent=114 // loop_footer
        %s186 = sadd.s32 1, %s182
      $region121: #{contrast_memory_queue_forward.2} parent=114 // loop_footer_branch
        %181 = sbr.rel target = $region117
      $region122: #{contrast_memory_queue_forward.2} parent=114 // loop_exit
        _
    $region115: #{contrast_memory_queue_forward.2} parent=1 // pred_fallthru
      _
    // Predicated region
    $region134: #{contrast_memory_queue_forward.2} parent=1 // pred_check
      _
    $region135: #{contrast_memory_queue_forward.2} parent=1 // pred_check_branch
      %214 = sbr.rel (0) target = $region137
    $region136: #{contrast_memory_queue_forward.2} parent=1 // pred_region
      %215 = vsyncadd %s78, 16
    $region137: #{contrast_memory_queue_forward.2} parent=1 // pred_fallthru
      _
    %s216 = sld [smem:[#allocation5 + $0x2]]
    %s217 = scalar_lea.vmem %s3, %s216
    %s218 = scalar_lea.vmem [#allocation2], 2
    %p220 = scmp.lt.u32.totalorder 1, 8
    %p221 = pneg %p220
    // Predicated region
    $region138: #{contrast_memory_queue_forward.2} parent=1 // pred_check
      _
    $region139: #{contrast_memory_queue_forward.2} parent=1 // pred_check_branch
      %223 = sbr.rel (%p220) target = $region141
    $region140: #{contrast_memory_queue_forward.2} parent=1 // pred_region
      %s238 = sand.u32 1, 7
      %p239 = scmp.eq.s32.totalorder %s238, 0
      %p240 = pneg %p239
      // Predicated region
      $region153: #{contrast_memory_queue_forward.2} parent=140 // pred_check
        _
      $region154: #{contrast_memory_queue_forward.2} parent=140 // pred_check_branch
        %242 = sbr.rel (%p239) target = $region156
      $region155: #{contrast_memory_queue_forward.2} parent=140 // pred_region
        %s243 = sand.u32 1, 7
        %s244 = ssub.s32 1, %s243
        %s245 = scalar_lea.vmem %s217, %s244
        %s246 = ssub.s32 1, %s243
        %s247 = scalar_lea.vmem %s218, %s246 [#allocation2]
        %s248 = sshllo.u32 0, %s243
        loop: start=0, step=1, limit=1
        $region157: #{contrast_memory_queue_forward.2} parent=155 // loop_pre_header
          _
        $region158: #{contrast_memory_queue_forward.2} parent=155 // loop_header
          %s250 = sphi 0, %s254
          %p251 = scmp.ge.s32.totalorder %s250, 1
          %s255 = sphi %s245, %s245
          %s256 = sphi %s247, %s247
        $region159: #{contrast_memory_queue_forward.2} parent=155 // loop_header_branch
          %253 = sbr.rel (%p251) target = $region163
        $region160: #{contrast_memory_queue_forward.2} parent=155 // loop_body
          %v257 = vld [vmem:[%s255] sm:%s248]
          %258 = vst [vmem:[%s256] sm:%s248] %v257
        $region161: #{contrast_memory_queue_forward.2} parent=155 // loop_footer
          %s254 = sadd.s32 1, %s250
        $region162: #{contrast_memory_queue_forward.2} parent=155 // loop_footer_branch
          %249 = sbr.rel target = $region158
        $region163: #{contrast_memory_queue_forward.2} parent=155 // loop_exit
          _
      $region156: #{contrast_memory_queue_forward.2} parent=140 // pred_fallthru
        _
    $region141: #{contrast_memory_queue_forward.2} parent=1 // pred_fallthru
      _
    // Predicated region
    $region142: #{contrast_memory_queue_forward.2} parent=1 // pred_check
      %p224 = pneg %p220
    $region143: #{contrast_memory_queue_forward.2} parent=1 // pred_check_branch
      %226 = sbr.rel (%p224) target = $region145
    $region144: #{contrast_memory_queue_forward.2} parent=1 // pred_region
      %s227 = sshllo.u32 0, 1
      loop: start=0, step=1, limit=1
      $region146: #{contrast_memory_queue_forward.2} parent=144 // loop_pre_header
        _
      $region147: #{contrast_memory_queue_forward.2} parent=144 // loop_header
        %s229 = sphi 0, %s233
        %p230 = scmp.ge.s32.totalorder %s229, 1
        %s234 = sphi %s217, %s217
        %s235 = sphi %s218, %s218
      $region148: #{contrast_memory_queue_forward.2} parent=144 // loop_header_branch
        %232 = sbr.rel (%p230) target = $region152
      $region149: #{contrast_memory_queue_forward.2} parent=144 // loop_body
        %v236 = vld [vmem:[%s234] sm:%s227]
        %237 = vst [vmem:[%s235] sm:%s227] %v236
      $region150: #{contrast_memory_queue_forward.2} parent=144 // loop_footer
        %s233 = sadd.s32 1, %s229
      $region151: #{contrast_memory_queue_forward.2} parent=144 // loop_footer_branch
        %228 = sbr.rel target = $region147
      $region152: #{contrast_memory_queue_forward.2} parent=144 // loop_exit
        _
    $region145: #{contrast_memory_queue_forward.2} parent=1 // pred_fallthru
      _
    // Predicated region
    $region164: #{contrast_memory_queue_forward.2} parent=1 // pred_check
      _
    $region165: #{contrast_memory_queue_forward.2} parent=1 // pred_check_branch
      %261 = sbr.rel (0) target = $region167
    $region166: #{contrast_memory_queue_forward.2} parent=1 // pred_region
      %262 = vsyncadd [#allocation4], 16
    $region167: #{contrast_memory_queue_forward.2} parent=1 // pred_fallthru
      _
    %s263 = scalar_lea.vmem %s4, %s216
    %s264 = scalar_lea.vmem [#allocation3], 2
    %p266 = scmp.lt.u32.totalorder 1, 8
    %p267 = pneg %p266
    // Predicated region
    $region168: #{contrast_memory_queue_forward.2} parent=1 // pred_check
      _
    $region169: #{contrast_memory_queue_forward.2} parent=1 // pred_check_branch
      %269 = sbr.rel (%p266) target = $region171
    $region170: #{contrast_memory_queue_forward.2} parent=1 // pred_region
      %s284 = sand.u32 1, 7
      %p285 = scmp.eq.s32.totalorder %s284, 0
      %p286 = pneg %p285
      // Predicated region
      $region183: #{contrast_memory_queue_forward.2} parent=170 // pred_check
        _
      $region184: #{contrast_memory_queue_forward.2} parent=170 // pred_check_branch
        %288 = sbr.rel (%p285) target = $region186
      $region185: #{contrast_memory_queue_forward.2} parent=170 // pred_region
        %s289 = sand.u32 1, 7
        %s290 = ssub.s32 1, %s289
        %s291 = scalar_lea.vmem %s263, %s290
        %s292 = ssub.s32 1, %s289
        %s293 = scalar_lea.vmem %s264, %s292 [#allocation3]
        %s294 = sshllo.u32 0, %s289
        loop: start=0, step=1, limit=1
        $region187: #{contrast_memory_queue_forward.2} parent=185 // loop_pre_header
          _
        $region188: #{contrast_memory_queue_forward.2} parent=185 // loop_header
          %s296 = sphi 0, %s300
          %p297 = scmp.ge.s32.totalorder %s296, 1
          %s301 = sphi %s291, %s291
          %s302 = sphi %s293, %s293
        $region189: #{contrast_memory_queue_forward.2} parent=185 // loop_header_branch
          %299 = sbr.rel (%p297) target = $region193
        $region190: #{contrast_memory_queue_forward.2} parent=185 // loop_body
          %v303 = vld [vmem:[%s301] sm:%s294]
          %304 = vst [vmem:[%s302] sm:%s294] %v303
        $region191: #{contrast_memory_queue_forward.2} parent=185 // loop_footer
          %s300 = sadd.s32 1, %s296
        $region192: #{contrast_memory_queue_forward.2} parent=185 // loop_footer_branch
          %295 = sbr.rel target = $region188
        $region193: #{contrast_memory_queue_forward.2} parent=185 // loop_exit
          _
      $region186: #{contrast_memory_queue_forward.2} parent=170 // pred_fallthru
        _
    $region171: #{contrast_memory_queue_forward.2} parent=1 // pred_fallthru
      _
    // Predicated region
    $region172: #{contrast_memory_queue_forward.2} parent=1 // pred_check
      %p270 = pneg %p266
    $region173: #{contrast_memory_queue_forward.2} parent=1 // pred_check_branch
      %272 = sbr.rel (%p270) target = $region175
    $region174: #{contrast_memory_queue_forward.2} parent=1 // pred_region
      %s273 = sshllo.u32 0, 1
      loop: start=0, step=1, limit=1
      $region176: #{contrast_memory_queue_forward.2} parent=174 // loop_pre_header
        _
      $region177: #{contrast_memory_queue_forward.2} parent=174 // loop_header
        %s275 = sphi 0, %s279
        %p276 = scmp.ge.s32.totalorder %s275, 1
        %s280 = sphi %s263, %s263
        %s281 = sphi %s264, %s264
      $region178: #{contrast_memory_queue_forward.2} parent=174 // loop_header_branch
        %278 = sbr.rel (%p276) target = $region182
      $region179: #{contrast_memory_queue_forward.2} parent=174 // loop_body
        %v282 = vld [vmem:[%s280] sm:%s273]
        %283 = vst [vmem:[%s281] sm:%s273] %v282
      $region180: #{contrast_memory_queue_forward.2} parent=174 // loop_footer
        %s279 = sadd.s32 1, %s275
      $region181: #{contrast_memory_queue_forward.2} parent=174 // loop_footer_branch
        %274 = sbr.rel target = $region177
      $region182: #{contrast_memory_queue_forward.2} parent=174 // loop_exit
        _
    $region175: #{contrast_memory_queue_forward.2} parent=1 // pred_fallthru
      _
    // Predicated region
    $region194: #{contrast_memory_queue_forward.2} parent=1 // pred_check
      _
    $region195: #{contrast_memory_queue_forward.2} parent=1 // pred_check_branch
      %307 = sbr.rel (0) target = $region197
    $region196: #{contrast_memory_queue_forward.2} parent=1 // pred_region
      %308 = vsyncadd %s78, 16
    $region197: #{contrast_memory_queue_forward.2} parent=1 // pred_fallthru
      _
    %s309 = sld [smem:[#allocation5 + $0x3]]
    %s310 = scalar_lea.vmem %s3, %s309
    %s311 = scalar_lea.vmem [#allocation2], 3
    %p313 = scmp.lt.u32.totalorder 1, 8
    %p314 = pneg %p313
    // Predicated region
    $region198: #{contrast_memory_queue_forward.2} parent=1 // pred_check
      _
    $region199: #{contrast_memory_queue_forward.2} parent=1 // pred_check_branch
      %316 = sbr.rel (%p313) target = $region201
    $region200: #{contrast_memory_queue_forward.2} parent=1 // pred_region
      %s331 = sand.u32 1, 7
      %p332 = scmp.eq.s32.totalorder %s331, 0
      %p333 = pneg %p332
      // Predicated region
      $region213: #{contrast_memory_queue_forward.2} parent=200 // pred_check
        _
      $region214: #{contrast_memory_queue_forward.2} parent=200 // pred_check_branch
        %335 = sbr.rel (%p332) target = $region216
      $region215: #{contrast_memory_queue_forward.2} parent=200 // pred_region
        %s336 = sand.u32 1, 7
        %s337 = ssub.s32 1, %s336
        %s338 = scalar_lea.vmem %s310, %s337
        %s339 = ssub.s32 1, %s336
        %s340 = scalar_lea.vmem %s311, %s339 [#allocation2]
        %s341 = sshllo.u32 0, %s336
        loop: start=0, step=1, limit=1
        $region217: #{contrast_memory_queue_forward.2} parent=215 // loop_pre_header
          _
        $region218: #{contrast_memory_queue_forward.2} parent=215 // loop_header
          %s343 = sphi 0, %s347
          %p344 = scmp.ge.s32.totalorder %s343, 1
          %s348 = sphi %s338, %s338
          %s349 = sphi %s340, %s340
        $region219: #{contrast_memory_queue_forward.2} parent=215 // loop_header_branch
          %346 = sbr.rel (%p344) target = $region223
        $region220: #{contrast_memory_queue_forward.2} parent=215 // loop_body
          %v350 = vld [vmem:[%s348] sm:%s341]
          %351 = vst [vmem:[%s349] sm:%s341] %v350
        $region221: #{contrast_memory_queue_forward.2} parent=215 // loop_footer
          %s347 = sadd.s32 1, %s343
        $region222: #{contrast_memory_queue_forward.2} parent=215 // loop_footer_branch
          %342 = sbr.rel target = $region218
        $region223: #{contrast_memory_queue_forward.2} parent=215 // loop_exit
          _
      $region216: #{contrast_memory_queue_forward.2} parent=200 // pred_fallthru
        _
    $region201: #{contrast_memory_queue_forward.2} parent=1 // pred_fallthru
      _
    // Predicated region
    $region202: #{contrast_memory_queue_forward.2} parent=1 // pred_check
      %p317 = pneg %p313
    $region203: #{contrast_memory_queue_forward.2} parent=1 // pred_check_branch
      %319 = sbr.rel (%p317) target = $region205
    $region204: #{contrast_memory_queue_forward.2} parent=1 // pred_region
      %s320 = sshllo.u32 0, 1
      loop: start=0, step=1, limit=1
      $region206: #{contrast_memory_queue_forward.2} parent=204 // loop_pre_header
        _
      $region207: #{contrast_memory_queue_forward.2} parent=204 // loop_header
        %s322 = sphi 0, %s326
        %p323 = scmp.ge.s32.totalorder %s322, 1
        %s327 = sphi %s310, %s310
        %s328 = sphi %s311, %s311
      $region208: #{contrast_memory_queue_forward.2} parent=204 // loop_header_branch
        %325 = sbr.rel (%p323) target = $region212
      $region209: #{contrast_memory_queue_forward.2} parent=204 // loop_body
        %v329 = vld [vmem:[%s327] sm:%s320]
        %330 = vst [vmem:[%s328] sm:%s320] %v329
      $region210: #{contrast_memory_queue_forward.2} parent=204 // loop_footer
        %s326 = sadd.s32 1, %s322
      $region211: #{contrast_memory_queue_forward.2} parent=204 // loop_footer_branch
        %321 = sbr.rel target = $region207
      $region212: #{contrast_memory_queue_forward.2} parent=204 // loop_exit
        _
    $region205: #{contrast_memory_queue_forward.2} parent=1 // pred_fallthru
      _
    // Predicated region
    $region224: #{contrast_memory_queue_forward.2} parent=1 // pred_check
      _
    $region225: #{contrast_memory_queue_forward.2} parent=1 // pred_check_branch
      %354 = sbr.rel (0) target = $region227
    $region226: #{contrast_memory_queue_forward.2} parent=1 // pred_region
      %355 = vsyncadd [#allocation4], 16
    $region227: #{contrast_memory_queue_forward.2} parent=1 // pred_fallthru
      _
    %s356 = scalar_lea.vmem %s4, %s309
    %s357 = scalar_lea.vmem [#allocation3], 3
    %p359 = scmp.lt.u32.totalorder 1, 8
    %p360 = pneg %p359
    // Predicated region
    $region228: #{contrast_memory_queue_forward.2} parent=1 // pred_check
      _
    $region229: #{contrast_memory_queue_forward.2} parent=1 // pred_check_branch
      %362 = sbr.rel (%p359) target = $region231
    $region230: #{contrast_memory_queue_forward.2} parent=1 // pred_region
      %s377 = sand.u32 1, 7
      %p378 = scmp.eq.s32.totalorder %s377, 0
      %p379 = pneg %p378
      // Predicated region
      $region243: #{contrast_memory_queue_forward.2} parent=230 // pred_check
        _
      $region244: #{contrast_memory_queue_forward.2} parent=230 // pred_check_branch
        %381 = sbr.rel (%p378) target = $region246
      $region245: #{contrast_memory_queue_forward.2} parent=230 // pred_region
        %s382 = sand.u32 1, 7
        %s383 = ssub.s32 1, %s382
        %s384 = scalar_lea.vmem %s356, %s383
        %s385 = ssub.s32 1, %s382
        %s386 = scalar_lea.vmem %s357, %s385 [#allocation3]
        %s387 = sshllo.u32 0, %s382
        loop: start=0, step=1, limit=1
        $region247: #{contrast_memory_queue_forward.2} parent=245 // loop_pre_header
          _
        $region248: #{contrast_memory_queue_forward.2} parent=245 // loop_header
          %s389 = sphi 0, %s393
          %p390 = scmp.ge.s32.totalorder %s389, 1
          %s394 = sphi %s384, %s384
          %s395 = sphi %s386, %s386
        $region249: #{contrast_memory_queue_forward.2} parent=245 // loop_header_branch
          %392 = sbr.rel (%p390) target = $region253
        $region250: #{contrast_memory_queue_forward.2} parent=245 // loop_body
          %v396 = vld [vmem:[%s394] sm:%s387]
          %397 = vst [vmem:[%s395] sm:%s387] %v396
        $region251: #{contrast_memory_queue_forward.2} parent=245 // loop_footer
          %s393 = sadd.s32 1, %s389
        $region252: #{contrast_memory_queue_forward.2} parent=245 // loop_footer_branch
          %388 = sbr.rel target = $region248
        $region253: #{contrast_memory_queue_forward.2} parent=245 // loop_exit
          _
      $region246: #{contrast_memory_queue_forward.2} parent=230 // pred_fallthru
        _
    $region231: #{contrast_memory_queue_forward.2} parent=1 // pred_fallthru
      _
    // Predicated region
    $region232: #{contrast_memory_queue_forward.2} parent=1 // pred_check
      %p363 = pneg %p359
    $region233: #{contrast_memory_queue_forward.2} parent=1 // pred_check_branch
      %365 = sbr.rel (%p363) target = $region235
    $region234: #{contrast_memory_queue_forward.2} parent=1 // pred_region
      %s366 = sshllo.u32 0, 1
      loop: start=0, step=1, limit=1
      $region236: #{contrast_memory_queue_forward.2} parent=234 // loop_pre_header
        _
      $region237: #{contrast_memory_queue_forward.2} parent=234 // loop_header
        %s368 = sphi 0, %s372
        %p369 = scmp.ge.s32.totalorder %s368, 1
        %s373 = sphi %s356, %s356
        %s374 = sphi %s357, %s357
      $region238: #{contrast_memory_queue_forward.2} parent=234 // loop_header_branch
        %371 = sbr.rel (%p369) target = $region242
      $region239: #{contrast_memory_queue_forward.2} parent=234 // loop_body
        %v375 = vld [vmem:[%s373] sm:%s366]
        %376 = vst [vmem:[%s374] sm:%s366] %v375
      $region240: #{contrast_memory_queue_forward.2} parent=234 // loop_footer
        %s372 = sadd.s32 1, %s368
      $region241: #{contrast_memory_queue_forward.2} parent=234 // loop_footer_branch
        %367 = sbr.rel target = $region237
      $region242: #{contrast_memory_queue_forward.2} parent=234 // loop_exit
        _
    $region235: #{contrast_memory_queue_forward.2} parent=1 // pred_fallthru
      _
    // Predicated region
    $region254: #{contrast_memory_queue_forward.2} parent=1 // pred_check
      _
    $region255: #{contrast_memory_queue_forward.2} parent=1 // pred_check_branch
      %400 = sbr.rel (0) target = $region257
    $region256: #{contrast_memory_queue_forward.2} parent=1 // pred_region
      %401 = vsyncadd %s78, 16
    $region257: #{contrast_memory_queue_forward.2} parent=1 // pred_fallthru
      _
    %s402 = sld [smem:[#allocation5 + $0x4]]
    %s403 = scalar_lea.vmem %s3, %s402
    %s404 = scalar_lea.vmem [#allocation2], 4
    %p406 = scmp.lt.u32.totalorder 1, 8
    %p407 = pneg %p406
    // Predicated region
    $region258: #{contrast_memory_queue_forward.2} parent=1 // pred_check
      _
    $region259: #{contrast_memory_queue_forward.2} parent=1 // pred_check_branch
      %409 = sbr.rel (%p406) target = $region261
    $region260: #{contrast_memory_queue_forward.2} parent=1 // pred_region
      %s424 = sand.u32 1, 7
      %p425 = scmp.eq.s32.totalorder %s424, 0
      %p426 = pneg %p425
      // Predicated region
      $region273: #{contrast_memory_queue_forward.2} parent=260 // pred_check
        _
      $region274: #{contrast_memory_queue_forward.2} parent=260 // pred_check_branch
        %428 = sbr.rel (%p425) target = $region276
      $region275: #{contrast_memory_queue_forward.2} parent=260 // pred_region
        %s429 = sand.u32 1, 7
        %s430 = ssub.s32 1, %s429
        %s431 = scalar_lea.vmem %s403, %s430
        %s432 = ssub.s32 1, %s429
        %s433 = scalar_lea.vmem %s404, %s432 [#allocation2]
        %s434 = sshllo.u32 0, %s429
        loop: start=0, step=1, limit=1
        $region277: #{contrast_memory_queue_forward.2} parent=275 // loop_pre_header
          _
        $region278: #{contrast_memory_queue_forward.2} parent=275 // loop_header
          %s436 = sphi 0, %s440
          %p437 = scmp.ge.s32.totalorder %s436, 1
          %s441 = sphi %s431, %s431
          %s442 = sphi %s433, %s433
        $region279: #{contrast_memory_queue_forward.2} parent=275 // loop_header_branch
          %439 = sbr.rel (%p437) target = $region283
        $region280: #{contrast_memory_queue_forward.2} parent=275 // loop_body
          %v443 = vld [vmem:[%s441] sm:%s434]
          %444 = vst [vmem:[%s442] sm:%s434] %v443
        $region281: #{contrast_memory_queue_forward.2} parent=275 // loop_footer
          %s440 = sadd.s32 1, %s436
        $region282: #{contrast_memory_queue_forward.2} parent=275 // loop_footer_branch
          %435 = sbr.rel target = $region278
        $region283: #{contrast_memory_queue_forward.2} parent=275 // loop_exit
          _
      $region276: #{contrast_memory_queue_forward.2} parent=260 // pred_fallthru
        _
    $region261: #{contrast_memory_queue_forward.2} parent=1 // pred_fallthru
      _
    // Predicated region
    $region262: #{contrast_memory_queue_forward.2} parent=1 // pred_check
      %p410 = pneg %p406
    $region263: #{contrast_memory_queue_forward.2} parent=1 // pred_check_branch
      %412 = sbr.rel (%p410) target = $region265
    $region264: #{contrast_memory_queue_forward.2} parent=1 // pred_region
      %s413 = sshllo.u32 0, 1
      loop: start=0, step=1, limit=1
      $region266: #{contrast_memory_queue_forward.2} parent=264 // loop_pre_header
        _
      $region267: #{contrast_memory_queue_forward.2} parent=264 // loop_header
        %s415 = sphi 0, %s419
        %p416 = scmp.ge.s32.totalorder %s415, 1
        %s420 = sphi %s403, %s403
        %s421 = sphi %s404, %s404
      $region268: #{contrast_memory_queue_forward.2} parent=264 // loop_header_branch
        %418 = sbr.rel (%p416) target = $region272
      $region269: #{contrast_memory_queue_forward.2} parent=264 // loop_body
        %v422 = vld [vmem:[%s420] sm:%s413]
        %423 = vst [vmem:[%s421] sm:%s413] %v422
      $region270: #{contrast_memory_queue_forward.2} parent=264 // loop_footer
        %s419 = sadd.s32 1, %s415
      $region271: #{contrast_memory_queue_forward.2} parent=264 // loop_footer_branch
        %414 = sbr.rel target = $region267
      $region272: #{contrast_memory_queue_forward.2} parent=264 // loop_exit
        _
    $region265: #{contrast_memory_queue_forward.2} parent=1 // pred_fallthru
      _
    // Predicated region
    $region284: #{contrast_memory_queue_forward.2} parent=1 // pred_check
      _
    $region285: #{contrast_memory_queue_forward.2} parent=1 // pred_check_branch
      %447 = sbr.rel (0) target = $region287
    $region286: #{contrast_memory_queue_forward.2} parent=1 // pred_region
      %448 = vsyncadd [#allocation4], 16
    $region287: #{contrast_memory_queue_forward.2} parent=1 // pred_fallthru
      _
    %s449 = scalar_lea.vmem %s4, %s402
    %s450 = scalar_lea.vmem [#allocation3], 4
    %p452 = scmp.lt.u32.totalorder 1, 8
    %p453 = pneg %p452
    // Predicated region
    $region288: #{contrast_memory_queue_forward.2} parent=1 // pred_check
      _
    $region289: #{contrast_memory_queue_forward.2} parent=1 // pred_check_branch
      %455 = sbr.rel (%p452) target = $region291
    $region290: #{contrast_memory_queue_forward.2} parent=1 // pred_region
      %s470 = sand.u32 1, 7
      %p471 = scmp.eq.s32.totalorder %s470, 0
      %p472 = pneg %p471
      // Predicated region
      $region303: #{contrast_memory_queue_forward.2} parent=290 // pred_check
        _
      $region304: #{contrast_memory_queue_forward.2} parent=290 // pred_check_branch
        %474 = sbr.rel (%p471) target = $region306
      $region305: #{contrast_memory_queue_forward.2} parent=290 // pred_region
        %s475 = sand.u32 1, 7
        %s476 = ssub.s32 1, %s475
        %s477 = scalar_lea.vmem %s449, %s476
        %s478 = ssub.s32 1, %s475
        %s479 = scalar_lea.vmem %s450, %s478 [#allocation3]
        %s480 = sshllo.u32 0, %s475
        loop: start=0, step=1, limit=1
        $region307: #{contrast_memory_queue_forward.2} parent=305 // loop_pre_header
          _
        $region308: #{contrast_memory_queue_forward.2} parent=305 // loop_header
          %s482 = sphi 0, %s486
          %p483 = scmp.ge.s32.totalorder %s482, 1
          %s487 = sphi %s477, %s477
          %s488 = sphi %s479, %s479
        $region309: #{contrast_memory_queue_forward.2} parent=305 // loop_header_branch
          %485 = sbr.rel (%p483) target = $region313
        $region310: #{contrast_memory_queue_forward.2} parent=305 // loop_body
          %v489 = vld [vmem:[%s487] sm:%s480]
          %490 = vst [vmem:[%s488] sm:%s480] %v489
        $region311: #{contrast_memory_queue_forward.2} parent=305 // loop_footer
          %s486 = sadd.s32 1, %s482
        $region312: #{contrast_memory_queue_forward.2} parent=305 // loop_footer_branch
          %481 = sbr.rel target = $region308
        $region313: #{contrast_memory_queue_forward.2} parent=305 // loop_exit
          _
      $region306: #{contrast_memory_queue_forward.2} parent=290 // pred_fallthru
        _
    $region291: #{contrast_memory_queue_forward.2} parent=1 // pred_fallthru
      _
    // Predicated region
    $region292: #{contrast_memory_queue_forward.2} parent=1 // pred_check
      %p456 = pneg %p452
    $region293: #{contrast_memory_queue_forward.2} parent=1 // pred_check_branch
      %458 = sbr.rel (%p456) target = $region295
    $region294: #{contrast_memory_queue_forward.2} parent=1 // pred_region
      %s459 = sshllo.u32 0, 1
      loop: start=0, step=1, limit=1
      $region296: #{contrast_memory_queue_forward.2} parent=294 // loop_pre_header
        _
      $region297: #{contrast_memory_queue_forward.2} parent=294 // loop_header
        %s461 = sphi 0, %s465
        %p462 = scmp.ge.s32.totalorder %s461, 1
        %s466 = sphi %s449, %s449
        %s467 = sphi %s450, %s450
      $region298: #{contrast_memory_queue_forward.2} parent=294 // loop_header_branch
        %464 = sbr.rel (%p462) target = $region302
      $region299: #{contrast_memory_queue_forward.2} parent=294 // loop_body
        %v468 = vld [vmem:[%s466] sm:%s459]
        %469 = vst [vmem:[%s467] sm:%s459] %v468
      $region300: #{contrast_memory_queue_forward.2} parent=294 // loop_footer
        %s465 = sadd.s32 1, %s461
      $region301: #{contrast_memory_queue_forward.2} parent=294 // loop_footer_branch
        %460 = sbr.rel target = $region297
      $region302: #{contrast_memory_queue_forward.2} parent=294 // loop_exit
        _
    $region295: #{contrast_memory_queue_forward.2} parent=1 // pred_fallthru
      _
    // Predicated region
    $region314: #{contrast_memory_queue_forward.2} parent=1 // pred_check
      _
    $region315: #{contrast_memory_queue_forward.2} parent=1 // pred_check_branch
      %493 = sbr.rel (0) target = $region317
    $region316: #{contrast_memory_queue_forward.2} parent=1 // pred_region
      %494 = vsyncadd %s78, 16
    $region317: #{contrast_memory_queue_forward.2} parent=1 // pred_fallthru
      _
    %s495 = sld [smem:[#allocation5 + $0x5]]
    %s496 = scalar_lea.vmem %s3, %s495
    %s497 = scalar_lea.vmem [#allocation2], 5
    %p499 = scmp.lt.u32.totalorder 1, 8
    %p500 = pneg %p499
    // Predicated region
    $region318: #{contrast_memory_queue_forward.2} parent=1 // pred_check
      _
    $region319: #{contrast_memory_queue_forward.2} parent=1 // pred_check_branch
      %502 = sbr.rel (%p499) target = $region321
    $region320: #{contrast_memory_queue_forward.2} parent=1 // pred_region
      %s517 = sand.u32 1, 7
      %p518 = scmp.eq.s32.totalorder %s517, 0
      %p519 = pneg %p518
      // Predicated region
      $region333: #{contrast_memory_queue_forward.2} parent=320 // pred_check
        _
      $region334: #{contrast_memory_queue_forward.2} parent=320 // pred_check_branch
        %521 = sbr.rel (%p518) target = $region336
      $region335: #{contrast_memory_queue_forward.2} parent=320 // pred_region
        %s522 = sand.u32 1, 7
        %s523 = ssub.s32 1, %s522
        %s524 = scalar_lea.vmem %s496, %s523
        %s525 = ssub.s32 1, %s522
        %s526 = scalar_lea.vmem %s497, %s525 [#allocation2]
        %s527 = sshllo.u32 0, %s522
        loop: start=0, step=1, limit=1
        $region337: #{contrast_memory_queue_forward.2} parent=335 // loop_pre_header
          _
        $region338: #{contrast_memory_queue_forward.2} parent=335 // loop_header
          %s529 = sphi 0, %s533
          %p530 = scmp.ge.s32.totalorder %s529, 1
          %s534 = sphi %s524, %s524
          %s535 = sphi %s526, %s526
        $region339: #{contrast_memory_queue_forward.2} parent=335 // loop_header_branch
          %532 = sbr.rel (%p530) target = $region343
        $region340: #{contrast_memory_queue_forward.2} parent=335 // loop_body
          %v536 = vld [vmem:[%s534] sm:%s527]
          %537 = vst [vmem:[%s535] sm:%s527] %v536
        $region341: #{contrast_memory_queue_forward.2} parent=335 // loop_footer
          %s533 = sadd.s32 1, %s529
        $region342: #{contrast_memory_queue_forward.2} parent=335 // loop_footer_branch
          %528 = sbr.rel target = $region338
        $region343: #{contrast_memory_queue_forward.2} parent=335 // loop_exit
          _
      $region336: #{contrast_memory_queue_forward.2} parent=320 // pred_fallthru
        _
    $region321: #{contrast_memory_queue_forward.2} parent=1 // pred_fallthru
      _
    // Predicated region
    $region322: #{contrast_memory_queue_forward.2} parent=1 // pred_check
      %p503 = pneg %p499
    $region323: #{contrast_memory_queue_forward.2} parent=1 // pred_check_branch
      %505 = sbr.rel (%p503) target = $region325
    $region324: #{contrast_memory_queue_forward.2} parent=1 // pred_region
      %s506 = sshllo.u32 0, 1
      loop: start=0, step=1, limit=1
      $region326: #{contrast_memory_queue_forward.2} parent=324 // loop_pre_header
        _
      $region327: #{contrast_memory_queue_forward.2} parent=324 // loop_header
        %s508 = sphi 0, %s512
        %p509 = scmp.ge.s32.totalorder %s508, 1
        %s513 = sphi %s496, %s496
        %s514 = sphi %s497, %s497
      $region328: #{contrast_memory_queue_forward.2} parent=324 // loop_header_branch
        %511 = sbr.rel (%p509) target = $region332
      $region329: #{contrast_memory_queue_forward.2} parent=324 // loop_body
        %v515 = vld [vmem:[%s513] sm:%s506]
        %516 = vst [vmem:[%s514] sm:%s506] %v515
      $region330: #{contrast_memory_queue_forward.2} parent=324 // loop_footer
        %s512 = sadd.s32 1, %s508
      $region331: #{contrast_memory_queue_forward.2} parent=324 // loop_footer_branch
        %507 = sbr.rel target = $region327
      $region332: #{contrast_memory_queue_forward.2} parent=324 // loop_exit
        _
    $region325: #{contrast_memory_queue_forward.2} parent=1 // pred_fallthru
      _
    // Predicated region
    $region344: #{contrast_memory_queue_forward.2} parent=1 // pred_check
      _
    $region345: #{contrast_memory_queue_forward.2} parent=1 // pred_check_branch
      %540 = sbr.rel (0) target = $region347
    $region346: #{contrast_memory_queue_forward.2} parent=1 // pred_region
      %541 = vsyncadd [#allocation4], 16
    $region347: #{contrast_memory_queue_forward.2} parent=1 // pred_fallthru
      _
    %s542 = scalar_lea.vmem %s4, %s495
    %s543 = scalar_lea.vmem [#allocation3], 5
    %p545 = scmp.lt.u32.totalorder 1, 8
    %p546 = pneg %p545
    // Predicated region
    $region348: #{contrast_memory_queue_forward.2} parent=1 // pred_check
      _
    $region349: #{contrast_memory_queue_forward.2} parent=1 // pred_check_branch
      %548 = sbr.rel (%p545) target = $region351
    $region350: #{contrast_memory_queue_forward.2} parent=1 // pred_region
      %s563 = sand.u32 1, 7
      %p564 = scmp.eq.s32.totalorder %s563, 0
      %p565 = pneg %p564
      // Predicated region
      $region363: #{contrast_memory_queue_forward.2} parent=350 // pred_check
        _
      $region364: #{contrast_memory_queue_forward.2} parent=350 // pred_check_branch
        %567 = sbr.rel (%p564) target = $region366
      $region365: #{contrast_memory_queue_forward.2} parent=350 // pred_region
        %s568 = sand.u32 1, 7
        %s569 = ssub.s32 1, %s568
        %s570 = scalar_lea.vmem %s542, %s569
        %s571 = ssub.s32 1, %s568
        %s572 = scalar_lea.vmem %s543, %s571 [#allocation3]
        %s573 = sshllo.u32 0, %s568
        loop: start=0, step=1, limit=1
        $region367: #{contrast_memory_queue_forward.2} parent=365 // loop_pre_header
          _
        $region368: #{contrast_memory_queue_forward.2} parent=365 // loop_header
          %s575 = sphi 0, %s579
          %p576 = scmp.ge.s32.totalorder %s575, 1
          %s580 = sphi %s570, %s570
          %s581 = sphi %s572, %s572
        $region369: #{contrast_memory_queue_forward.2} parent=365 // loop_header_branch
          %578 = sbr.rel (%p576) target = $region373
        $region370: #{contrast_memory_queue_forward.2} parent=365 // loop_body
          %v582 = vld [vmem:[%s580] sm:%s573]
          %583 = vst [vmem:[%s581] sm:%s573] %v582
        $region371: #{contrast_memory_queue_forward.2} parent=365 // loop_footer
          %s579 = sadd.s32 1, %s575
        $region372: #{contrast_memory_queue_forward.2} parent=365 // loop_footer_branch
          %574 = sbr.rel target = $region368
        $region373: #{contrast_memory_queue_forward.2} parent=365 // loop_exit
          _
      $region366: #{contrast_memory_queue_forward.2} parent=350 // pred_fallthru
        _
    $region351: #{contrast_memory_queue_forward.2} parent=1 // pred_fallthru
      _
    // Predicated region
    $region352: #{contrast_memory_queue_forward.2} parent=1 // pred_check
      %p549 = pneg %p545
    $region353: #{contrast_memory_queue_forward.2} parent=1 // pred_check_branch
      %551 = sbr.rel (%p549) target = $region355
    $region354: #{contrast_memory_queue_forward.2} parent=1 // pred_region
      %s552 = sshllo.u32 0, 1
      loop: start=0, step=1, limit=1
      $region356: #{contrast_memory_queue_forward.2} parent=354 // loop_pre_header
        _
      $region357: #{contrast_memory_queue_forward.2} parent=354 // loop_header
        %s554 = sphi 0, %s558
        %p555 = scmp.ge.s32.totalorder %s554, 1
        %s559 = sphi %s542, %s542
        %s560 = sphi %s543, %s543
      $region358: #{contrast_memory_queue_forward.2} parent=354 // loop_header_branch
        %557 = sbr.rel (%p555) target = $region362
      $region359: #{contrast_memory_queue_forward.2} parent=354 // loop_body
        %v561 = vld [vmem:[%s559] sm:%s552]
        %562 = vst [vmem:[%s560] sm:%s552] %v561
      $region360: #{contrast_memory_queue_forward.2} parent=354 // loop_footer
        %s558 = sadd.s32 1, %s554
      $region361: #{contrast_memory_queue_forward.2} parent=354 // loop_footer_branch
        %553 = sbr.rel target = $region357
      $region362: #{contrast_memory_queue_forward.2} parent=354 // loop_exit
        _
    $region355: #{contrast_memory_queue_forward.2} parent=1 // pred_fallthru
      _
    // Predicated region
    $region374: #{contrast_memory_queue_forward.2} parent=1 // pred_check
      _
    $region375: #{contrast_memory_queue_forward.2} parent=1 // pred_check_branch
      %586 = sbr.rel (0) target = $region377
    $region376: #{contrast_memory_queue_forward.2} parent=1 // pred_region
      %587 = vsyncadd %s78, 16
    $region377: #{contrast_memory_queue_forward.2} parent=1 // pred_fallthru
      _
    %s588 = sld [smem:[#allocation5 + $0x6]]
    %s589 = scalar_lea.vmem %s3, %s588
    %s590 = scalar_lea.vmem [#allocation2], 6
    %p592 = scmp.lt.u32.totalorder 1, 8
    %p593 = pneg %p592
    // Predicated region
    $region378: #{contrast_memory_queue_forward.2} parent=1 // pred_check
      _
    $region379: #{contrast_memory_queue_forward.2} parent=1 // pred_check_branch
      %595 = sbr.rel (%p592) target = $region381
    $region380: #{contrast_memory_queue_forward.2} parent=1 // pred_region
      %s610 = sand.u32 1, 7
      %p611 = scmp.eq.s32.totalorder %s610, 0
      %p612 = pneg %p611
      // Predicated region
      $region393: #{contrast_memory_queue_forward.2} parent=380 // pred_check
        _
      $region394: #{contrast_memory_queue_forward.2} parent=380 // pred_check_branch
        %614 = sbr.rel (%p611) target = $region396
      $region395: #{contrast_memory_queue_forward.2} parent=380 // pred_region
        %s615 = sand.u32 1, 7
        %s616 = ssub.s32 1, %s615
        %s617 = scalar_lea.vmem %s589, %s616
        %s618 = ssub.s32 1, %s615
        %s619 = scalar_lea.vmem %s590, %s618 [#allocation2]
        %s620 = sshllo.u32 0, %s615
        loop: start=0, step=1, limit=1
        $region397: #{contrast_memory_queue_forward.2} parent=395 // loop_pre_header
          _
        $region398: #{contrast_memory_queue_forward.2} parent=395 // loop_header
          %s622 = sphi 0, %s626
          %p623 = scmp.ge.s32.totalorder %s622, 1
          %s627 = sphi %s617, %s617
          %s628 = sphi %s619, %s619
        $region399: #{contrast_memory_queue_forward.2} parent=395 // loop_header_branch
          %625 = sbr.rel (%p623) target = $region403
        $region400: #{contrast_memory_queue_forward.2} parent=395 // loop_body
          %v629 = vld [vmem:[%s627] sm:%s620]
          %630 = vst [vmem:[%s628] sm:%s620] %v629
        $region401: #{contrast_memory_queue_forward.2} parent=395 // loop_footer
          %s626 = sadd.s32 1, %s622
        $region402: #{contrast_memory_queue_forward.2} parent=395 // loop_footer_branch
          %621 = sbr.rel target = $region398
        $region403: #{contrast_memory_queue_forward.2} parent=395 // loop_exit
          _
      $region396: #{contrast_memory_queue_forward.2} parent=380 // pred_fallthru
        _
    $region381: #{contrast_memory_queue_forward.2} parent=1 // pred_fallthru
      _
    // Predicated region
    $region382: #{contrast_memory_queue_forward.2} parent=1 // pred_check
      %p596 = pneg %p592
    $region383: #{contrast_memory_queue_forward.2} parent=1 // pred_check_branch
      %598 = sbr.rel (%p596) target = $region385
    $region384: #{contrast_memory_queue_forward.2} parent=1 // pred_region
      %s599 = sshllo.u32 0, 1
      loop: start=0, step=1, limit=1
      $region386: #{contrast_memory_queue_forward.2} parent=384 // loop_pre_header
        _
      $region387: #{contrast_memory_queue_forward.2} parent=384 // loop_header
        %s601 = sphi 0, %s605
        %p602 = scmp.ge.s32.totalorder %s601, 1
        %s606 = sphi %s589, %s589
        %s607 = sphi %s590, %s590
      $region388: #{contrast_memory_queue_forward.2} parent=384 // loop_header_branch
        %604 = sbr.rel (%p602) target = $region392
      $region389: #{contrast_memory_queue_forward.2} parent=384 // loop_body
        %v608 = vld [vmem:[%s606] sm:%s599]
        %609 = vst [vmem:[%s607] sm:%s599] %v608
      $region390: #{contrast_memory_queue_forward.2} parent=384 // loop_footer
        %s605 = sadd.s32 1, %s601
      $region391: #{contrast_memory_queue_forward.2} parent=384 // loop_footer_branch
        %600 = sbr.rel target = $region387
      $region392: #{contrast_memory_queue_forward.2} parent=384 // loop_exit
        _
    $region385: #{contrast_memory_queue_forward.2} parent=1 // pred_fallthru
      _
    // Predicated region
    $region404: #{contrast_memory_queue_forward.2} parent=1 // pred_check
      _
    $region405: #{contrast_memory_queue_forward.2} parent=1 // pred_check_branch
      %633 = sbr.rel (0) target = $region407
    $region406: #{contrast_memory_queue_forward.2} parent=1 // pred_region
      %634 = vsyncadd [#allocation4], 16
    $region407: #{contrast_memory_queue_forward.2} parent=1 // pred_fallthru
      _
    %s635 = scalar_lea.vmem %s4, %s588
    %s636 = scalar_lea.vmem [#allocation3], 6
    %p638 = scmp.lt.u32.totalorder 1, 8
    %p639 = pneg %p638
    // Predicated region
    $region408: #{contrast_memory_queue_forward.2} parent=1 // pred_check
      _
    $region409: #{contrast_memory_queue_forward.2} parent=1 // pred_check_branch
      %641 = sbr.rel (%p638) target = $region411
    $region410: #{contrast_memory_queue_forward.2} parent=1 // pred_region
      %s656 = sand.u32 1, 7
      %p657 = scmp.eq.s32.totalorder %s656, 0
      %p658 = pneg %p657
      // Predicated region
      $region423: #{contrast_memory_queue_forward.2} parent=410 // pred_check
        _
      $region424: #{contrast_memory_queue_forward.2} parent=410 // pred_check_branch
        %660 = sbr.rel (%p657) target = $region426
      $region425: #{contrast_memory_queue_forward.2} parent=410 // pred_region
        %s661 = sand.u32 1, 7
        %s662 = ssub.s32 1, %s661
        %s663 = scalar_lea.vmem %s635, %s662
        %s664 = ssub.s32 1, %s661
        %s665 = scalar_lea.vmem %s636, %s664 [#allocation3]
        %s666 = sshllo.u32 0, %s661
        loop: start=0, step=1, limit=1
        $region427: #{contrast_memory_queue_forward.2} parent=425 // loop_pre_header
          _
        $region428: #{contrast_memory_queue_forward.2} parent=425 // loop_header
          %s668 = sphi 0, %s672
          %p669 = scmp.ge.s32.totalorder %s668, 1
          %s673 = sphi %s663, %s663
          %s674 = sphi %s665, %s665
        $region429: #{contrast_memory_queue_forward.2} parent=425 // loop_header_branch
          %671 = sbr.rel (%p669) target = $region433
        $region430: #{contrast_memory_queue_forward.2} parent=425 // loop_body
          %v675 = vld [vmem:[%s673] sm:%s666]
          %676 = vst [vmem:[%s674] sm:%s666] %v675
        $region431: #{contrast_memory_queue_forward.2} parent=425 // loop_footer
          %s672 = sadd.s32 1, %s668
        $region432: #{contrast_memory_queue_forward.2} parent=425 // loop_footer_branch
          %667 = sbr.rel target = $region428
        $region433: #{contrast_memory_queue_forward.2} parent=425 // loop_exit
          _
      $region426: #{contrast_memory_queue_forward.2} parent=410 // pred_fallthru
        _
    $region411: #{contrast_memory_queue_forward.2} parent=1 // pred_fallthru
      _
    // Predicated region
    $region412: #{contrast_memory_queue_forward.2} parent=1 // pred_check
      %p642 = pneg %p638
    $region413: #{contrast_memory_queue_forward.2} parent=1 // pred_check_branch
      %644 = sbr.rel (%p642) target = $region415
    $region414: #{contrast_memory_queue_forward.2} parent=1 // pred_region
      %s645 = sshllo.u32 0, 1
      loop: start=0, step=1, limit=1
      $region416: #{contrast_memory_queue_forward.2} parent=414 // loop_pre_header
        _
      $region417: #{contrast_memory_queue_forward.2} parent=414 // loop_header
        %s647 = sphi 0, %s651
        %p648 = scmp.ge.s32.totalorder %s647, 1
        %s652 = sphi %s635, %s635
        %s653 = sphi %s636, %s636
      $region418: #{contrast_memory_queue_forward.2} parent=414 // loop_header_branch
        %650 = sbr.rel (%p648) target = $region422
      $region419: #{contrast_memory_queue_forward.2} parent=414 // loop_body
        %v654 = vld [vmem:[%s652] sm:%s645]
        %655 = vst [vmem:[%s653] sm:%s645] %v654
      $region420: #{contrast_memory_queue_forward.2} parent=414 // loop_footer
        %s651 = sadd.s32 1, %s647
      $region421: #{contrast_memory_queue_forward.2} parent=414 // loop_footer_branch
        %646 = sbr.rel target = $region417
      $region422: #{contrast_memory_queue_forward.2} parent=414 // loop_exit
        _
    $region415: #{contrast_memory_queue_forward.2} parent=1 // pred_fallthru
      _
    // Predicated region
    $region434: #{contrast_memory_queue_forward.2} parent=1 // pred_check
      _
    $region435: #{contrast_memory_queue_forward.2} parent=1 // pred_check_branch
      %679 = sbr.rel (0) target = $region437
    $region436: #{contrast_memory_queue_forward.2} parent=1 // pred_region
      %680 = vsyncadd %s78, 16
    $region437: #{contrast_memory_queue_forward.2} parent=1 // pred_fallthru
      _
    %s681 = sld [smem:[#allocation5 + $0x7]]
    %s682 = scalar_lea.vmem %s3, %s681
    %s683 = scalar_lea.vmem [#allocation2], 7
    %p685 = scmp.lt.u32.totalorder 1, 8
    %p686 = pneg %p685
    // Predicated region
    $region438: #{contrast_memory_queue_forward.2} parent=1 // pred_check
      _
    $region439: #{contrast_memory_queue_forward.2} parent=1 // pred_check_branch
      %688 = sbr.rel (%p685) target = $region441
    $region440: #{contrast_memory_queue_forward.2} parent=1 // pred_region
      %s703 = sand.u32 1, 7
      %p704 = scmp.eq.s32.totalorder %s703, 0
      %p705 = pneg %p704
      // Predicated region
      $region453: #{contrast_memory_queue_forward.2} parent=440 // pred_check
        _
      $region454: #{contrast_memory_queue_forward.2} parent=440 // pred_check_branch
        %707 = sbr.rel (%p704) target = $region456
      $region455: #{contrast_memory_queue_forward.2} parent=440 // pred_region
        %s708 = sand.u32 1, 7
        %s709 = ssub.s32 1, %s708
        %s710 = scalar_lea.vmem %s682, %s709
        %s711 = ssub.s32 1, %s708
        %s712 = scalar_lea.vmem %s683, %s711 [#allocation2]
        %s713 = sshllo.u32 0, %s708
        loop: start=0, step=1, limit=1
        $region457: #{contrast_memory_queue_forward.2} parent=455 // loop_pre_header
          _
        $region458: #{contrast_memory_queue_forward.2} parent=455 // loop_header
          %s715 = sphi 0, %s719
          %p716 = scmp.ge.s32.totalorder %s715, 1
          %s720 = sphi %s710, %s710
          %s721 = sphi %s712, %s712
        $region459: #{contrast_memory_queue_forward.2} parent=455 // loop_header_branch
          %718 = sbr.rel (%p716) target = $region463
        $region460: #{contrast_memory_queue_forward.2} parent=455 // loop_body
          %v722 = vld [vmem:[%s720] sm:%s713]
          %723 = vst [vmem:[%s721] sm:%s713] %v722
        $region461: #{contrast_memory_queue_forward.2} parent=455 // loop_footer
          %s719 = sadd.s32 1, %s715
        $region462: #{contrast_memory_queue_forward.2} parent=455 // loop_footer_branch
          %714 = sbr.rel target = $region458
        $region463: #{contrast_memory_queue_forward.2} parent=455 // loop_exit
          _
      $region456: #{contrast_memory_queue_forward.2} parent=440 // pred_fallthru
        _
    $region441: #{contrast_memory_queue_forward.2} parent=1 // pred_fallthru
      _
    // Predicated region
    $region442: #{contrast_memory_queue_forward.2} parent=1 // pred_check
      %p689 = pneg %p685
    $region443: #{contrast_memory_queue_forward.2} parent=1 // pred_check_branch
      %691 = sbr.rel (%p689) target = $region445
    $region444: #{contrast_memory_queue_forward.2} parent=1 // pred_region
      %s692 = sshllo.u32 0, 1
      loop: start=0, step=1, limit=1
      $region446: #{contrast_memory_queue_forward.2} parent=444 // loop_pre_header
        _
      $region447: #{contrast_memory_queue_forward.2} parent=444 // loop_header
        %s694 = sphi 0, %s698
        %p695 = scmp.ge.s32.totalorder %s694, 1
        %s699 = sphi %s682, %s682
        %s700 = sphi %s683, %s683
      $region448: #{contrast_memory_queue_forward.2} parent=444 // loop_header_branch
        %697 = sbr.rel (%p695) target = $region452
      $region449: #{contrast_memory_queue_forward.2} parent=444 // loop_body
        %v701 = vld [vmem:[%s699] sm:%s692]
        %702 = vst [vmem:[%s700] sm:%s692] %v701
      $region450: #{contrast_memory_queue_forward.2} parent=444 // loop_footer
        %s698 = sadd.s32 1, %s694
      $region451: #{contrast_memory_queue_forward.2} parent=444 // loop_footer_branch
        %693 = sbr.rel target = $region447
      $region452: #{contrast_memory_queue_forward.2} parent=444 // loop_exit
        _
    $region445: #{contrast_memory_queue_forward.2} parent=1 // pred_fallthru
      _
    // Predicated region
    $region464: #{contrast_memory_queue_forward.2} parent=1 // pred_check
      _
    $region465: #{contrast_memory_queue_forward.2} parent=1 // pred_check_branch
      %726 = sbr.rel (0) target = $region467
    $region466: #{contrast_memory_queue_forward.2} parent=1 // pred_region
      %727 = vsyncadd [#allocation4], 16
    $region467: #{contrast_memory_queue_forward.2} parent=1 // pred_fallthru
      _
    %s728 = scalar_lea.vmem %s4, %s681
    %s729 = scalar_lea.vmem [#allocation3], 7
    %p731 = scmp.lt.u32.totalorder 1, 8
    %p732 = pneg %p731
    // Predicated region
    $region468: #{contrast_memory_queue_forward.2} parent=1 // pred_check
      _
    $region469: #{contrast_memory_queue_forward.2} parent=1 // pred_check_branch
      %734 = sbr.rel (%p731) target = $region471
    $region470: #{contrast_memory_queue_forward.2} parent=1 // pred_region
      %s749 = sand.u32 1, 7
      %p750 = scmp.eq.s32.totalorder %s749, 0
      %p751 = pneg %p750
      // Predicated region
      $region483: #{contrast_memory_queue_forward.2} parent=470 // pred_check
        _
      $region484: #{contrast_memory_queue_forward.2} parent=470 // pred_check_branch
        %753 = sbr.rel (%p750) target = $region486
      $region485: #{contrast_memory_queue_forward.2} parent=470 // pred_region
        %s754 = sand.u32 1, 7
        %s755 = ssub.s32 1, %s754
        %s756 = scalar_lea.vmem %s728, %s755
        %s757 = ssub.s32 1, %s754
        %s758 = scalar_lea.vmem %s729, %s757 [#allocation3]
        %s759 = sshllo.u32 0, %s754
        loop: start=0, step=1, limit=1
        $region487: #{contrast_memory_queue_forward.2} parent=485 // loop_pre_header
          _
        $region488: #{contrast_memory_queue_forward.2} parent=485 // loop_header
          %s761 = sphi 0, %s765
          %p762 = scmp.ge.s32.totalorder %s761, 1
          %s766 = sphi %s756, %s756
          %s767 = sphi %s758, %s758
        $region489: #{contrast_memory_queue_forward.2} parent=485 // loop_header_branch
          %764 = sbr.rel (%p762) target = $region493
        $region490: #{contrast_memory_queue_forward.2} parent=485 // loop_body
          %v768 = vld [vmem:[%s766] sm:%s759]
          %769 = vst [vmem:[%s767] sm:%s759] %v768
        $region491: #{contrast_memory_queue_forward.2} parent=485 // loop_footer
          %s765 = sadd.s32 1, %s761
        $region492: #{contrast_memory_queue_forward.2} parent=485 // loop_footer_branch
          %760 = sbr.rel target = $region488
        $region493: #{contrast_memory_queue_forward.2} parent=485 // loop_exit
          _
      $region486: #{contrast_memory_queue_forward.2} parent=470 // pred_fallthru
        _
    $region471: #{contrast_memory_queue_forward.2} parent=1 // pred_fallthru
      _
    // Predicated region
    $region472: #{contrast_memory_queue_forward.2} parent=1 // pred_check
      %p735 = pneg %p731
    $region473: #{contrast_memory_queue_forward.2} parent=1 // pred_check_branch
      %737 = sbr.rel (%p735) target = $region475
    $region474: #{contrast_memory_queue_forward.2} parent=1 // pred_region
      %s738 = sshllo.u32 0, 1
      loop: start=0, step=1, limit=1
      $region476: #{contrast_memory_queue_forward.2} parent=474 // loop_pre_header
        _
      $region477: #{contrast_memory_queue_forward.2} parent=474 // loop_header
        %s740 = sphi 0, %s744
        %p741 = scmp.ge.s32.totalorder %s740, 1
        %s745 = sphi %s728, %s728
        %s746 = sphi %s729, %s729
      $region478: #{contrast_memory_queue_forward.2} parent=474 // loop_header_branch
        %743 = sbr.rel (%p741) target = $region482
      $region479: #{contrast_memory_queue_forward.2} parent=474 // loop_body
        %v747 = vld [vmem:[%s745] sm:%s738]
        %748 = vst [vmem:[%s746] sm:%s738] %v747
      $region480: #{contrast_memory_queue_forward.2} parent=474 // loop_footer
        %s744 = sadd.s32 1, %s740
      $region481: #{contrast_memory_queue_forward.2} parent=474 // loop_footer_branch
        %739 = sbr.rel target = $region477
      $region482: #{contrast_memory_queue_forward.2} parent=474 // loop_exit
        _
    $region475: #{contrast_memory_queue_forward.2} parent=1 // pred_fallthru
      _
    // Predicated region
    $region494: #{contrast_memory_queue_forward.2} parent=1 // pred_check
      _
    $region495: #{contrast_memory_queue_forward.2} parent=1 // pred_check_branch
      %772 = sbr.rel (0) target = $region497
    $region496: #{contrast_memory_queue_forward.2} parent=1 // pred_region
      %773 = vsyncadd %s78, 16
    $region497: #{contrast_memory_queue_forward.2} parent=1 // pred_fallthru
      _
    %s774 = smul.u32 1, 1
    %s775 = sshll.u32 %s774, 4
    %776 = dma.done [#allocation4], %s775
    %s777 = sshll.u32 %s774, 4
    %778 = dma.done %s78, %s777
    %s779 = sshll.u32 %s774, 4
    %780 = dma.done [#allocation4], %s779
    %s781 = sshll.u32 %s774, 4
    %782 = dma.done %s78, %s781
    %s783 = sshll.u32 %s774, 4
    %784 = dma.done [#allocation4], %s783
    %s785 = sshll.u32 %s774, 4
    %786 = dma.done %s78, %s785
    %s787 = sshll.u32 %s774, 4
    %788 = dma.done [#allocation4], %s787
    %s789 = sshll.u32 %s774, 4
    %790 = dma.done %s78, %s789
    %s791 = sshll.u32 %s774, 4
    %792 = dma.done [#allocation4], %s791
    %s793 = sshll.u32 %s774, 4
    %794 = dma.done %s78, %s793
    %s795 = sshll.u32 %s774, 4
    %796 = dma.done [#allocation4], %s795
    %s797 = sshll.u32 %s774, 4
    %798 = dma.done %s78, %s797
    %s799 = sshll.u32 %s774, 4
    %800 = dma.done [#allocation4], %s799
    %s801 = sshll.u32 %s774, 4
    %802 = dma.done %s78, %s801
    %s803 = sshll.u32 %s774, 4
    %804 = dma.done [#allocation4], %s803
    %s805 = sshll.u32 %s774, 4
    %806 = dma.done %s78, %s805
    %v807 = vld [vmem:[#allocation2] sm:$0xff]
    %v808 = vmul.f32 %v807, 0.5
    %v809 = vld [vmem:[%s1] sm:$0xff]
    %v810 = vmul.f32 %v809, 0.5
    %v811 = vadd.f32 %v808, %v810
    %v812 = vmul.f32 %v811, %v811
    %vm813 = vcmask 261120
    %v814 = vsel %vm813, %v812, 0.0
    %815 = vadd.xlane.f32.xlu0 %v814
    %v816 = vpop.xlane.xlu0 %815
    %v817 = vrsqrt.pop %v816
    %v818 = vmul.f32 %v811, %v817
    %819 = vst.msk [vmem:[#allocation2] sm:$0xff] %vm813, %v818
    %v820 = vld [vmem:[#allocation3] sm:$0xff]
    %v821 = vmul.f32 %v820, 0.5
    %v822 = vld [vmem:[%s2] sm:$0xff]
    %v823 = vmul.f32 %v822, 0.5
    %v824 = vadd.f32 %v821, %v823
    %v825 = vmul.f32 %v824, %v824
    %v826 = vsel %vm813, %v825, 0.0
    %827 = vadd.xlane.f32.xlu0 %v826
    %v828 = vpop.xlane.xlu0 %827
    %v829 = vrsqrt.pop %v828
    %v830 = vmul.f32 %v824, %v829
    %831 = vst.msk [vmem:[#allocation3] sm:$0xff] %vm813, %v830
    %s832 = sld [smem:[#allocation5]]
    %s833 = scalar_lea.vmem %s5, %s832
    %p835 = scmp.lt.u32.totalorder 1, 8
    %p836 = pneg %p835
    // Predicated region
    $region498: #{contrast_memory_queue_forward.2} parent=1 // pred_check
      _
    $region499: #{contrast_memory_queue_forward.2} parent=1 // pred_check_branch
      %838 = sbr.rel (%p835) target = $region501
    $region500: #{contrast_memory_queue_forward.2} parent=1 // pred_region
      %s853 = sand.u32 1, 7
      %p854 = scmp.eq.s32.totalorder %s853, 0
      %p855 = pneg %p854
      // Predicated region
      $region513: #{contrast_memory_queue_forward.2} parent=500 // pred_check
        _
      $region514: #{contrast_memory_queue_forward.2} parent=500 // pred_check_branch
        %857 = sbr.rel (%p854) target = $region516
      $region515: #{contrast_memory_queue_forward.2} parent=500 // pred_region
        %s858 = sand.u32 1, 7
        %s859 = ssub.s32 1, %s858
        %s860 = scalar_lea.vmem [#allocation2], %s859
        %s861 = ssub.s32 1, %s858
        %s862 = scalar_lea.vmem %s833, %s861
        %s863 = sshllo.u32 0, %s858
        loop: start=0, step=1, limit=1
        $region517: #{contrast_memory_queue_forward.2} parent=515 // loop_pre_header
          _
        $region518: #{contrast_memory_queue_forward.2} parent=515 // loop_header
          %s865 = sphi 0, %s869
          %p866 = scmp.ge.s32.totalorder %s865, 1
          %s870 = sphi %s860, %s860
          %s871 = sphi %s862, %s862
        $region519: #{contrast_memory_queue_forward.2} parent=515 // loop_header_branch
          %868 = sbr.rel (%p866) target = $region523
        $region520: #{contrast_memory_queue_forward.2} parent=515 // loop_body
          %v872 = vld [vmem:[%s870] sm:%s863]
          %873 = vst [vmem:[%s871] sm:%s863] %v872
        $region521: #{contrast_memory_queue_forward.2} parent=515 // loop_footer
          %s869 = sadd.s32 1, %s865
        $region522: #{contrast_memory_queue_forward.2} parent=515 // loop_footer_branch
          %864 = sbr.rel target = $region518
        $region523: #{contrast_memory_queue_forward.2} parent=515 // loop_exit
          _
      $region516: #{contrast_memory_queue_forward.2} parent=500 // pred_fallthru
        _
    $region501: #{contrast_memory_queue_forward.2} parent=1 // pred_fallthru
      _
    // Predicated region
    $region502: #{contrast_memory_queue_forward.2} parent=1 // pred_check
      %p839 = pneg %p835
    $region503: #{contrast_memory_queue_forward.2} parent=1 // pred_check_branch
      %841 = sbr.rel (%p839) target = $region505
    $region504: #{contrast_memory_queue_forward.2} parent=1 // pred_region
      %s842 = sshllo.u32 0, 1
      loop: start=0, step=1, limit=1
      $region506: #{contrast_memory_queue_forward.2} parent=504 // loop_pre_header
        _
      $region507: #{contrast_memory_queue_forward.2} parent=504 // loop_header
        %s844 = sphi 0, %s848
        %p845 = scmp.ge.s32.totalorder %s844, 1
        %s849 = sphi [#allocation2], [#allocation2]
        %s850 = sphi %s833, %s833
      $region508: #{contrast_memory_queue_forward.2} parent=504 // loop_header_branch
        %847 = sbr.rel (%p845) target = $region512
      $region509: #{contrast_memory_queue_forward.2} parent=504 // loop_body
        %v851 = vld [vmem:[%s849] sm:%s842]
        %852 = vst [vmem:[%s850] sm:%s842] %v851
      $region510: #{contrast_memory_queue_forward.2} parent=504 // loop_footer
        %s848 = sadd.s32 1, %s844
      $region511: #{contrast_memory_queue_forward.2} parent=504 // loop_footer_branch
        %843 = sbr.rel target = $region507
      $region512: #{contrast_memory_queue_forward.2} parent=504 // loop_exit
        _
    $region505: #{contrast_memory_queue_forward.2} parent=1 // pred_fallthru
      _
    // Predicated region
    $region524: #{contrast_memory_queue_forward.2} parent=1 // pred_check
      _
    $region525: #{contrast_memory_queue_forward.2} parent=1 // pred_check_branch
      %876 = sbr.rel (0) target = $region527
    $region526: #{contrast_memory_queue_forward.2} parent=1 // pred_region
      %877 = vsyncadd [#allocation4], 16
    $region527: #{contrast_memory_queue_forward.2} parent=1 // pred_fallthru
      _
    %s878 = scalar_lea.vmem %s6, %s832
    %p880 = scmp.lt.u32.totalorder 1, 8
    %p881 = pneg %p880
    // Predicated region
    $region528: #{contrast_memory_queue_forward.2} parent=1 // pred_check
      _
    $region529: #{contrast_memory_queue_forward.2} parent=1 // pred_check_branch
      %883 = sbr.rel (%p880) target = $region531
    $region530: #{contrast_memory_queue_forward.2} parent=1 // pred_region
      %s898 = sand.u32 1, 7
      %p899 = scmp.eq.s32.totalorder %s898, 0
      %p900 = pneg %p899
      // Predicated region
      $region543: #{contrast_memory_queue_forward.2} parent=530 // pred_check
        _
      $region544: #{contrast_memory_queue_forward.2} parent=530 // pred_check_branch
        %902 = sbr.rel (%p899) target = $region546
      $region545: #{contrast_memory_queue_forward.2} parent=530 // pred_region
        %s903 = sand.u32 1, 7
        %s904 = ssub.s32 1, %s903
        %s905 = scalar_lea.vmem [#allocation3], %s904
        %s906 = ssub.s32 1, %s903
        %s907 = scalar_lea.vmem %s878, %s906
        %s908 = sshllo.u32 0, %s903
        loop: start=0, step=1, limit=1
        $region547: #{contrast_memory_queue_forward.2} parent=545 // loop_pre_header
          _
        $region548: #{contrast_memory_queue_forward.2} parent=545 // loop_header
          %s910 = sphi 0, %s914
          %p911 = scmp.ge.s32.totalorder %s910, 1
          %s915 = sphi %s905, %s905
          %s916 = sphi %s907, %s907
        $region549: #{contrast_memory_queue_forward.2} parent=545 // loop_header_branch
          %913 = sbr.rel (%p911) target = $region553
        $region550: #{contrast_memory_queue_forward.2} parent=545 // loop_body
          %v917 = vld [vmem:[%s915] sm:%s908]
          %918 = vst [vmem:[%s916] sm:%s908] %v917
        $region551: #{contrast_memory_queue_forward.2} parent=545 // loop_footer
          %s914 = sadd.s32 1, %s910
        $region552: #{contrast_memory_queue_forward.2} parent=545 // loop_footer_branch
          %909 = sbr.rel target = $region548
        $region553: #{contrast_memory_queue_forward.2} parent=545 // loop_exit
          _
      $region546: #{contrast_memory_queue_forward.2} parent=530 // pred_fallthru
        _
    $region531: #{contrast_memory_queue_forward.2} parent=1 // pred_fallthru
      _
    // Predicated region
    $region532: #{contrast_memory_queue_forward.2} parent=1 // pred_check
      %p884 = pneg %p880
    $region533: #{contrast_memory_queue_forward.2} parent=1 // pred_check_branch
      %886 = sbr.rel (%p884) target = $region535
    $region534: #{contrast_memory_queue_forward.2} parent=1 // pred_region
      %s887 = sshllo.u32 0, 1
      loop: start=0, step=1, limit=1
      $region536: #{contrast_memory_queue_forward.2} parent=534 // loop_pre_header
        _
      $region537: #{contrast_memory_queue_forward.2} parent=534 // loop_header
        %s889 = sphi 0, %s893
        %p890 = scmp.ge.s32.totalorder %s889, 1
        %s894 = sphi [#allocation3], [#allocation3]
        %s895 = sphi %s878, %s878
      $region538: #{contrast_memory_queue_forward.2} parent=534 // loop_header_branch
        %892 = sbr.rel (%p890) target = $region542
      $region539: #{contrast_memory_queue_forward.2} parent=534 // loop_body
        %v896 = vld [vmem:[%s894] sm:%s887]
        %897 = vst [vmem:[%s895] sm:%s887] %v896
      $region540: #{contrast_memory_queue_forward.2} parent=534 // loop_footer
        %s893 = sadd.s32 1, %s889
      $region541: #{contrast_memory_queue_forward.2} parent=534 // loop_footer_branch
        %888 = sbr.rel target = $region537
      $region542: #{contrast_memory_queue_forward.2} parent=534 // loop_exit
        _
    $region535: #{contrast_memory_queue_forward.2} parent=1 // pred_fallthru
      _
    // Predicated region
    $region554: #{contrast_memory_queue_forward.2} parent=1 // pred_check
      _
    $region555: #{contrast_memory_queue_forward.2} parent=1 // pred_check_branch
      %921 = sbr.rel (0) target = $region557
    $region556: #{contrast_memory_queue_forward.2} parent=1 // pred_region
      %922 = vsyncadd %s78, 16
    $region557: #{contrast_memory_queue_forward.2} parent=1 // pred_fallthru
      _
    %s923 = sld [smem:[#allocation5 + $0x1]]
    %s924 = scalar_lea.vmem %s5, %s923
    %p926 = scmp.lt.u32.totalorder 1, 8
    %p927 = pneg %p926
    // Predicated region
    $region558: #{contrast_memory_queue_forward.2} parent=1 // pred_check
      _
    $region559: #{contrast_memory_queue_forward.2} parent=1 // pred_check_branch
      %929 = sbr.rel (%p926) target = $region561
    $region560: #{contrast_memory_queue_forward.2} parent=1 // pred_region
      %s944 = sand.u32 1, 7
      %p945 = scmp.eq.s32.totalorder %s944, 0
      %p946 = pneg %p945
      // Predicated region
      $region573: #{contrast_memory_queue_forward.2} parent=560 // pred_check
        _
      $region574: #{contrast_memory_queue_forward.2} parent=560 // pred_check_branch
        %948 = sbr.rel (%p945) target = $region576
      $region575: #{contrast_memory_queue_forward.2} parent=560 // pred_region
        %s949 = sand.u32 1, 7
        %s950 = ssub.s32 1, %s949
        %s951 = scalar_lea.vmem %s125, %s950 [#allocation2]
        %s952 = ssub.s32 1, %s949
        %s953 = scalar_lea.vmem %s924, %s952
        %s954 = sshllo.u32 0, %s949
        loop: start=0, step=1, limit=1
        $region577: #{contrast_memory_queue_forward.2} parent=575 // loop_pre_header
          _
        $region578: #{contrast_memory_queue_forward.2} parent=575 // loop_header
          %s956 = sphi 0, %s960
          %p957 = scmp.ge.s32.totalorder %s956, 1
          %s961 = sphi %s951, %s951
          %s962 = sphi %s953, %s953
        $region579: #{contrast_memory_queue_forward.2} parent=575 // loop_header_branch
          %959 = sbr.rel (%p957) target = $region583
        $region580: #{contrast_memory_queue_forward.2} parent=575 // loop_body
          %v963 = vld [vmem:[%s961] sm:%s954]
          %964 = vst [vmem:[%s962] sm:%s954] %v963
        $region581: #{contrast_memory_queue_forward.2} parent=575 // loop_footer
          %s960 = sadd.s32 1, %s956
        $region582: #{contrast_memory_queue_forward.2} parent=575 // loop_footer_branch
          %955 = sbr.rel target = $region578
        $region583: #{contrast_memory_queue_forward.2} parent=575 // loop_exit
          _
      $region576: #{contrast_memory_queue_forward.2} parent=560 // pred_fallthru
        _
    $region561: #{contrast_memory_queue_forward.2} parent=1 // pred_fallthru
      _
    // Predicated region
    $region562: #{contrast_memory_queue_forward.2} parent=1 // pred_check
      %p930 = pneg %p926
    $region563: #{contrast_memory_queue_forward.2} parent=1 // pred_check_branch
      %932 = sbr.rel (%p930) target = $region565
    $region564: #{contrast_memory_queue_forward.2} parent=1 // pred_region
      %s933 = sshllo.u32 0, 1
      loop: start=0, step=1, limit=1
      $region566: #{contrast_memory_queue_forward.2} parent=564 // loop_pre_header
        _
      $region567: #{contrast_memory_queue_forward.2} parent=564 // loop_header
        %s935 = sphi 0, %s939
        %p936 = scmp.ge.s32.totalorder %s935, 1
        %s940 = sphi %s125, %s125
        %s941 = sphi %s924, %s924
      $region568: #{contrast_memory_queue_forward.2} parent=564 // loop_header_branch
        %938 = sbr.rel (%p936) target = $region572
      $region569: #{contrast_memory_queue_forward.2} parent=564 // loop_body
        %v942 = vld [vmem:[%s940] sm:%s933]
        %943 = vst [vmem:[%s941] sm:%s933] %v942
      $region570: #{contrast_memory_queue_forward.2} parent=564 // loop_footer
        %s939 = sadd.s32 1, %s935
      $region571: #{contrast_memory_queue_forward.2} parent=564 // loop_footer_branch
        %934 = sbr.rel target = $region567
      $region572: #{contrast_memory_queue_forward.2} parent=564 // loop_exit
        _
    $region565: #{contrast_memory_queue_forward.2} parent=1 // pred_fallthru
      _
    // Predicated region
    $region584: #{contrast_memory_queue_forward.2} parent=1 // pred_check
      _
    $region585: #{contrast_memory_queue_forward.2} parent=1 // pred_check_branch
      %967 = sbr.rel (0) target = $region587
    $region586: #{contrast_memory_queue_forward.2} parent=1 // pred_region
      %968 = vsyncadd [#allocation4], 16
    $region587: #{contrast_memory_queue_forward.2} parent=1 // pred_fallthru
      _
    %s969 = scalar_lea.vmem %s6, %s923
    %p971 = scmp.lt.u32.totalorder 1, 8
    %p972 = pneg %p971
    // Predicated region
    $region588: #{contrast_memory_queue_forward.2} parent=1 // pred_check
      _
    $region589: #{contrast_memory_queue_forward.2} parent=1 // pred_check_branch
      %974 = sbr.rel (%p971) target = $region591
    $region590: #{contrast_memory_queue_forward.2} parent=1 // pred_region
      %s989 = sand.u32 1, 7
      %p990 = scmp.eq.s32.totalorder %s989, 0
      %p991 = pneg %p990
      // Predicated region
      $region603: #{contrast_memory_queue_forward.2} parent=590 // pred_check
        _
      $region604: #{contrast_memory_queue_forward.2} parent=590 // pred_check_branch
        %993 = sbr.rel (%p990) target = $region606
      $region605: #{contrast_memory_queue_forward.2} parent=590 // pred_region
        %s994 = sand.u32 1, 7
        %s995 = ssub.s32 1, %s994
        %s996 = scalar_lea.vmem %s171, %s995 [#allocation3]
        %s997 = ssub.s32 1, %s994
        %s998 = scalar_lea.vmem %s969, %s997
        %s999 = sshllo.u32 0, %s994
        loop: start=0, step=1, limit=1
        $region607: #{contrast_memory_queue_forward.2} parent=605 // loop_pre_header
          _
        $region608: #{contrast_memory_queue_forward.2} parent=605 // loop_header
          %s1001 = sphi 0, %s1005
          %p1002 = scmp.ge.s32.totalorder %s1001, 1
          %s1006 = sphi %s996, %s996
          %s1007 = sphi %s998, %s998
        $region609: #{contrast_memory_queue_forward.2} parent=605 // loop_header_branch
          %1004 = sbr.rel (%p1002) target = $region613
        $region610: #{contrast_memory_queue_forward.2} parent=605 // loop_body
          %v1008 = vld [vmem:[%s1006] sm:%s999]
          %1009 = vst [vmem:[%s1007] sm:%s999] %v1008
        $region611: #{contrast_memory_queue_forward.2} parent=605 // loop_footer
          %s1005 = sadd.s32 1, %s1001
        $region612: #{contrast_memory_queue_forward.2} parent=605 // loop_footer_branch
          %1000 = sbr.rel target = $region608
        $region613: #{contrast_memory_queue_forward.2} parent=605 // loop_exit
          _
      $region606: #{contrast_memory_queue_forward.2} parent=590 // pred_fallthru
        _
    $region591: #{contrast_memory_queue_forward.2} parent=1 // pred_fallthru
      _
    // Predicated region
    $region592: #{contrast_memory_queue_forward.2} parent=1 // pred_check
      %p975 = pneg %p971
    $region593: #{contrast_memory_queue_forward.2} parent=1 // pred_check_branch
      %977 = sbr.rel (%p975) target = $region595
    $region594: #{contrast_memory_queue_forward.2} parent=1 // pred_region
      %s978 = sshllo.u32 0, 1
      loop: start=0, step=1, limit=1
      $region596: #{contrast_memory_queue_forward.2} parent=594 // loop_pre_header
        _
      $region597: #{contrast_memory_queue_forward.2} parent=594 // loop_header
        %s980 = sphi 0, %s984
        %p981 = scmp.ge.s32.totalorder %s980, 1
        %s985 = sphi %s171, %s171
        %s986 = sphi %s969, %s969
      $region598: #{contrast_memory_queue_forward.2} parent=594 // loop_header_branch
        %983 = sbr.rel (%p981) target = $region602
      $region599: #{contrast_memory_queue_forward.2} parent=594 // loop_body
        %v987 = vld [vmem:[%s985] sm:%s978]
        %988 = vst [vmem:[%s986] sm:%s978] %v987
      $region600: #{contrast_memory_queue_forward.2} parent=594 // loop_footer
        %s984 = sadd.s32 1, %s980
      $region601: #{contrast_memory_queue_forward.2} parent=594 // loop_footer_branch
        %979 = sbr.rel target = $region597
      $region602: #{contrast_memory_queue_forward.2} parent=594 // loop_exit
        _
    $region595: #{contrast_memory_queue_forward.2} parent=1 // pred_fallthru
      _
    // Predicated region
    $region614: #{contrast_memory_queue_forward.2} parent=1 // pred_check
      _
    $region615: #{contrast_memory_queue_forward.2} parent=1 // pred_check_branch
      %1012 = sbr.rel (0) target = $region617
    $region616: #{contrast_memory_queue_forward.2} parent=1 // pred_region
      %1013 = vsyncadd %s78, 16
    $region617: #{contrast_memory_queue_forward.2} parent=1 // pred_fallthru
      _
    %s1014 = sld [smem:[#allocation5 + $0x2]]
    %s1015 = scalar_lea.vmem %s5, %s1014
    %p1017 = scmp.lt.u32.totalorder 1, 8
    %p1018 = pneg %p1017
    // Predicated region
    $region618: #{contrast_memory_queue_forward.2} parent=1 // pred_check
      _
    $region619: #{contrast_memory_queue_forward.2} parent=1 // pred_check_branch
      %1020 = sbr.rel (%p1017) target = $region621
    $region620: #{contrast_memory_queue_forward.2} parent=1 // pred_region
      %s1035 = sand.u32 1, 7
      %p1036 = scmp.eq.s32.totalorder %s1035, 0
      %p1037 = pneg %p1036
      // Predicated region
      $region633: #{contrast_memory_queue_forward.2} parent=620 // pred_check
        _
      $region634: #{contrast_memory_queue_forward.2} parent=620 // pred_check_branch
        %1039 = sbr.rel (%p1036) target = $region636
      $region635: #{contrast_memory_queue_forward.2} parent=620 // pred_region
        %s1040 = sand.u32 1, 7
        %s1041 = ssub.s32 1, %s1040
        %s1042 = scalar_lea.vmem %s218, %s1041 [#allocation2]
        %s1043 = ssub.s32 1, %s1040
        %s1044 = scalar_lea.vmem %s1015, %s1043
        %s1045 = sshllo.u32 0, %s1040
        loop: start=0, step=1, limit=1
        $region637: #{contrast_memory_queue_forward.2} parent=635 // loop_pre_header
          _
        $region638: #{contrast_memory_queue_forward.2} parent=635 // loop_header
          %s1047 = sphi 0, %s1051
          %p1048 = scmp.ge.s32.totalorder %s1047, 1
          %s1052 = sphi %s1042, %s1042
          %s1053 = sphi %s1044, %s1044
        $region639: #{contrast_memory_queue_forward.2} parent=635 // loop_header_branch
          %1050 = sbr.rel (%p1048) target = $region643
        $region640: #{contrast_memory_queue_forward.2} parent=635 // loop_body
          %v1054 = vld [vmem:[%s1052] sm:%s1045]
          %1055 = vst [vmem:[%s1053] sm:%s1045] %v1054
        $region641: #{contrast_memory_queue_forward.2} parent=635 // loop_footer
          %s1051 = sadd.s32 1, %s1047
        $region642: #{contrast_memory_queue_forward.2} parent=635 // loop_footer_branch
          %1046 = sbr.rel target = $region638
        $region643: #{contrast_memory_queue_forward.2} parent=635 // loop_exit
          _
      $region636: #{contrast_memory_queue_forward.2} parent=620 // pred_fallthru
        _
    $region621: #{contrast_memory_queue_forward.2} parent=1 // pred_fallthru
      _
    // Predicated region
    $region622: #{contrast_memory_queue_forward.2} parent=1 // pred_check
      %p1021 = pneg %p1017
    $region623: #{contrast_memory_queue_forward.2} parent=1 // pred_check_branch
      %1023 = sbr.rel (%p1021) target = $region625
    $region624: #{contrast_memory_queue_forward.2} parent=1 // pred_region
      %s1024 = sshllo.u32 0, 1
      loop: start=0, step=1, limit=1
      $region626: #{contrast_memory_queue_forward.2} parent=624 // loop_pre_header
        _
      $region627: #{contrast_memory_queue_forward.2} parent=624 // loop_header
        %s1026 = sphi 0, %s1030
        %p1027 = scmp.ge.s32.totalorder %s1026, 1
        %s1031 = sphi %s218, %s218
        %s1032 = sphi %s1015, %s1015
      $region628: #{contrast_memory_queue_forward.2} parent=624 // loop_header_branch
        %1029 = sbr.rel (%p1027) target = $region632
      $region629: #{contrast_memory_queue_forward.2} parent=624 // loop_body
        %v1033 = vld [vmem:[%s1031] sm:%s1024]
        %1034 = vst [vmem:[%s1032] sm:%s1024] %v1033
      $region630: #{contrast_memory_queue_forward.2} parent=624 // loop_footer
        %s1030 = sadd.s32 1, %s1026
      $region631: #{contrast_memory_queue_forward.2} parent=624 // loop_footer_branch
        %1025 = sbr.rel target = $region627
      $region632: #{contrast_memory_queue_forward.2} parent=624 // loop_exit
        _
    $region625: #{contrast_memory_queue_forward.2} parent=1 // pred_fallthru
      _
    // Predicated region
    $region644: #{contrast_memory_queue_forward.2} parent=1 // pred_check
      _
    $region645: #{contrast_memory_queue_forward.2} parent=1 // pred_check_branch
      %1058 = sbr.rel (0) target = $region647
    $region646: #{contrast_memory_queue_forward.2} parent=1 // pred_region
      %1059 = vsyncadd [#allocation4], 16
    $region647: #{contrast_memory_queue_forward.2} parent=1 // pred_fallthru
      _
    %s1060 = scalar_lea.vmem %s6, %s1014
    %p1062 = scmp.lt.u32.totalorder 1, 8
    %p1063 = pneg %p1062
    // Predicated region
    $region648: #{contrast_memory_queue_forward.2} parent=1 // pred_check
      _
    $region649: #{contrast_memory_queue_forward.2} parent=1 // pred_check_branch
      %1065 = sbr.rel (%p1062) target = $region651
    $region650: #{contrast_memory_queue_forward.2} parent=1 // pred_region
      %s1080 = sand.u32 1, 7
      %p1081 = scmp.eq.s32.totalorder %s1080, 0
      %p1082 = pneg %p1081
      // Predicated region
      $region663: #{contrast_memory_queue_forward.2} parent=650 // pred_check
        _
      $region664: #{contrast_memory_queue_forward.2} parent=650 // pred_check_branch
        %1084 = sbr.rel (%p1081) target = $region666
      $region665: #{contrast_memory_queue_forward.2} parent=650 // pred_region
        %s1085 = sand.u32 1, 7
        %s1086 = ssub.s32 1, %s1085
        %s1087 = scalar_lea.vmem %s264, %s1086 [#allocation3]
        %s1088 = ssub.s32 1, %s1085
        %s1089 = scalar_lea.vmem %s1060, %s1088
        %s1090 = sshllo.u32 0, %s1085
        loop: start=0, step=1, limit=1
        $region667: #{contrast_memory_queue_forward.2} parent=665 // loop_pre_header
          _
        $region668: #{contrast_memory_queue_forward.2} parent=665 // loop_header
          %s1092 = sphi 0, %s1096
          %p1093 = scmp.ge.s32.totalorder %s1092, 1
          %s1097 = sphi %s1087, %s1087
          %s1098 = sphi %s1089, %s1089
        $region669: #{contrast_memory_queue_forward.2} parent=665 // loop_header_branch
          %1095 = sbr.rel (%p1093) target = $region673
        $region670: #{contrast_memory_queue_forward.2} parent=665 // loop_body
          %v1099 = vld [vmem:[%s1097] sm:%s1090]
          %1100 = vst [vmem:[%s1098] sm:%s1090] %v1099
        $region671: #{contrast_memory_queue_forward.2} parent=665 // loop_footer
          %s1096 = sadd.s32 1, %s1092
        $region672: #{contrast_memory_queue_forward.2} parent=665 // loop_footer_branch
          %1091 = sbr.rel target = $region668
        $region673: #{contrast_memory_queue_forward.2} parent=665 // loop_exit
          _
      $region666: #{contrast_memory_queue_forward.2} parent=650 // pred_fallthru
        _
    $region651: #{contrast_memory_queue_forward.2} parent=1 // pred_fallthru
      _
    // Predicated region
    $region652: #{contrast_memory_queue_forward.2} parent=1 // pred_check
      %p1066 = pneg %p1062
    $region653: #{contrast_memory_queue_forward.2} parent=1 // pred_check_branch
      %1068 = sbr.rel (%p1066) target = $region655
    $region654: #{contrast_memory_queue_forward.2} parent=1 // pred_region
      %s1069 = sshllo.u32 0, 1
      loop: start=0, step=1, limit=1
      $region656: #{contrast_memory_queue_forward.2} parent=654 // loop_pre_header
        _
      $region657: #{contrast_memory_queue_forward.2} parent=654 // loop_header
        %s1071 = sphi 0, %s1075
        %p1072 = scmp.ge.s32.totalorder %s1071, 1
        %s1076 = sphi %s264, %s264
        %s1077 = sphi %s1060, %s1060
      $region658: #{contrast_memory_queue_forward.2} parent=654 // loop_header_branch
        %1074 = sbr.rel (%p1072) target = $region662
      $region659: #{contrast_memory_queue_forward.2} parent=654 // loop_body
        %v1078 = vld [vmem:[%s1076] sm:%s1069]
        %1079 = vst [vmem:[%s1077] sm:%s1069] %v1078
      $region660: #{contrast_memory_queue_forward.2} parent=654 // loop_footer
        %s1075 = sadd.s32 1, %s1071
      $region661: #{contrast_memory_queue_forward.2} parent=654 // loop_footer_branch
        %1070 = sbr.rel target = $region657
      $region662: #{contrast_memory_queue_forward.2} parent=654 // loop_exit
        _
    $region655: #{contrast_memory_queue_forward.2} parent=1 // pred_fallthru
      _
    // Predicated region
    $region674: #{contrast_memory_queue_forward.2} parent=1 // pred_check
      _
    $region675: #{contrast_memory_queue_forward.2} parent=1 // pred_check_branch
      %1103 = sbr.rel (0) target = $region677
    $region676: #{contrast_memory_queue_forward.2} parent=1 // pred_region
      %1104 = vsyncadd %s78, 16
    $region677: #{contrast_memory_queue_forward.2} parent=1 // pred_fallthru
      _
    %s1105 = sld [smem:[#allocation5 + $0x3]]
    %s1106 = scalar_lea.vmem %s5, %s1105
    %p1108 = scmp.lt.u32.totalorder 1, 8
    %p1109 = pneg %p1108
    // Predicated region
    $region678: #{contrast_memory_queue_forward.2} parent=1 // pred_check
      _
    $region679: #{contrast_memory_queue_forward.2} parent=1 // pred_check_branch
      %1111 = sbr.rel (%p1108) target = $region681
    $region680: #{contrast_memory_queue_forward.2} parent=1 // pred_region
      %s1126 = sand.u32 1, 7
      %p1127 = scmp.eq.s32.totalorder %s1126, 0
      %p1128 = pneg %p1127
      // Predicated region
      $region693: #{contrast_memory_queue_forward.2} parent=680 // pred_check
        _
      $region694: #{contrast_memory_queue_forward.2} parent=680 // pred_check_branch
        %1130 = sbr.rel (%p1127) target = $region696
      $region695: #{contrast_memory_queue_forward.2} parent=680 // pred_region
        %s1131 = sand.u32 1, 7
        %s1132 = ssub.s32 1, %s1131
        %s1133 = scalar_lea.vmem %s311, %s1132 [#allocation2]
        %s1134 = ssub.s32 1, %s1131
        %s1135 = scalar_lea.vmem %s1106, %s1134
        %s1136 = sshllo.u32 0, %s1131
        loop: start=0, step=1, limit=1
        $region697: #{contrast_memory_queue_forward.2} parent=695 // loop_pre_header
          _
        $region698: #{contrast_memory_queue_forward.2} parent=695 // loop_header
          %s1138 = sphi 0, %s1142
          %p1139 = scmp.ge.s32.totalorder %s1138, 1
          %s1143 = sphi %s1133, %s1133
          %s1144 = sphi %s1135, %s1135
        $region699: #{contrast_memory_queue_forward.2} parent=695 // loop_header_branch
          %1141 = sbr.rel (%p1139) target = $region703
        $region700: #{contrast_memory_queue_forward.2} parent=695 // loop_body
          %v1145 = vld [vmem:[%s1143] sm:%s1136]
          %1146 = vst [vmem:[%s1144] sm:%s1136] %v1145
        $region701: #{contrast_memory_queue_forward.2} parent=695 // loop_footer
          %s1142 = sadd.s32 1, %s1138
        $region702: #{contrast_memory_queue_forward.2} parent=695 // loop_footer_branch
          %1137 = sbr.rel target = $region698
        $region703: #{contrast_memory_queue_forward.2} parent=695 // loop_exit
          _
      $region696: #{contrast_memory_queue_forward.2} parent=680 // pred_fallthru
        _
    $region681: #{contrast_memory_queue_forward.2} parent=1 // pred_fallthru
      _
    // Predicated region
    $region682: #{contrast_memory_queue_forward.2} parent=1 // pred_check
      %p1112 = pneg %p1108
    $region683: #{contrast_memory_queue_forward.2} parent=1 // pred_check_branch
      %1114 = sbr.rel (%p1112) target = $region685
    $region684: #{contrast_memory_queue_forward.2} parent=1 // pred_region
      %s1115 = sshllo.u32 0, 1
      loop: start=0, step=1, limit=1
      $region686: #{contrast_memory_queue_forward.2} parent=684 // loop_pre_header
        _
      $region687: #{contrast_memory_queue_forward.2} parent=684 // loop_header
        %s1117 = sphi 0, %s1121
        %p1118 = scmp.ge.s32.totalorder %s1117, 1
        %s1122 = sphi %s311, %s311
        %s1123 = sphi %s1106, %s1106
      $region688: #{contrast_memory_queue_forward.2} parent=684 // loop_header_branch
        %1120 = sbr.rel (%p1118) target = $region692
      $region689: #{contrast_memory_queue_forward.2} parent=684 // loop_body
        %v1124 = vld [vmem:[%s1122] sm:%s1115]
        %1125 = vst [vmem:[%s1123] sm:%s1115] %v1124
      $region690: #{contrast_memory_queue_forward.2} parent=684 // loop_footer
        %s1121 = sadd.s32 1, %s1117
      $region691: #{contrast_memory_queue_forward.2} parent=684 // loop_footer_branch
        %1116 = sbr.rel target = $region687
      $region692: #{contrast_memory_queue_forward.2} parent=684 // loop_exit
        _
    $region685: #{contrast_memory_queue_forward.2} parent=1 // pred_fallthru
      _
    // Predicated region
    $region704: #{contrast_memory_queue_forward.2} parent=1 // pred_check
      _
    $region705: #{contrast_memory_queue_forward.2} parent=1 // pred_check_branch
      %1149 = sbr.rel (0) target = $region707
    $region706: #{contrast_memory_queue_forward.2} parent=1 // pred_region
      %1150 = vsyncadd [#allocation4], 16
    $region707: #{contrast_memory_queue_forward.2} parent=1 // pred_fallthru
      _
    %s1151 = scalar_lea.vmem %s6, %s1105
    %p1153 = scmp.lt.u32.totalorder 1, 8
    %p1154 = pneg %p1153
    // Predicated region
    $region708: #{contrast_memory_queue_forward.2} parent=1 // pred_check
      _
    $region709: #{contrast_memory_queue_forward.2} parent=1 // pred_check_branch
      %1156 = sbr.rel (%p1153) target = $region711
    $region710: #{contrast_memory_queue_forward.2} parent=1 // pred_region
      %s1171 = sand.u32 1, 7
      %p1172 = scmp.eq.s32.totalorder %s1171, 0
      %p1173 = pneg %p1172
      // Predicated region
      $region723: #{contrast_memory_queue_forward.2} parent=710 // pred_check
        _
      $region724: #{contrast_memory_queue_forward.2} parent=710 // pred_check_branch
        %1175 = sbr.rel (%p1172) target = $region726
      $region725: #{contrast_memory_queue_forward.2} parent=710 // pred_region
        %s1176 = sand.u32 1, 7
        %s1177 = ssub.s32 1, %s1176
        %s1178 = scalar_lea.vmem %s357, %s1177 [#allocation3]
        %s1179 = ssub.s32 1, %s1176
        %s1180 = scalar_lea.vmem %s1151, %s1179
        %s1181 = sshllo.u32 0, %s1176
        loop: start=0, step=1, limit=1
        $region727: #{contrast_memory_queue_forward.2} parent=725 // loop_pre_header
          _
        $region728: #{contrast_memory_queue_forward.2} parent=725 // loop_header
          %s1183 = sphi 0, %s1187
          %p1184 = scmp.ge.s32.totalorder %s1183, 1
          %s1188 = sphi %s1178, %s1178
          %s1189 = sphi %s1180, %s1180
        $region729: #{contrast_memory_queue_forward.2} parent=725 // loop_header_branch
          %1186 = sbr.rel (%p1184) target = $region733
        $region730: #{contrast_memory_queue_forward.2} parent=725 // loop_body
          %v1190 = vld [vmem:[%s1188] sm:%s1181]
          %1191 = vst [vmem:[%s1189] sm:%s1181] %v1190
        $region731: #{contrast_memory_queue_forward.2} parent=725 // loop_footer
          %s1187 = sadd.s32 1, %s1183
        $region732: #{contrast_memory_queue_forward.2} parent=725 // loop_footer_branch
          %1182 = sbr.rel target = $region728
        $region733: #{contrast_memory_queue_forward.2} parent=725 // loop_exit
          _
      $region726: #{contrast_memory_queue_forward.2} parent=710 // pred_fallthru
        _
    $region711: #{contrast_memory_queue_forward.2} parent=1 // pred_fallthru
      _
    // Predicated region
    $region712: #{contrast_memory_queue_forward.2} parent=1 // pred_check
      %p1157 = pneg %p1153
    $region713: #{contrast_memory_queue_forward.2} parent=1 // pred_check_branch
      %1159 = sbr.rel (%p1157) target = $region715
    $region714: #{contrast_memory_queue_forward.2} parent=1 // pred_region
      %s1160 = sshllo.u32 0, 1
      loop: start=0, step=1, limit=1
      $region716: #{contrast_memory_queue_forward.2} parent=714 // loop_pre_header
        _
      $region717: #{contrast_memory_queue_forward.2} parent=714 // loop_header
        %s1162 = sphi 0, %s1166
        %p1163 = scmp.ge.s32.totalorder %s1162, 1
        %s1167 = sphi %s357, %s357
        %s1168 = sphi %s1151, %s1151
      $region718: #{contrast_memory_queue_forward.2} parent=714 // loop_header_branch
        %1165 = sbr.rel (%p1163) target = $region722
      $region719: #{contrast_memory_queue_forward.2} parent=714 // loop_body
        %v1169 = vld [vmem:[%s1167] sm:%s1160]
        %1170 = vst [vmem:[%s1168] sm:%s1160] %v1169
      $region720: #{contrast_memory_queue_forward.2} parent=714 // loop_footer
        %s1166 = sadd.s32 1, %s1162
      $region721: #{contrast_memory_queue_forward.2} parent=714 // loop_footer_branch
        %1161 = sbr.rel target = $region717
      $region722: #{contrast_memory_queue_forward.2} parent=714 // loop_exit
        _
    $region715: #{contrast_memory_queue_forward.2} parent=1 // pred_fallthru
      _
    // Predicated region
    $region734: #{contrast_memory_queue_forward.2} parent=1 // pred_check
      _
    $region735: #{contrast_memory_queue_forward.2} parent=1 // pred_check_branch
      %1194 = sbr.rel (0) target = $region737
    $region736: #{contrast_memory_queue_forward.2} parent=1 // pred_region
      %1195 = vsyncadd %s78, 16
    $region737: #{contrast_memory_queue_forward.2} parent=1 // pred_fallthru
      _
    %s1196 = sld [smem:[#allocation5 + $0x4]]
    %s1197 = scalar_lea.vmem %s5, %s1196
    %p1199 = scmp.lt.u32.totalorder 1, 8
    %p1200 = pneg %p1199
    // Predicated region
    $region738: #{contrast_memory_queue_forward.2} parent=1 // pred_check
      _
    $region739: #{contrast_memory_queue_forward.2} parent=1 // pred_check_branch
      %1202 = sbr.rel (%p1199) target = $region741
    $region740: #{contrast_memory_queue_forward.2} parent=1 // pred_region
      %s1217 = sand.u32 1, 7
      %p1218 = scmp.eq.s32.totalorder %s1217, 0
      %p1219 = pneg %p1218
      // Predicated region
      $region753: #{contrast_memory_queue_forward.2} parent=740 // pred_check
        _
      $region754: #{contrast_memory_queue_forward.2} parent=740 // pred_check_branch
        %1221 = sbr.rel (%p1218) target = $region756
      $region755: #{contrast_memory_queue_forward.2} parent=740 // pred_region
        %s1222 = sand.u32 1, 7
        %s1223 = ssub.s32 1, %s1222
        %s1224 = scalar_lea.vmem %s404, %s1223 [#allocation2]
        %s1225 = ssub.s32 1, %s1222
        %s1226 = scalar_lea.vmem %s1197, %s1225
        %s1227 = sshllo.u32 0, %s1222
        loop: start=0, step=1, limit=1
        $region757: #{contrast_memory_queue_forward.2} parent=755 // loop_pre_header
          _
        $region758: #{contrast_memory_queue_forward.2} parent=755 // loop_header
          %s1229 = sphi 0, %s1233
          %p1230 = scmp.ge.s32.totalorder %s1229, 1
          %s1234 = sphi %s1224, %s1224
          %s1235 = sphi %s1226, %s1226
        $region759: #{contrast_memory_queue_forward.2} parent=755 // loop_header_branch
          %1232 = sbr.rel (%p1230) target = $region763
        $region760: #{contrast_memory_queue_forward.2} parent=755 // loop_body
          %v1236 = vld [vmem:[%s1234] sm:%s1227]
          %1237 = vst [vmem:[%s1235] sm:%s1227] %v1236
        $region761: #{contrast_memory_queue_forward.2} parent=755 // loop_footer
          %s1233 = sadd.s32 1, %s1229
        $region762: #{contrast_memory_queue_forward.2} parent=755 // loop_footer_branch
          %1228 = sbr.rel target = $region758
        $region763: #{contrast_memory_queue_forward.2} parent=755 // loop_exit
          _
      $region756: #{contrast_memory_queue_forward.2} parent=740 // pred_fallthru
        _
    $region741: #{contrast_memory_queue_forward.2} parent=1 // pred_fallthru
      _
    // Predicated region
    $region742: #{contrast_memory_queue_forward.2} parent=1 // pred_check
      %p1203 = pneg %p1199
    $region743: #{contrast_memory_queue_forward.2} parent=1 // pred_check_branch
      %1205 = sbr.rel (%p1203) target = $region745
    $region744: #{contrast_memory_queue_forward.2} parent=1 // pred_region
      %s1206 = sshllo.u32 0, 1
      loop: start=0, step=1, limit=1
      $region746: #{contrast_memory_queue_forward.2} parent=744 // loop_pre_header
        _
      $region747: #{contrast_memory_queue_forward.2} parent=744 // loop_header
        %s1208 = sphi 0, %s1212
        %p1209 = scmp.ge.s32.totalorder %s1208, 1
        %s1213 = sphi %s404, %s404
        %s1214 = sphi %s1197, %s1197
      $region748: #{contrast_memory_queue_forward.2} parent=744 // loop_header_branch
        %1211 = sbr.rel (%p1209) target = $region752
      $region749: #{contrast_memory_queue_forward.2} parent=744 // loop_body
        %v1215 = vld [vmem:[%s1213] sm:%s1206]
        %1216 = vst [vmem:[%s1214] sm:%s1206] %v1215
      $region750: #{contrast_memory_queue_forward.2} parent=744 // loop_footer
        %s1212 = sadd.s32 1, %s1208
      $region751: #{contrast_memory_queue_forward.2} parent=744 // loop_footer_branch
        %1207 = sbr.rel target = $region747
      $region752: #{contrast_memory_queue_forward.2} parent=744 // loop_exit
        _
    $region745: #{contrast_memory_queue_forward.2} parent=1 // pred_fallthru
      _
    // Predicated region
    $region764: #{contrast_memory_queue_forward.2} parent=1 // pred_check
      _
    $region765: #{contrast_memory_queue_forward.2} parent=1 // pred_check_branch
      %1240 = sbr.rel (0) target = $region767
    $region766: #{contrast_memory_queue_forward.2} parent=1 // pred_region
      %1241 = vsyncadd [#allocation4], 16
    $region767: #{contrast_memory_queue_forward.2} parent=1 // pred_fallthru
      _
    %s1242 = scalar_lea.vmem %s6, %s1196
    %p1244 = scmp.lt.u32.totalorder 1, 8
    %p1245 = pneg %p1244
    // Predicated region
    $region768: #{contrast_memory_queue_forward.2} parent=1 // pred_check
      _
    $region769: #{contrast_memory_queue_forward.2} parent=1 // pred_check_branch
      %1247 = sbr.rel (%p1244) target = $region771
    $region770: #{contrast_memory_queue_forward.2} parent=1 // pred_region
      %s1262 = sand.u32 1, 7
      %p1263 = scmp.eq.s32.totalorder %s1262, 0
      %p1264 = pneg %p1263
      // Predicated region
      $region783: #{contrast_memory_queue_forward.2} parent=770 // pred_check
        _
      $region784: #{contrast_memory_queue_forward.2} parent=770 // pred_check_branch
        %1266 = sbr.rel (%p1263) target = $region786
      $region785: #{contrast_memory_queue_forward.2} parent=770 // pred_region
        %s1267 = sand.u32 1, 7
        %s1268 = ssub.s32 1, %s1267
        %s1269 = scalar_lea.vmem %s450, %s1268 [#allocation3]
        %s1270 = ssub.s32 1, %s1267
        %s1271 = scalar_lea.vmem %s1242, %s1270
        %s1272 = sshllo.u32 0, %s1267
        loop: start=0, step=1, limit=1
        $region787: #{contrast_memory_queue_forward.2} parent=785 // loop_pre_header
          _
        $region788: #{contrast_memory_queue_forward.2} parent=785 // loop_header
          %s1274 = sphi 0, %s1278
          %p1275 = scmp.ge.s32.totalorder %s1274, 1
          %s1279 = sphi %s1269, %s1269
          %s1280 = sphi %s1271, %s1271
        $region789: #{contrast_memory_queue_forward.2} parent=785 // loop_header_branch
          %1277 = sbr.rel (%p1275) target = $region793
        $region790: #{contrast_memory_queue_forward.2} parent=785 // loop_body
          %v1281 = vld [vmem:[%s1279] sm:%s1272]
          %1282 = vst [vmem:[%s1280] sm:%s1272] %v1281
        $region791: #{contrast_memory_queue_forward.2} parent=785 // loop_footer
          %s1278 = sadd.s32 1, %s1274
        $region792: #{contrast_memory_queue_forward.2} parent=785 // loop_footer_branch
          %1273 = sbr.rel target = $region788
        $region793: #{contrast_memory_queue_forward.2} parent=785 // loop_exit
          _
      $region786: #{contrast_memory_queue_forward.2} parent=770 // pred_fallthru
        _
    $region771: #{contrast_memory_queue_forward.2} parent=1 // pred_fallthru
      _
    // Predicated region
    $region772: #{contrast_memory_queue_forward.2} parent=1 // pred_check
      %p1248 = pneg %p1244
    $region773: #{contrast_memory_queue_forward.2} parent=1 // pred_check_branch
      %1250 = sbr.rel (%p1248) target = $region775
    $region774: #{contrast_memory_queue_forward.2} parent=1 // pred_region
      %s1251 = sshllo.u32 0, 1
      loop: start=0, step=1, limit=1
      $region776: #{contrast_memory_queue_forward.2} parent=774 // loop_pre_header
        _
      $region777: #{contrast_memory_queue_forward.2} parent=774 // loop_header
        %s1253 = sphi 0, %s1257
        %p1254 = scmp.ge.s32.totalorder %s1253, 1
        %s1258 = sphi %s450, %s450
        %s1259 = sphi %s1242, %s1242
      $region778: #{contrast_memory_queue_forward.2} parent=774 // loop_header_branch
        %1256 = sbr.rel (%p1254) target = $region782
      $region779: #{contrast_memory_queue_forward.2} parent=774 // loop_body
        %v1260 = vld [vmem:[%s1258] sm:%s1251]
        %1261 = vst [vmem:[%s1259] sm:%s1251] %v1260
      $region780: #{contrast_memory_queue_forward.2} parent=774 // loop_footer
        %s1257 = sadd.s32 1, %s1253
      $region781: #{contrast_memory_queue_forward.2} parent=774 // loop_footer_branch
        %1252 = sbr.rel target = $region777
      $region782: #{contrast_memory_queue_forward.2} parent=774 // loop_exit
        _
    $region775: #{contrast_memory_queue_forward.2} parent=1 // pred_fallthru
      _
    // Predicated region
    $region794: #{contrast_memory_queue_forward.2} parent=1 // pred_check
      _
    $region795: #{contrast_memory_queue_forward.2} parent=1 // pred_check_branch
      %1285 = sbr.rel (0) target = $region797
    $region796: #{contrast_memory_queue_forward.2} parent=1 // pred_region
      %1286 = vsyncadd %s78, 16
    $region797: #{contrast_memory_queue_forward.2} parent=1 // pred_fallthru
      _
    %s1287 = sld [smem:[#allocation5 + $0x5]]
    %s1288 = scalar_lea.vmem %s5, %s1287
    %p1290 = scmp.lt.u32.totalorder 1, 8
    %p1291 = pneg %p1290
    // Predicated region
    $region798: #{contrast_memory_queue_forward.2} parent=1 // pred_check
      _
    $region799: #{contrast_memory_queue_forward.2} parent=1 // pred_check_branch
      %1293 = sbr.rel (%p1290) target = $region801
    $region800: #{contrast_memory_queue_forward.2} parent=1 // pred_region
      %s1308 = sand.u32 1, 7
      %p1309 = scmp.eq.s32.totalorder %s1308, 0
      %p1310 = pneg %p1309
      // Predicated region
      $region813: #{contrast_memory_queue_forward.2} parent=800 // pred_check
        _
      $region814: #{contrast_memory_queue_forward.2} parent=800 // pred_check_branch
        %1312 = sbr.rel (%p1309) target = $region816
      $region815: #{contrast_memory_queue_forward.2} parent=800 // pred_region
        %s1313 = sand.u32 1, 7
        %s1314 = ssub.s32 1, %s1313
        %s1315 = scalar_lea.vmem %s497, %s1314 [#allocation2]
        %s1316 = ssub.s32 1, %s1313
        %s1317 = scalar_lea.vmem %s1288, %s1316
        %s1318 = sshllo.u32 0, %s1313
        loop: start=0, step=1, limit=1
        $region817: #{contrast_memory_queue_forward.2} parent=815 // loop_pre_header
          _
        $region818: #{contrast_memory_queue_forward.2} parent=815 // loop_header
          %s1320 = sphi 0, %s1324
          %p1321 = scmp.ge.s32.totalorder %s1320, 1
          %s1325 = sphi %s1315, %s1315
          %s1326 = sphi %s1317, %s1317
        $region819: #{contrast_memory_queue_forward.2} parent=815 // loop_header_branch
          %1323 = sbr.rel (%p1321) target = $region823
        $region820: #{contrast_memory_queue_forward.2} parent=815 // loop_body
          %v1327 = vld [vmem:[%s1325] sm:%s1318]
          %1328 = vst [vmem:[%s1326] sm:%s1318] %v1327
        $region821: #{contrast_memory_queue_forward.2} parent=815 // loop_footer
          %s1324 = sadd.s32 1, %s1320
        $region822: #{contrast_memory_queue_forward.2} parent=815 // loop_footer_branch
          %1319 = sbr.rel target = $region818
        $region823: #{contrast_memory_queue_forward.2} parent=815 // loop_exit
          _
      $region816: #{contrast_memory_queue_forward.2} parent=800 // pred_fallthru
        _
    $region801: #{contrast_memory_queue_forward.2} parent=1 // pred_fallthru
      _
    // Predicated region
    $region802: #{contrast_memory_queue_forward.2} parent=1 // pred_check
      %p1294 = pneg %p1290
    $region803: #{contrast_memory_queue_forward.2} parent=1 // pred_check_branch
      %1296 = sbr.rel (%p1294) target = $region805
    $region804: #{contrast_memory_queue_forward.2} parent=1 // pred_region
      %s1297 = sshllo.u32 0, 1
      loop: start=0, step=1, limit=1
      $region806: #{contrast_memory_queue_forward.2} parent=804 // loop_pre_header
        _
      $region807: #{contrast_memory_queue_forward.2} parent=804 // loop_header
        %s1299 = sphi 0, %s1303
        %p1300 = scmp.ge.s32.totalorder %s1299, 1
        %s1304 = sphi %s497, %s497
        %s1305 = sphi %s1288, %s1288
      $region808: #{contrast_memory_queue_forward.2} parent=804 // loop_header_branch
        %1302 = sbr.rel (%p1300) target = $region812
      $region809: #{contrast_memory_queue_forward.2} parent=804 // loop_body
        %v1306 = vld [vmem:[%s1304] sm:%s1297]
        %1307 = vst [vmem:[%s1305] sm:%s1297] %v1306
      $region810: #{contrast_memory_queue_forward.2} parent=804 // loop_footer
        %s1303 = sadd.s32 1, %s1299
      $region811: #{contrast_memory_queue_forward.2} parent=804 // loop_footer_branch
        %1298 = sbr.rel target = $region807
      $region812: #{contrast_memory_queue_forward.2} parent=804 // loop_exit
        _
    $region805: #{contrast_memory_queue_forward.2} parent=1 // pred_fallthru
      _
    // Predicated region
    $region824: #{contrast_memory_queue_forward.2} parent=1 // pred_check
      _
    $region825: #{contrast_memory_queue_forward.2} parent=1 // pred_check_branch
      %1331 = sbr.rel (0) target = $region827
    $region826: #{contrast_memory_queue_forward.2} parent=1 // pred_region
      %1332 = vsyncadd [#allocation4], 16
    $region827: #{contrast_memory_queue_forward.2} parent=1 // pred_fallthru
      _
    %s1333 = scalar_lea.vmem %s6, %s1287
    %p1335 = scmp.lt.u32.totalorder 1, 8
    %p1336 = pneg %p1335
    // Predicated region
    $region828: #{contrast_memory_queue_forward.2} parent=1 // pred_check
      _
    $region829: #{contrast_memory_queue_forward.2} parent=1 // pred_check_branch
      %1338 = sbr.rel (%p1335) target = $region831
    $region830: #{contrast_memory_queue_forward.2} parent=1 // pred_region
      %s1353 = sand.u32 1, 7
      %p1354 = scmp.eq.s32.totalorder %s1353, 0
      %p1355 = pneg %p1354
      // Predicated region
      $region843: #{contrast_memory_queue_forward.2} parent=830 // pred_check
        _
      $region844: #{contrast_memory_queue_forward.2} parent=830 // pred_check_branch
        %1357 = sbr.rel (%p1354) target = $region846
      $region845: #{contrast_memory_queue_forward.2} parent=830 // pred_region
        %s1358 = sand.u32 1, 7
        %s1359 = ssub.s32 1, %s1358
        %s1360 = scalar_lea.vmem %s543, %s1359 [#allocation3]
        %s1361 = ssub.s32 1, %s1358
        %s1362 = scalar_lea.vmem %s1333, %s1361
        %s1363 = sshllo.u32 0, %s1358
        loop: start=0, step=1, limit=1
        $region847: #{contrast_memory_queue_forward.2} parent=845 // loop_pre_header
          _
        $region848: #{contrast_memory_queue_forward.2} parent=845 // loop_header
          %s1365 = sphi 0, %s1369
          %p1366 = scmp.ge.s32.totalorder %s1365, 1
          %s1370 = sphi %s1360, %s1360
          %s1371 = sphi %s1362, %s1362
        $region849: #{contrast_memory_queue_forward.2} parent=845 // loop_header_branch
          %1368 = sbr.rel (%p1366) target = $region853
        $region850: #{contrast_memory_queue_forward.2} parent=845 // loop_body
          %v1372 = vld [vmem:[%s1370] sm:%s1363]
          %1373 = vst [vmem:[%s1371] sm:%s1363] %v1372
        $region851: #{contrast_memory_queue_forward.2} parent=845 // loop_footer
          %s1369 = sadd.s32 1, %s1365
        $region852: #{contrast_memory_queue_forward.2} parent=845 // loop_footer_branch
          %1364 = sbr.rel target = $region848
        $region853: #{contrast_memory_queue_forward.2} parent=845 // loop_exit
          _
      $region846: #{contrast_memory_queue_forward.2} parent=830 // pred_fallthru
        _
    $region831: #{contrast_memory_queue_forward.2} parent=1 // pred_fallthru
      _
    // Predicated region
    $region832: #{contrast_memory_queue_forward.2} parent=1 // pred_check
      %p1339 = pneg %p1335
    $region833: #{contrast_memory_queue_forward.2} parent=1 // pred_check_branch
      %1341 = sbr.rel (%p1339) target = $region835
    $region834: #{contrast_memory_queue_forward.2} parent=1 // pred_region
      %s1342 = sshllo.u32 0, 1
      loop: start=0, step=1, limit=1
      $region836: #{contrast_memory_queue_forward.2} parent=834 // loop_pre_header
        _
      $region837: #{contrast_memory_queue_forward.2} parent=834 // loop_header
        %s1344 = sphi 0, %s1348
        %p1345 = scmp.ge.s32.totalorder %s1344, 1
        %s1349 = sphi %s543, %s543
        %s1350 = sphi %s1333, %s1333
      $region838: #{contrast_memory_queue_forward.2} parent=834 // loop_header_branch
        %1347 = sbr.rel (%p1345) target = $region842
      $region839: #{contrast_memory_queue_forward.2} parent=834 // loop_body
        %v1351 = vld [vmem:[%s1349] sm:%s1342]
        %1352 = vst [vmem:[%s1350] sm:%s1342] %v1351
      $region840: #{contrast_memory_queue_forward.2} parent=834 // loop_footer
        %s1348 = sadd.s32 1, %s1344
      $region841: #{contrast_memory_queue_forward.2} parent=834 // loop_footer_branch
        %1343 = sbr.rel target = $region837
      $region842: #{contrast_memory_queue_forward.2} parent=834 // loop_exit
        _
    $region835: #{contrast_memory_queue_forward.2} parent=1 // pred_fallthru
      _
    // Predicated region
    $region854: #{contrast_memory_queue_forward.2} parent=1 // pred_check
      _
    $region855: #{contrast_memory_queue_forward.2} parent=1 // pred_check_branch
      %1376 = sbr.rel (0) target = $region857
    $region856: #{contrast_memory_queue_forward.2} parent=1 // pred_region
      %1377 = vsyncadd %s78, 16
    $region857: #{contrast_memory_queue_forward.2} parent=1 // pred_fallthru
      _
    %s1378 = sld [smem:[#allocation5 + $0x6]]
    %s1379 = scalar_lea.vmem %s5, %s1378
    %p1381 = scmp.lt.u32.totalorder 1, 8
    %p1382 = pneg %p1381
    // Predicated region
    $region858: #{contrast_memory_queue_forward.2} parent=1 // pred_check
      _
    $region859: #{contrast_memory_queue_forward.2} parent=1 // pred_check_branch
      %1384 = sbr.rel (%p1381) target = $region861
    $region860: #{contrast_memory_queue_forward.2} parent=1 // pred_region
      %s1399 = sand.u32 1, 7
      %p1400 = scmp.eq.s32.totalorder %s1399, 0
      %p1401 = pneg %p1400
      // Predicated region
      $region873: #{contrast_memory_queue_forward.2} parent=860 // pred_check
        _
      $region874: #{contrast_memory_queue_forward.2} parent=860 // pred_check_branch
        %1403 = sbr.rel (%p1400) target = $region876
      $region875: #{contrast_memory_queue_forward.2} parent=860 // pred_region
        %s1404 = sand.u32 1, 7
        %s1405 = ssub.s32 1, %s1404
        %s1406 = scalar_lea.vmem %s590, %s1405 [#allocation2]
        %s1407 = ssub.s32 1, %s1404
        %s1408 = scalar_lea.vmem %s1379, %s1407
        %s1409 = sshllo.u32 0, %s1404
        loop: start=0, step=1, limit=1
        $region877: #{contrast_memory_queue_forward.2} parent=875 // loop_pre_header
          _
        $region878: #{contrast_memory_queue_forward.2} parent=875 // loop_header
          %s1411 = sphi 0, %s1415
          %p1412 = scmp.ge.s32.totalorder %s1411, 1
          %s1416 = sphi %s1406, %s1406
          %s1417 = sphi %s1408, %s1408
        $region879: #{contrast_memory_queue_forward.2} parent=875 // loop_header_branch
          %1414 = sbr.rel (%p1412) target = $region883
        $region880: #{contrast_memory_queue_forward.2} parent=875 // loop_body
          %v1418 = vld [vmem:[%s1416] sm:%s1409]
          %1419 = vst [vmem:[%s1417] sm:%s1409] %v1418
        $region881: #{contrast_memory_queue_forward.2} parent=875 // loop_footer
          %s1415 = sadd.s32 1, %s1411
        $region882: #{contrast_memory_queue_forward.2} parent=875 // loop_footer_branch
          %1410 = sbr.rel target = $region878
        $region883: #{contrast_memory_queue_forward.2} parent=875 // loop_exit
          _
      $region876: #{contrast_memory_queue_forward.2} parent=860 // pred_fallthru
        _
    $region861: #{contrast_memory_queue_forward.2} parent=1 // pred_fallthru
      _
    // Predicated region
    $region862: #{contrast_memory_queue_forward.2} parent=1 // pred_check
      %p1385 = pneg %p1381
    $region863: #{contrast_memory_queue_forward.2} parent=1 // pred_check_branch
      %1387 = sbr.rel (%p1385) target = $region865
    $region864: #{contrast_memory_queue_forward.2} parent=1 // pred_region
      %s1388 = sshllo.u32 0, 1
      loop: start=0, step=1, limit=1
      $region866: #{contrast_memory_queue_forward.2} parent=864 // loop_pre_header
        _
      $region867: #{contrast_memory_queue_forward.2} parent=864 // loop_header
        %s1390 = sphi 0, %s1394
        %p1391 = scmp.ge.s32.totalorder %s1390, 1
        %s1395 = sphi %s590, %s590
        %s1396 = sphi %s1379, %s1379
      $region868: #{contrast_memory_queue_forward.2} parent=864 // loop_header_branch
        %1393 = sbr.rel (%p1391) target = $region872
      $region869: #{contrast_memory_queue_forward.2} parent=864 // loop_body
        %v1397 = vld [vmem:[%s1395] sm:%s1388]
        %1398 = vst [vmem:[%s1396] sm:%s1388] %v1397
      $region870: #{contrast_memory_queue_forward.2} parent=864 // loop_footer
        %s1394 = sadd.s32 1, %s1390
      $region871: #{contrast_memory_queue_forward.2} parent=864 // loop_footer_branch
        %1389 = sbr.rel target = $region867
      $region872: #{contrast_memory_queue_forward.2} parent=864 // loop_exit
        _
    $region865: #{contrast_memory_queue_forward.2} parent=1 // pred_fallthru
      _
    // Predicated region
    $region884: #{contrast_memory_queue_forward.2} parent=1 // pred_check
      _
    $region885: #{contrast_memory_queue_forward.2} parent=1 // pred_check_branch
      %1422 = sbr.rel (0) target = $region887
    $region886: #{contrast_memory_queue_forward.2} parent=1 // pred_region
      %1423 = vsyncadd [#allocation4], 16
    $region887: #{contrast_memory_queue_forward.2} parent=1 // pred_fallthru
      _
    %s1424 = scalar_lea.vmem %s6, %s1378
    %p1426 = scmp.lt.u32.totalorder 1, 8
    %p1427 = pneg %p1426
    // Predicated region
    $region888: #{contrast_memory_queue_forward.2} parent=1 // pred_check
      _
    $region889: #{contrast_memory_queue_forward.2} parent=1 // pred_check_branch
      %1429 = sbr.rel (%p1426) target = $region891
    $region890: #{contrast_memory_queue_forward.2} parent=1 // pred_region
      %s1444 = sand.u32 1, 7
      %p1445 = scmp.eq.s32.totalorder %s1444, 0
      %p1446 = pneg %p1445
      // Predicated region
      $region903: #{contrast_memory_queue_forward.2} parent=890 // pred_check
        _
      $region904: #{contrast_memory_queue_forward.2} parent=890 // pred_check_branch
        %1448 = sbr.rel (%p1445) target = $region906
      $region905: #{contrast_memory_queue_forward.2} parent=890 // pred_region
        %s1449 = sand.u32 1, 7
        %s1450 = ssub.s32 1, %s1449
        %s1451 = scalar_lea.vmem %s636, %s1450 [#allocation3]
        %s1452 = ssub.s32 1, %s1449
        %s1453 = scalar_lea.vmem %s1424, %s1452
        %s1454 = sshllo.u32 0, %s1449
        loop: start=0, step=1, limit=1
        $region907: #{contrast_memory_queue_forward.2} parent=905 // loop_pre_header
          _
        $region908: #{contrast_memory_queue_forward.2} parent=905 // loop_header
          %s1456 = sphi 0, %s1460
          %p1457 = scmp.ge.s32.totalorder %s1456, 1
          %s1461 = sphi %s1451, %s1451
          %s1462 = sphi %s1453, %s1453
        $region909: #{contrast_memory_queue_forward.2} parent=905 // loop_header_branch
          %1459 = sbr.rel (%p1457) target = $region913
        $region910: #{contrast_memory_queue_forward.2} parent=905 // loop_body
          %v1463 = vld [vmem:[%s1461] sm:%s1454]
          %1464 = vst [vmem:[%s1462] sm:%s1454] %v1463
        $region911: #{contrast_memory_queue_forward.2} parent=905 // loop_footer
          %s1460 = sadd.s32 1, %s1456
        $region912: #{contrast_memory_queue_forward.2} parent=905 // loop_footer_branch
          %1455 = sbr.rel target = $region908
        $region913: #{contrast_memory_queue_forward.2} parent=905 // loop_exit
          _
      $region906: #{contrast_memory_queue_forward.2} parent=890 // pred_fallthru
        _
    $region891: #{contrast_memory_queue_forward.2} parent=1 // pred_fallthru
      _
    // Predicated region
    $region892: #{contrast_memory_queue_forward.2} parent=1 // pred_check
      %p1430 = pneg %p1426
    $region893: #{contrast_memory_queue_forward.2} parent=1 // pred_check_branch
      %1432 = sbr.rel (%p1430) target = $region895
    $region894: #{contrast_memory_queue_forward.2} parent=1 // pred_region
      %s1433 = sshllo.u32 0, 1
      loop: start=0, step=1, limit=1
      $region896: #{contrast_memory_queue_forward.2} parent=894 // loop_pre_header
        _
      $region897: #{contrast_memory_queue_forward.2} parent=894 // loop_header
        %s1435 = sphi 0, %s1439
        %p1436 = scmp.ge.s32.totalorder %s1435, 1
        %s1440 = sphi %s636, %s636
        %s1441 = sphi %s1424, %s1424
      $region898: #{contrast_memory_queue_forward.2} parent=894 // loop_header_branch
        %1438 = sbr.rel (%p1436) target = $region902
      $region899: #{contrast_memory_queue_forward.2} parent=894 // loop_body
        %v1442 = vld [vmem:[%s1440] sm:%s1433]
        %1443 = vst [vmem:[%s1441] sm:%s1433] %v1442
      $region900: #{contrast_memory_queue_forward.2} parent=894 // loop_footer
        %s1439 = sadd.s32 1, %s1435
      $region901: #{contrast_memory_queue_forward.2} parent=894 // loop_footer_branch
        %1434 = sbr.rel target = $region897
      $region902: #{contrast_memory_queue_forward.2} parent=894 // loop_exit
        _
    $region895: #{contrast_memory_queue_forward.2} parent=1 // pred_fallthru
      _
    // Predicated region
    $region914: #{contrast_memory_queue_forward.2} parent=1 // pred_check
      _
    $region915: #{contrast_memory_queue_forward.2} parent=1 // pred_check_branch
      %1467 = sbr.rel (0) target = $region917
    $region916: #{contrast_memory_queue_forward.2} parent=1 // pred_region
      %1468 = vsyncadd %s78, 16
    $region917: #{contrast_memory_queue_forward.2} parent=1 // pred_fallthru
      _
    %s1469 = sld [smem:[#allocation5 + $0x7]]
    %s1470 = scalar_lea.vmem %s5, %s1469
    %p1472 = scmp.lt.u32.totalorder 1, 8
    %p1473 = pneg %p1472
    // Predicated region
    $region918: #{contrast_memory_queue_forward.2} parent=1 // pred_check
      _
    $region919: #{contrast_memory_queue_forward.2} parent=1 // pred_check_branch
      %1475 = sbr.rel (%p1472) target = $region921
    $region920: #{contrast_memory_queue_forward.2} parent=1 // pred_region
      %s1490 = sand.u32 1, 7
      %p1491 = scmp.eq.s32.totalorder %s1490, 0
      %p1492 = pneg %p1491
      // Predicated region
      $region933: #{contrast_memory_queue_forward.2} parent=920 // pred_check
        _
      $region934: #{contrast_memory_queue_forward.2} parent=920 // pred_check_branch
        %1494 = sbr.rel (%p1491) target = $region936
      $region935: #{contrast_memory_queue_forward.2} parent=920 // pred_region
        %s1495 = sand.u32 1, 7
        %s1496 = ssub.s32 1, %s1495
        %s1497 = scalar_lea.vmem %s683, %s1496 [#allocation2]
        %s1498 = ssub.s32 1, %s1495
        %s1499 = scalar_lea.vmem %s1470, %s1498
        %s1500 = sshllo.u32 0, %s1495
        loop: start=0, step=1, limit=1
        $region937: #{contrast_memory_queue_forward.2} parent=935 // loop_pre_header
          _
        $region938: #{contrast_memory_queue_forward.2} parent=935 // loop_header
          %s1502 = sphi 0, %s1506
          %p1503 = scmp.ge.s32.totalorder %s1502, 1
          %s1507 = sphi %s1497, %s1497
          %s1508 = sphi %s1499, %s1499
        $region939: #{contrast_memory_queue_forward.2} parent=935 // loop_header_branch
          %1505 = sbr.rel (%p1503) target = $region943
        $region940: #{contrast_memory_queue_forward.2} parent=935 // loop_body
          %v1509 = vld [vmem:[%s1507] sm:%s1500]
          %1510 = vst [vmem:[%s1508] sm:%s1500] %v1509
        $region941: #{contrast_memory_queue_forward.2} parent=935 // loop_footer
          %s1506 = sadd.s32 1, %s1502
        $region942: #{contrast_memory_queue_forward.2} parent=935 // loop_footer_branch
          %1501 = sbr.rel target = $region938
        $region943: #{contrast_memory_queue_forward.2} parent=935 // loop_exit
          _
      $region936: #{contrast_memory_queue_forward.2} parent=920 // pred_fallthru
        _
    $region921: #{contrast_memory_queue_forward.2} parent=1 // pred_fallthru
      _
    // Predicated region
    $region922: #{contrast_memory_queue_forward.2} parent=1 // pred_check
      %p1476 = pneg %p1472
    $region923: #{contrast_memory_queue_forward.2} parent=1 // pred_check_branch
      %1478 = sbr.rel (%p1476) target = $region925
    $region924: #{contrast_memory_queue_forward.2} parent=1 // pred_region
      %s1479 = sshllo.u32 0, 1
      loop: start=0, step=1, limit=1
      $region926: #{contrast_memory_queue_forward.2} parent=924 // loop_pre_header
        _
      $region927: #{contrast_memory_queue_forward.2} parent=924 // loop_header
        %s1481 = sphi 0, %s1485
        %p1482 = scmp.ge.s32.totalorder %s1481, 1
        %s1486 = sphi %s683, %s683
        %s1487 = sphi %s1470, %s1470
      $region928: #{contrast_memory_queue_forward.2} parent=924 // loop_header_branch
        %1484 = sbr.rel (%p1482) target = $region932
      $region929: #{contrast_memory_queue_forward.2} parent=924 // loop_body
        %v1488 = vld [vmem:[%s1486] sm:%s1479]
        %1489 = vst [vmem:[%s1487] sm:%s1479] %v1488
      $region930: #{contrast_memory_queue_forward.2} parent=924 // loop_footer
        %s1485 = sadd.s32 1, %s1481
      $region931: #{contrast_memory_queue_forward.2} parent=924 // loop_footer_branch
        %1480 = sbr.rel target = $region927
      $region932: #{contrast_memory_queue_forward.2} parent=924 // loop_exit
        _
    $region925: #{contrast_memory_queue_forward.2} parent=1 // pred_fallthru
      _
    // Predicated region
    $region944: #{contrast_memory_queue_forward.2} parent=1 // pred_check
      _
    $region945: #{contrast_memory_queue_forward.2} parent=1 // pred_check_branch
      %1513 = sbr.rel (0) target = $region947
    $region946: #{contrast_memory_queue_forward.2} parent=1 // pred_region
      %1514 = vsyncadd [#allocation4], 16
    $region947: #{contrast_memory_queue_forward.2} parent=1 // pred_fallthru
      _
    %s1515 = scalar_lea.vmem %s6, %s1469
    %p1517 = scmp.lt.u32.totalorder 1, 8
    %p1518 = pneg %p1517
    // Predicated region
    $region948: #{contrast_memory_queue_forward.2} parent=1 // pred_check
      _
    $region949: #{contrast_memory_queue_forward.2} parent=1 // pred_check_branch
      %1520 = sbr.rel (%p1517) target = $region951
    $region950: #{contrast_memory_queue_forward.2} parent=1 // pred_region
      %s1535 = sand.u32 1, 7
      %p1536 = scmp.eq.s32.totalorder %s1535, 0
      %p1537 = pneg %p1536
      // Predicated region
      $region963: #{contrast_memory_queue_forward.2} parent=950 // pred_check
        _
      $region964: #{contrast_memory_queue_forward.2} parent=950 // pred_check_branch
        %1539 = sbr.rel (%p1536) target = $region966
      $region965: #{contrast_memory_queue_forward.2} parent=950 // pred_region
        %s1540 = sand.u32 1, 7
        %s1541 = ssub.s32 1, %s1540
        %s1542 = scalar_lea.vmem %s729, %s1541 [#allocation3]
        %s1543 = ssub.s32 1, %s1540
        %s1544 = scalar_lea.vmem %s1515, %s1543
        %s1545 = sshllo.u32 0, %s1540
        loop: start=0, step=1, limit=1
        $region967: #{contrast_memory_queue_forward.2} parent=965 // loop_pre_header
          _
        $region968: #{contrast_memory_queue_forward.2} parent=965 // loop_header
          %s1547 = sphi 0, %s1551
          %p1548 = scmp.ge.s32.totalorder %s1547, 1
          %s1552 = sphi %s1542, %s1542
          %s1553 = sphi %s1544, %s1544
        $region969: #{contrast_memory_queue_forward.2} parent=965 // loop_header_branch
          %1550 = sbr.rel (%p1548) target = $region973
        $region970: #{contrast_memory_queue_forward.2} parent=965 // loop_body
          %v1554 = vld [vmem:[%s1552] sm:%s1545]
          %1555 = vst [vmem:[%s1553] sm:%s1545] %v1554
        $region971: #{contrast_memory_queue_forward.2} parent=965 // loop_footer
          %s1551 = sadd.s32 1, %s1547
        $region972: #{contrast_memory_queue_forward.2} parent=965 // loop_footer_branch
          %1546 = sbr.rel target = $region968
        $region973: #{contrast_memory_queue_forward.2} parent=965 // loop_exit
          _
      $region966: #{contrast_memory_queue_forward.2} parent=950 // pred_fallthru
        _
    $region951: #{contrast_memory_queue_forward.2} parent=1 // pred_fallthru
      _
    // Predicated region
    $region952: #{contrast_memory_queue_forward.2} parent=1 // pred_check
      %p1521 = pneg %p1517
    $region953: #{contrast_memory_queue_forward.2} parent=1 // pred_check_branch
      %1523 = sbr.rel (%p1521) target = $region955
    $region954: #{contrast_memory_queue_forward.2} parent=1 // pred_region
      %s1524 = sshllo.u32 0, 1
      loop: start=0, step=1, limit=1
      $region956: #{contrast_memory_queue_forward.2} parent=954 // loop_pre_header
        _
      $region957: #{contrast_memory_queue_forward.2} parent=954 // loop_header
        %s1526 = sphi 0, %s1530
        %p1527 = scmp.ge.s32.totalorder %s1526, 1
        %s1531 = sphi %s729, %s729
        %s1532 = sphi %s1515, %s1515
      $region958: #{contrast_memory_queue_forward.2} parent=954 // loop_header_branch
        %1529 = sbr.rel (%p1527) target = $region962
      $region959: #{contrast_memory_queue_forward.2} parent=954 // loop_body
        %v1533 = vld [vmem:[%s1531] sm:%s1524]
        %1534 = vst [vmem:[%s1532] sm:%s1524] %v1533
      $region960: #{contrast_memory_queue_forward.2} parent=954 // loop_footer
        %s1530 = sadd.s32 1, %s1526
      $region961: #{contrast_memory_queue_forward.2} parent=954 // loop_footer_branch
        %1525 = sbr.rel target = $region957
      $region962: #{contrast_memory_queue_forward.2} parent=954 // loop_exit
        _
    $region955: #{contrast_memory_queue_forward.2} parent=1 // pred_fallthru
      _
    // Predicated region
    $region974: #{contrast_memory_queue_forward.2} parent=1 // pred_check
      _
    $region975: #{contrast_memory_queue_forward.2} parent=1 // pred_check_branch
      %1558 = sbr.rel (0) target = $region977
    $region976: #{contrast_memory_queue_forward.2} parent=1 // pred_region
      %1559 = vsyncadd %s78, 16
    $region977: #{contrast_memory_queue_forward.2} parent=1 // pred_fallthru
      _
    %s1560 = sshll.u32 %s774, 4
    %1561 = dma.done [#allocation4], %s1560
    %s1562 = sshll.u32 %s774, 4
    %1563 = dma.done %s78, %s1562
    %s1564 = sshll.u32 %s774, 4
    %1565 = dma.done [#allocation4], %s1564
    %s1566 = sshll.u32 %s774, 4
    %1567 = dma.done %s78, %s1566
    %s1568 = sshll.u32 %s774, 4
    %1569 = dma.done [#allocation4], %s1568
    %s1570 = sshll.u32 %s774, 4
    %1571 = dma.done %s78, %s1570
    %s1572 = sshll.u32 %s774, 4
    %1573 = dma.done [#allocation4], %s1572
    %s1574 = sshll.u32 %s774, 4
    %1575 = dma.done %s78, %s1574
    %s1576 = sshll.u32 %s774, 4
    %1577 = dma.done [#allocation4], %s1576
    %s1578 = sshll.u32 %s774, 4
    %1579 = dma.done %s78, %s1578
    %s1580 = sshll.u32 %s774, 4
    %1581 = dma.done [#allocation4], %s1580
    %s1582 = sshll.u32 %s774, 4
    %1583 = dma.done %s78, %s1582
    %s1584 = sshll.u32 %s774, 4
    %1585 = dma.done [#allocation4], %s1584
    %s1586 = sshll.u32 %s774, 4
    %1587 = dma.done %s78, %s1586
    %s1588 = sshll.u32 %s774, 4
    %1589 = dma.done [#allocation4], %s1588
    %s1590 = sshll.u32 %s774, 4
    %1591 = dma.done %s78, %s1590
    %1592 = vsyncpa [#allocation6], 1
  %1593 = vsyncmov [#allocation4]
  %s1594 = vpop.sfrf %1593
  %p1595 = scmp.eq.s32.totalorder %s1594, 0
  %p1596 = pneg %p1595
  %1598 = shalt.err (%p1596)
  %s1599 = scalar_lea.sflag [#allocation4], 1
  %1600 = vsyncmov %s1599
  %s1601 = vpop.sfrf %1600
  %p1602 = scmp.eq.s32.totalorder %s1601, 0
  %p1603 = pneg %p1602
  %1605 = shalt.err (%p1603)

// kernel: contrast_memory_queue_forward.3
$region0: #{contrast_memory_queue_forward.3}
  #allocation0 [shape = 'u32[]', space=smem, size = 0x4, offset = 0x4, fixed_abs, tag = 'smem constant byte address 0x4 - core index']
  #allocation1 [shape = 'u32[144,128]{1,0:T(1,128)}', space=vmem, size = 0x12000, scoped, tag = 'internal scratch']
  %s0 = inlined_call_operand.vmem [shape: f32[8,32], index: 0, kind: input, shape index: {}]
  %s1 = inlined_call_operand.vmem [shape: f32[8,32], index: 1, kind: input, shape index: {}]
  %s2 = inlined_call_operand.vmem [shape: f32[1024,32], index: 2, kind: input, shape index: {}]
  %s3 = inlined_call_operand.vmem [shape: f32[1024,32], index: 3, kind: input, shape index: {}]
  %s4 = inlined_call_operand.vmem [shape: f32[8,1024], index: 4, kind: output, shape index: {0}]
  %s5 = inlined_call_operand.vmem [shape: f32[8,1024], index: 5, kind: output, shape index: {1}]
  %6 = xla_tuple %s4, %s5
  %s7 = sld [smem:[#allocation0]]
  $region57: #{contrast_memory_queue_forward.3} parent=0
    _
  %s9 = ssub.s32 1, %s7
  %s10 = scalar_select 0, %s9, %s7
  loop: start=0, step=1, limit=6
  $region2: #{contrast_memory_queue_forward.3} parent=0 // loop_pre_header
    _
  $region3: #{contrast_memory_queue_forward.3} parent=0 // loop_header
    %s12 = sphi 0, %s16
    %p13 = scmp.ge.s32.totalorder %s12, 6
    %s20 = sphi 0, %s20
    %s22 = sphi 0, %s20
    %s23 = sphi 0, %s22
    %s37 = sphi 0, %s23
    %s41 = sphi 0, %s41
    %s43 = sphi 0, %s41
    %s44 = sphi 0, %s43
    %s58 = sphi 0, %s44
    %s64 = sphi 0, %s66
    %s67 = sphi 0, %s64
    %s68 = sphi 0, %s67
    %s84 = sphi 0, %s68
    %s90 = sphi 0, %s92
    %s93 = sphi 0, %s90
    %s94 = sphi 0, %s93
    %s110 = sphi 0, %s94
    %s116 = sphi 0, %s118
    %s119 = sphi 0, %s116
    %s120 = sphi 0, %s119
    %s136 = sphi 0, %s120
    %s142 = sphi 0, %s144
    %s145 = sphi 0, %s142
    %s146 = sphi 0, %s145
    %s162 = sphi 0, %s146
  $region4: #{contrast_memory_queue_forward.3} parent=0 // loop_header_branch
    %15 = sbr.rel (%p13) target = $region8
  $region5: #{contrast_memory_queue_forward.3} parent=0 // loop_body
    %s17 = ssub.s32 %s12, 1
    %s18 = ssub.s32 %s12, 2
    %s19 = sadd.s32 %s12, 1
    %s21 = sadd.s32 %s20, 1
    %p24 = scmp.eq.s32.totalorder %s12, 3
    %p25 = scmp.ne.s32.totalorder %s20, %s22
    %p26 = scmp.eq.s32.totalorder %s12, 0
    %p27 = por %p25, %p26
    %p28 = scmp.ne.s32.totalorder %s20, %s22
    %p29 = scmp.eq.s32.totalorder %s17, 3
    %p30 = por %p28, %p29
    %p31 = scmp.ne.s32.totalorder %s22, %s23
    %p32 = scmp.eq.s32.totalorder %s17, 0
    %p33 = por %p31, %p32
    %p34 = scmp.ne.s32.totalorder %s22, %s23
    %p35 = scmp.eq.s32.totalorder %s18, 3
    %p36 = por %p34, %p35
    %p38 = scmp.ne.s32.totalorder %s23, %s37
    %p39 = scmp.eq.s32.totalorder %s18, 0
    %p40 = por %p38, %p39
    %s42 = sadd.s32 %s41, 1
    %p45 = scmp.eq.s32.totalorder %s12, 3
    %p46 = scmp.ne.s32.totalorder %s41, %s43
    %p47 = scmp.eq.s32.totalorder %s12, 0
    %p48 = por %p46, %p47
    %p49 = scmp.ne.s32.totalorder %s41, %s43
    %p50 = scmp.eq.s32.totalorder %s17, 3
    %p51 = por %p49, %p50
    %p52 = scmp.ne.s32.totalorder %s43, %s44
    %p53 = scmp.eq.s32.totalorder %s17, 0
    %p54 = por %p52, %p53
    %p55 = scmp.ne.s32.totalorder %s43, %s44
    %p56 = scmp.eq.s32.totalorder %s18, 3
    %p57 = por %p55, %p56
    %p59 = scmp.ne.s32.totalorder %s44, %s58
    %p60 = scmp.eq.s32.totalorder %s18, 0
    %p61 = por %p59, %p60
    %s62 = ssub.s32 %s12, %s19
    %p63 = scmp.eq.s32.totalorder %s62, 0
    %s65 = sadd.s32 %s64, 1
    %s66 = scalar_select %p63, %s64, %s65
    %p69 = pneg %p63
    %p70 = scmp.eq.s32.totalorder %s12, 3
    %p71 = por %p69, %p70
    %p72 = scmp.ne.s32.totalorder %s64, %s67
    %p73 = scmp.eq.s32.totalorder %s12, 0
    %p74 = por %p72, %p73
    %p75 = scmp.ne.s32.totalorder %s64, %s67
    %p76 = scmp.eq.s32.totalorder %s17, 3
    %p77 = por %p75, %p76
    %p78 = scmp.ne.s32.totalorder %s67, %s68
    %p79 = scmp.eq.s32.totalorder %s17, 0
    %p80 = por %p78, %p79
    %p81 = scmp.ne.s32.totalorder %s67, %s68
    %p82 = scmp.eq.s32.totalorder %s18, 3
    %p83 = por %p81, %p82
    %p85 = scmp.ne.s32.totalorder %s68, %s84
    %p86 = scmp.eq.s32.totalorder %s18, 0
    %p87 = por %p85, %p86
    %s88 = ssub.s32 %s12, %s19
    %p89 = scmp.eq.s32.totalorder %s88, 0
    %s91 = sadd.s32 %s90, 1
    %s92 = scalar_select %p89, %s90, %s91
    %p95 = pneg %p89
    %p96 = scmp.eq.s32.totalorder %s12, 3
    %p97 = por %p95, %p96
    %p98 = scmp.ne.s32.totalorder %s90, %s93
    %p99 = scmp.eq.s32.totalorder %s12, 0
    %p100 = por %p98, %p99
    %p101 = scmp.ne.s32.totalorder %s90, %s93
    %p102 = scmp.eq.s32.totalorder %s17, 3
    %p103 = por %p101, %p102
    %p104 = scmp.ne.s32.totalorder %s93, %s94
    %p105 = scmp.eq.s32.totalorder %s17, 0
    %p106 = por %p104, %p105
    %p107 = scmp.ne.s32.totalorder %s93, %s94
    %p108 = scmp.eq.s32.totalorder %s18, 3
    %p109 = por %p107, %p108
    %p111 = scmp.ne.s32.totalorder %s94, %s110
    %p112 = scmp.eq.s32.totalorder %s18, 0
    %p113 = por %p111, %p112
    %s114 = ssub.s32 %s12, %s19
    %p115 = scmp.eq.s32.totalorder %s114, 0
    %s117 = sadd.s32 %s116, 1
    %s118 = scalar_select %p115, %s116, %s117
    %p121 = pneg %p115
    %p122 = scmp.eq.s32.totalorder %s12, 3
    %p123 = por %p121, %p122
    %p124 = scmp.ne.s32.totalorder %s116, %s119
    %p125 = scmp.eq.s32.totalorder %s12, 0
    %p126 = por %p124, %p125
    %p127 = scmp.ne.s32.totalorder %s116, %s119
    %p128 = scmp.eq.s32.totalorder %s17, 3
    %p129 = por %p127, %p128
    %p130 = scmp.ne.s32.totalorder %s119, %s120
    %p131 = scmp.eq.s32.totalorder %s17, 0
    %p132 = por %p130, %p131
    %p133 = scmp.ne.s32.totalorder %s119, %s120
    %p134 = scmp.eq.s32.totalorder %s18, 3
    %p135 = por %p133, %p134
    %p137 = scmp.ne.s32.totalorder %s120, %s136
    %p138 = scmp.eq.s32.totalorder %s18, 0
    %p139 = por %p137, %p138
    %s140 = ssub.s32 %s12, %s19
    %p141 = scmp.eq.s32.totalorder %s140, 0
    %s143 = sadd.s32 %s142, 1
    %s144 = scalar_select %p141, %s142, %s143
    %p147 = pneg %p141
    %p148 = scmp.eq.s32.totalorder %s12, 3
    %p149 = por %p147, %p148
    %p150 = scmp.ne.s32.totalorder %s142, %s145
    %p151 = scmp.eq.s32.totalorder %s12, 0
    %p152 = por %p150, %p151
    %p153 = scmp.ne.s32.totalorder %s142, %s145
    %p154 = scmp.eq.s32.totalorder %s17, 3
    %p155 = por %p153, %p154
    %p156 = scmp.ne.s32.totalorder %s145, %s146
    %p157 = scmp.eq.s32.totalorder %s17, 0
    %p158 = por %p156, %p157
    %p159 = scmp.ne.s32.totalorder %s145, %s146
    %p160 = scmp.eq.s32.totalorder %s18, 3
    %p161 = por %p159, %p160
    %p163 = scmp.ne.s32.totalorder %s146, %s162
    %p164 = scmp.eq.s32.totalorder %s18, 0
    %p165 = por %p163, %p164
    %p166 = scmp.le.s32.totalorder 1, %s12
    %p167 = scmp.lt.s32.totalorder %s12, 5
    %p168 = pnand %p166, %p167
    %p169 = pneg %p168
    // Predicated region
    $region9: #{contrast_memory_queue_forward.3} parent=5 // pred_check
      _
    $region10: #{contrast_memory_queue_forward.3} parent=5 // pred_check_branch
      %171 = sbr.rel (%p168) target = $region12
    $region11: #{contrast_memory_queue_forward.3} parent=5 // pred_region
      %s172 = ssub.s32 %s12, 1
      // Predicated region
      $region13: #{contrast_memory_queue_forward.3} parent=11 // pred_check
        %p173 = pneg %p33
      $region14: #{contrast_memory_queue_forward.3} parent=11 // pred_check_branch
        %175 = sbr.rel (%p173) target = $region16
      $region15: #{contrast_memory_queue_forward.3} parent=11 // pred_region
        _
      $region16: #{contrast_memory_queue_forward.3} parent=11 // pred_fallthru
        _
      // Predicated region
      $region17: #{contrast_memory_queue_forward.3} parent=11 // pred_check
        %p176 = pneg %p54
      $region18: #{contrast_memory_queue_forward.3} parent=11 // pred_check_branch
        %178 = sbr.rel (%p176) target = $region20
      $region19: #{contrast_memory_queue_forward.3} parent=11 // pred_region
        _
      $region20: #{contrast_memory_queue_forward.3} parent=11 // pred_fallthru
        _
    $region12: #{contrast_memory_queue_forward.3} parent=5 // pred_fallthru
      _
    %p179 = scmp.lt.s32.totalorder %s12, 4
    // Predicated region
    $region21: #{contrast_memory_queue_forward.3} parent=5 // pred_check
      %p180 = pneg %p179
    $region22: #{contrast_memory_queue_forward.3} parent=5 // pred_check_branch
      %182 = sbr.rel (%p180) target = $region24
    $region23: #{contrast_memory_queue_forward.3} parent=5 // pred_region
      // Predicated region
      $region25: #{contrast_memory_queue_forward.3} parent=23 // pred_check
        %p183 = pneg %p74
      $region26: #{contrast_memory_queue_forward.3} parent=23 // pred_check_branch
        %185 = sbr.rel (%p183) target = $region28
      $region27: #{contrast_memory_queue_forward.3} parent=23 // pred_region
        %s186 = smul.u32 32, %s12
        %p187 = scmp.lt.s32.totalorder %s186, 127
        %s188 = scalar_select %p187, %s186, 127
        %s189 = smul.addr %s188, 8
        %s190 = scalar_lea.vmem %s2, %s189
        %s191 = smul.u32 32, %s12
      $region28: #{contrast_memory_queue_forward.3} parent=23 // pred_fallthru
        _
      // Predicated region
      $region29: #{contrast_memory_queue_forward.3} parent=23 // pred_check
        %p192 = pneg %p100
      $region30: #{contrast_memory_queue_forward.3} parent=23 // pred_check_branch
        %194 = sbr.rel (%p192) target = $region32
      $region31: #{contrast_memory_queue_forward.3} parent=23 // pred_region
        %s195 = smul.u32 32, %s12
        %p196 = scmp.lt.s32.totalorder %s195, 127
        %s197 = scalar_select %p196, %s195, 127
        %s198 = smul.addr %s197, 8
        %s199 = scalar_lea.vmem %s3, %s198
        %s200 = smul.u32 32, %s12
      $region32: #{contrast_memory_queue_forward.3} parent=23 // pred_fallthru
        _
    $region24: #{contrast_memory_queue_forward.3} parent=5 // pred_fallthru
      _
    %p201 = scmp.le.s32.totalorder 1, %s12
    %p202 = scmp.lt.s32.totalorder %s12, 5
    %p203 = pnand %p201, %p202
    %p204 = pneg %p203
    // Predicated region
    $region33: #{contrast_memory_queue_forward.3} parent=5 // pred_check
      _
    $region34: #{contrast_memory_queue_forward.3} parent=5 // pred_check_branch
      %206 = sbr.rel (%p203) target = $region36
    $region35: #{contrast_memory_queue_forward.3} parent=5 // pred_region
      %s207 = ssub.s32 %s12, 1
      %p208 = pneg %p33
      %p209 = pneg %p30
      %p210 = pneg %p54
      %p211 = pneg %p51
      %s212 = smul.u32 32, %s17
      %p213 = scmp.lt.s32.totalorder %s212, 127
      %s214 = scalar_select %p213, %s212, 127
      %s215 = smul.addr %s214, 8
      %s216 = scalar_lea.vmem %s2, %s215
      %p217 = pneg %p80
      %p218 = pneg %p77
      %s219 = smul.u32 32, %s17
      %p220 = scmp.lt.s32.totalorder %s219, 127
      %s221 = scalar_select %p220, %s219, 127
      %s222 = smul.addr %s221, 8
      %s223 = scalar_lea.vmem %s3, %s222
      %p224 = pneg %p106
      %p225 = pneg %p103
      %p226 = pneg %p132
      %p227 = pneg %p129
      %s228 = smul.u32 2, %s17
      %p229 = scmp.lt.s32.totalorder %s228, 7
      %s230 = scalar_select %p229, %s228, 7
      %s231 = smul.addr %s230, 8
      %s232 = scalar_lea.vmem %s4, %s231
      %p233 = pneg %p158
      %p234 = pneg %p155
      %s235 = smul.u32 2, %s17
      %p236 = scmp.lt.s32.totalorder %s235, 7
      %s237 = scalar_select %p236, %s235, 7
      %s238 = smul.addr %s237, 8
      %s239 = scalar_lea.vmem %s5, %s238
      %s240 = smul.u32 32, %s17
      %p241 = scmp.lt.s32.totalorder %s240, 127
      %s242 = scalar_select %p241, %s240, 127
      %s243 = smul.addr %s242, 8
      %s244 = scalar_lea.vmem %s2, %s243
      %s245 = smul.u32 32, %s17
      %s246 = smul.u32 32, %s17
      %p247 = scmp.lt.s32.totalorder %s246, 127
      %s248 = scalar_select %p247, %s246, 127
      %s249 = smul.addr %s248, 8
      %s250 = scalar_lea.vmem %s3, %s249
      %s251 = smul.u32 32, %s17
      %s252 = smul.u32 2, %s17
      %p253 = scmp.lt.s32.totalorder %s252, 7
      %s254 = scalar_select %p253, %s252, 7
      %s255 = smul.addr %s254, 8
      %s256 = scalar_lea.vmem %s4, %s255
      %s257 = smul.u32 2, %s17
      %s258 = smul.u32 2, %s17
      %p259 = scmp.lt.s32.totalorder %s258, 7
      %s260 = scalar_select %p259, %s258, 7
      %s261 = smul.addr %s260, 8
      %s262 = scalar_lea.vmem %s5, %s261
      %s263 = smul.u32 2, %s17
      %v264 = vld [vmem:[%s1] sm:$0xff]
      %v265 = vld [vmem:[%s244] sm:$0xff]
      %v266 = vld [vmem:[%s244 + $0x8] sm:$0xff]
      %v267 = vld [vmem:[%s244 + $0x10] sm:$0xff]
      %v268 = vld [vmem:[%s244 + $0x18] sm:$0xff]
      %v269 = vld [vmem:[%s244 + $0x20] sm:$0xff]
      %v270 = vld [vmem:[%s244 + $0x28] sm:$0xff]
      %v271 = vld [vmem:[%s244 + $0x30] sm:$0xff]
      %v272 = vld [vmem:[%s244 + $0x38] sm:$0xff]
      %v273 = vld [vmem:[%s244 + $0x40] sm:$0xff]
      %v274 = vld [vmem:[%s244 + $0x48] sm:$0xff]
      %v275 = vld [vmem:[%s244 + $0x50] sm:$0xff]
      %v276 = vld [vmem:[%s244 + $0x58] sm:$0xff]
      %v277 = vld [vmem:[%s244 + $0x60] sm:$0xff]
      %v278 = vld [vmem:[%s244 + $0x68] sm:$0xff]
      %v279 = vld [vmem:[%s244 + $0x70] sm:$0xff]
      %v280 = vld [vmem:[%s244 + $0x78] sm:$0xff]
      %v281 = vld [vmem:[%s244 + $0x80] sm:$0xff]
      %v282 = vld [vmem:[%s244 + $0x88] sm:$0xff]
      %v283 = vld [vmem:[%s244 + $0x90] sm:$0xff]
      %v284 = vld [vmem:[%s244 + $0x98] sm:$0xff]
      %v285 = vld [vmem:[%s244 + $0xa0] sm:$0xff]
      %v286 = vld [vmem:[%s244 + $0xa8] sm:$0xff]
      %v287 = vld [vmem:[%s244 + $0xb0] sm:$0xff]
      %v288 = vld [vmem:[%s244 + $0xb8] sm:$0xff]
      %v289 = vld [vmem:[%s244 + $0xc0] sm:$0xff]
      %v290 = vld [vmem:[%s244 + $0xc8] sm:$0xff]
      %v291 = vld [vmem:[%s244 + $0xd0] sm:$0xff]
      %v292 = vld [vmem:[%s244 + $0xd8] sm:$0xff]
      %v293 = vld [vmem:[%s244 + $0xe0] sm:$0xff]
      %v294 = vld [vmem:[%s244 + $0xe8] sm:$0xff]
      %v295 = vld [vmem:[%s244 + $0xf0] sm:$0xff]
      %v296 = vld [vmem:[%s244 + $0xf8] sm:$0xff]
      %vm297 = vcmask 261120
      %v299 = vsel %vm297, %v264, 0
      %v302 = vsel %vm297, %v265, 0
      %v305 = vsel %vm297, %v266, 0
      %v308 = vsel %vm297, %v267, 0
      %v311 = vsel %vm297, %v268, 0
      %v314 = vsel %vm297, %v269, 0
      %v317 = vsel %vm297, %v270, 0
      %v320 = vsel %vm297, %v271, 0
      %v323 = vsel %vm297, %v272, 0
      %v326 = vsel %vm297, %v273, 0
      %v329 = vsel %vm297, %v274, 0
      %v332 = vsel %vm297, %v275, 0
      %v335 = vsel %vm297, %v276, 0
      %v338 = vsel %vm297, %v277, 0
      %v341 = vsel %vm297, %v278, 0
      %v344 = vsel %vm297, %v279, 0
      %v347 = vsel %vm297, %v280, 0
      %v350 = vsel %vm297, %v281, 0
      %v353 = vsel %vm297, %v282, 0
      %v356 = vsel %vm297, %v283, 0
      %v359 = vsel %vm297, %v284, 0
      %v362 = vsel %vm297, %v285, 0
      %v365 = vsel %vm297, %v286, 0
      %v368 = vsel %vm297, %v287, 0
      %v371 = vsel %vm297, %v288, 0
      %v374 = vsel %vm297, %v289, 0
      %v377 = vsel %vm297, %v290, 0
      %v380 = vsel %vm297, %v291, 0
      %v383 = vsel %vm297, %v292, 0
      %v386 = vsel %vm297, %v293, 0
      %v389 = vsel %vm297, %v294, 0
      %v392 = vsel %vm297, %v295, 0
      %v395 = vsel %vm297, %v296, 0
      %397 = vmatprep.subr.mxu0 0.0
      %398 = vmatpush1.xpose.msra.mxu0 %v302
      %399 = vmatprep.subr.mxu0 0.0
      %400 = vmatpush1.xpose.msra.mxu0 %v305
      %401 = vmatprep.subr.mxu0 0.0
      %402 = vmatpush1.xpose.msra.mxu0 %v308
      %403 = vmatprep.subr.mxu0 0.0
      %404 = vmatpush1.xpose.msra.mxu0 %v311
      %405 = vmatprep.subr.mxu0 0.0
      %406 = vmatpush1.xpose.msra.mxu0 %v314
      %407 = vmatprep.subr.mxu0 0.0
      %408 = vmatpush1.xpose.msra.mxu0 %v317
      %409 = vmatprep.subr.mxu0 0.0
      %410 = vmatpush1.xpose.msra.mxu0 %v320
      %411 = vmatprep.subr.mxu0 0.0
      %412 = vmatpush1.xpose.msra.mxu0 %v323
      %413 = vmatprep.subr.mxu0 0.0
      %414 = vmatpush1.xpose.msra.mxu0 %v326
      %415 = vmatprep.subr.mxu0 0.0
      %416 = vmatpush1.xpose.msra.mxu0 %v329
      %417 = vmatprep.subr.mxu0 0.0
      %418 = vmatpush1.xpose.msra.mxu0 %v332
      %419 = vmatprep.subr.mxu0 0.0
      %420 = vmatpush1.xpose.msra.mxu0 %v335
      %421 = vmatprep.subr.mxu0 0.0
      %422 = vmatpush1.xpose.msra.mxu0 %v338
      %423 = vmatprep.subr.mxu0 0.0
      %424 = vmatpush1.xpose.msra.mxu0 %v341
      %425 = vmatprep.subr.mxu0 0.0
      %426 = vmatpush1.xpose.msra.mxu0 %v344
      %427 = vmatprep.subr.mxu0 0.0
      %428 = vmatpush1.xpose.msra.mxu0 %v347
      %429 = vmatprep.subr.mxu0 0.0
      %430 = vmatpush1.xpose.msra.mxu0 %v350
      %431 = vmatprep.subr.mxu0 0.0
      %432 = vmatpush1.xpose.msra.mxu0 %v353
      %433 = vmatprep.subr.mxu0 0.0
      %434 = vmatpush1.xpose.msra.mxu0 %v356
      %435 = vmatprep.subr.mxu0 0.0
      %436 = vmatpush1.xpose.msra.mxu0 %v359
      %437 = vmatprep.subr.mxu0 0.0
      %438 = vmatpush1.xpose.msra.mxu0 %v362
      %439 = vmatprep.subr.mxu0 0.0
      %440 = vmatpush1.xpose.msra.mxu0 %v365
      %441 = vmatprep.subr.mxu0 0.0
      %442 = vmatpush1.xpose.msra.mxu0 %v368
      %443 = vmatprep.subr.mxu0 0.0
      %444 = vmatpush1.xpose.msra.mxu0 %v371
      %445 = vmatprep.subr.mxu0 0.0
      %446 = vmatpush1.xpose.msra.mxu0 %v374
      %447 = vmatprep.subr.mxu0 0.0
      %448 = vmatpush1.xpose.msra.mxu0 %v377
      %449 = vmatprep.subr.mxu0 0.0
      %450 = vmatpush1.xpose.msra.mxu0 %v380
      %451 = vmatprep.subr.mxu0 0.0
      %452 = vmatpush1.xpose.msra.mxu0 %v383
      %453 = vmatprep.subr.mxu0 0.0
      %454 = vmatpush1.xpose.msra.mxu0 %v386
      %455 = vmatprep.subr.mxu0 0.0
      %456 = vmatpush1.xpose.msra.mxu0 %v389
      %457 = vmatprep.subr.mxu0 0.0
      %458 = vmatpush1.xpose.msra.mxu0 %v392
      %459 = vmatprep.subr.mxu0 0.0
      %460 = vmatpush1.xpose.msra.mxu0 %v395
      %461 = vmatprep.mubr.f32.mxu0 0.0
      %462 = vmatmul.mubr.f32.gmra.mrb[0].mxu0 %v299
      %v463 = vpop.f32.mrb[0].mxu0
      %v464 = vadd.f32 0.0, %v463
      %v465 = vpop.f32.mrb[0].mxu0
      %v466 = vadd.f32 0.0, %v465
      %467 = vdwg.mxu0
      %v468 = vmul.f32 %v464, 14.285714
      %v469 = vmul.f32 %v466, 14.285714
      %v470 = vmul.f32 %v468, 1.442695
      %v471 = vpow.pop %v470
      %v472 = vmul.f32 %v469, 1.442695
      %v473 = vpow.pop %v472
      %474 = vst [vmem:[%s262] sm:$0xff] %v471
      %475 = vst [vmem:[%s262 + $0x8] sm:$0xff] %v473
      %v476 = vld [vmem:[%s0] sm:$0xff]
      %v477 = vld [vmem:[%s250] sm:$0xff]
      %v478 = vld [vmem:[%s250 + $0x8] sm:$0xff]
      %v479 = vld [vmem:[%s250 + $0x10] sm:$0xff]
      %v480 = vld [vmem:[%s250 + $0x18] sm:$0xff]
      %v481 = vld [vmem:[%s250 + $0x20] sm:$0xff]
      %v482 = vld [vmem:[%s250 + $0x28] sm:$0xff]
      %v483 = vld [vmem:[%s250 + $0x30] sm:$0xff]
      %v484 = vld [vmem:[%s250 + $0x38] sm:$0xff]
      %v485 = vld [vmem:[%s250 + $0x40] sm:$0xff]
      %v486 = vld [vmem:[%s250 + $0x48] sm:$0xff]
      %v487 = vld [vmem:[%s250 + $0x50] sm:$0xff]
      %v488 = vld [vmem:[%s250 + $0x58] sm:$0xff]
      %v489 = vld [vmem:[%s250 + $0x60] sm:$0xff]
      %v490 = vld [vmem:[%s250 + $0x68] sm:$0xff]
      %v491 = vld [vmem:[%s250 + $0x70] sm:$0xff]
      %v492 = vld [vmem:[%s250 + $0x78] sm:$0xff]
      %v493 = vld [vmem:[%s250 + $0x80] sm:$0xff]
      %v494 = vld [vmem:[%s250 + $0x88] sm:$0xff]
      %v495 = vld [vmem:[%s250 + $0x90] sm:$0xff]
      %v496 = vld [vmem:[%s250 + $0x98] sm:$0xff]
      %v497 = vld [vmem:[%s250 + $0xa0] sm:$0xff]
      %v498 = vld [vmem:[%s250 + $0xa8] sm:$0xff]
      %v499 = vld [vmem:[%s250 + $0xb0] sm:$0xff]
      %v500 = vld [vmem:[%s250 + $0xb8] sm:$0xff]
      %v501 = vld [vmem:[%s250 + $0xc0] sm:$0xff]
      %v502 = vld [vmem:[%s250 + $0xc8] sm:$0xff]
      %v503 = vld [vmem:[%s250 + $0xd0] sm:$0xff]
      %v504 = vld [vmem:[%s250 + $0xd8] sm:$0xff]
      %v505 = vld [vmem:[%s250 + $0xe0] sm:$0xff]
      %v506 = vld [vmem:[%s250 + $0xe8] sm:$0xff]
      %v507 = vld [vmem:[%s250 + $0xf0] sm:$0xff]
      %v508 = vld [vmem:[%s250 + $0xf8] sm:$0xff]
      %v510 = vsel %vm297, %v476, 0
      %v513 = vsel %vm297, %v477, 0
      %v516 = vsel %vm297, %v478, 0
      %v519 = vsel %vm297, %v479, 0
      %v522 = vsel %vm297, %v480, 0
      %v525 = vsel %vm297, %v481, 0
      %v528 = vsel %vm297, %v482, 0
      %v531 = vsel %vm297, %v483, 0
      %v534 = vsel %vm297, %v484, 0
      %v537 = vsel %vm297, %v485, 0
      %v540 = vsel %vm297, %v486, 0
      %v543 = vsel %vm297, %v487, 0
      %v546 = vsel %vm297, %v488, 0
      %v549 = vsel %vm297, %v489, 0
      %v552 = vsel %vm297, %v490, 0
      %v555 = vsel %vm297, %v491, 0
      %v558 = vsel %vm297, %v492, 0
      %v561 = vsel %vm297, %v493, 0
      %v564 = vsel %vm297, %v494, 0
      %v567 = vsel %vm297, %v495, 0
      %v570 = vsel %vm297, %v496, 0
      %v573 = vsel %vm297, %v497, 0
      %v576 = vsel %vm297, %v498, 0
      %v579 = vsel %vm297, %v499, 0
      %v582 = vsel %vm297, %v500, 0
      %v585 = vsel %vm297, %v501, 0
      %v588 = vsel %vm297, %v502, 0
      %v591 = vsel %vm297, %v503, 0
      %v594 = vsel %vm297, %v504, 0
      %v597 = vsel %vm297, %v505, 0
      %v600 = vsel %vm297, %v506, 0
      %v603 = vsel %vm297, %v507, 0
      %v606 = vsel %vm297, %v508, 0
      %608 = vmatprep.subr.mxu0 0.0
      %609 = vmatpush1.xpose.msra.mxu0 %v513
      %610 = vmatprep.subr.mxu0 0.0
      %611 = vmatpush1.xpose.msra.mxu0 %v516
      %612 = vmatprep.subr.mxu0 0.0
      %613 = vmatpush1.xpose.msra.mxu0 %v519
      %614 = vmatprep.subr.mxu0 0.0
      %615 = vmatpush1.xpose.msra.mxu0 %v522
      %616 = vmatprep.subr.mxu0 0.0
      %617 = vmatpush1.xpose.msra.mxu0 %v525
      %618 = vmatprep.subr.mxu0 0.0
      %619 = vmatpush1.xpose.msra.mxu0 %v528
      %620 = vmatprep.subr.mxu0 0.0
      %621 = vmatpush1.xpose.msra.mxu0 %v531
      %622 = vmatprep.subr.mxu0 0.0
      %623 = vmatpush1.xpose.msra.mxu0 %v534
      %624 = vmatprep.subr.mxu0 0.0
      %625 = vmatpush1.xpose.msra.mxu0 %v537
      %626 = vmatprep.subr.mxu0 0.0
      %627 = vmatpush1.xpose.msra.mxu0 %v540
      %628 = vmatprep.subr.mxu0 0.0
      %629 = vmatpush1.xpose.msra.mxu0 %v543
      %630 = vmatprep.subr.mxu0 0.0
      %631 = vmatpush1.xpose.msra.mxu0 %v546
      %632 = vmatprep.subr.mxu0 0.0
      %633 = vmatpush1.xpose.msra.mxu0 %v549
      %634 = vmatprep.subr.mxu0 0.0
      %635 = vmatpush1.xpose.msra.mxu0 %v552
      %636 = vmatprep.subr.mxu0 0.0
      %637 = vmatpush1.xpose.msra.mxu0 %v555
      %638 = vmatprep.subr.mxu0 0.0
      %639 = vmatpush1.xpose.msra.mxu0 %v558
      %640 = vmatprep.subr.mxu0 0.0
      %641 = vmatpush1.xpose.msra.mxu0 %v561
      %642 = vmatprep.subr.mxu0 0.0
      %643 = vmatpush1.xpose.msra.mxu0 %v564
      %644 = vmatprep.subr.mxu0 0.0
      %645 = vmatpush1.xpose.msra.mxu0 %v567
      %646 = vmatprep.subr.mxu0 0.0
      %647 = vmatpush1.xpose.msra.mxu0 %v570
      %648 = vmatprep.subr.mxu0 0.0
      %649 = vmatpush1.xpose.msra.mxu0 %v573
      %650 = vmatprep.subr.mxu0 0.0
      %651 = vmatpush1.xpose.msra.mxu0 %v576
      %652 = vmatprep.subr.mxu0 0.0
      %653 = vmatpush1.xpose.msra.mxu0 %v579
      %654 = vmatprep.subr.mxu0 0.0
      %655 = vmatpush1.xpose.msra.mxu0 %v582
      %656 = vmatprep.subr.mxu0 0.0
      %657 = vmatpush1.xpose.msra.mxu0 %v585
      %658 = vmatprep.subr.mxu0 0.0
      %659 = vmatpush1.xpose.msra.mxu0 %v588
      %660 = vmatprep.subr.mxu0 0.0
      %661 = vmatpush1.xpose.msra.mxu0 %v591
      %662 = vmatprep.subr.mxu0 0.0
      %663 = vmatpush1.xpose.msra.mxu0 %v594
      %664 = vmatprep.subr.mxu0 0.0
      %665 = vmatpush1.xpose.msra.mxu0 %v597
      %666 = vmatprep.subr.mxu0 0.0
      %667 = vmatpush1.xpose.msra.mxu0 %v600
      %668 = vmatprep.subr.mxu0 0.0
      %669 = vmatpush1.xpose.msra.mxu0 %v603
      %670 = vmatprep.subr.mxu0 0.0
      %671 = vmatpush1.xpose.msra.mxu0 %v606
      %672 = vmatprep.mubr.f32.mxu0 0.0
      %673 = vmatmul.mubr.f32.gmra.mrb[0].mxu0 %v510
      %v674 = vpop.f32.mrb[0].mxu0
      %v675 = vadd.f32 0.0, %v674
      %v676 = vpop.f32.mrb[0].mxu0
      %v677 = vadd.f32 0.0, %v676
      %678 = vdwg.mxu0
      %v679 = vmul.f32 %v675, 14.285714
      %v680 = vmul.f32 %v677, 14.285714
      %v681 = vmul.f32 %v679, 1.442695
      %v682 = vpow.pop %v681
      %v683 = vmul.f32 %v680, 1.442695
      %v684 = vpow.pop %v683
      %685 = vst [vmem:[%s256] sm:$0xff] %v682
      %686 = vst [vmem:[%s256 + $0x8] sm:$0xff] %v684
      %s687 = smul.u32 2, %s17
      %p688 = scmp.lt.s32.totalorder %s687, 7
      %s689 = scalar_select %p688, %s687, 7
      %s690 = smul.addr %s689, 8
      %s691 = scalar_lea.vmem %s4, %s690
      %s692 = smul.u32 2, %s17
      %p693 = scmp.lt.s32.totalorder %s692, 7
      %s694 = scalar_select %p693, %s692, 7
      %s695 = smul.addr %s694, 8
      %s696 = scalar_lea.vmem %s5, %s695
      // Predicated region
      $region37: #{contrast_memory_queue_forward.3} parent=35 // pred_check
        %p697 = pneg %p129
      $region38: #{contrast_memory_queue_forward.3} parent=35 // pred_check_branch
        %699 = sbr.rel (%p697) target = $region40
      $region39: #{contrast_memory_queue_forward.3} parent=35 // pred_region
        %s700 = smul.u32 2, %s17
      $region40: #{contrast_memory_queue_forward.3} parent=35 // pred_fallthru
        _
      // Predicated region
      $region41: #{contrast_memory_queue_forward.3} parent=35 // pred_check
        %p701 = pneg %p155
      $region42: #{contrast_memory_queue_forward.3} parent=35 // pred_check_branch
        %703 = sbr.rel (%p701) target = $region44
      $region43: #{contrast_memory_queue_forward.3} parent=35 // pred_region
        %s704 = smul.u32 2, %s17
      $region44: #{contrast_memory_queue_forward.3} parent=35 // pred_fallthru
        _
    $region36: #{contrast_memory_queue_forward.3} parent=5 // pred_fallthru
      _
    %p705 = scmp.le.s32.totalorder 2, %s12
    // Predicated region
    $region45: #{contrast_memory_queue_forward.3} parent=5 // pred_check
      %p706 = pneg %p705
    $region46: #{contrast_memory_queue_forward.3} parent=5 // pred_check_branch
      %708 = sbr.rel (%p706) target = $region48
    $region47: #{contrast_memory_queue_forward.3} parent=5 // pred_region
      %s709 = ssub.s32 %s12, 2
      // Predicated region
      $region49: #{contrast_memory_queue_forward.3} parent=47 // pred_check
        %p710 = pneg %p135
      $region50: #{contrast_memory_queue_forward.3} parent=47 // pred_check_branch
        %712 = sbr.rel (%p710) target = $region52
      $region51: #{contrast_memory_queue_forward.3} parent=47 // pred_region
        %s713 = smul.u32 2, %s18
        %p714 = scmp.lt.s32.totalorder %s713, 7
        %s715 = scalar_select %p714, %s713, 7
        %s716 = smul.addr %s715, 8
        %s717 = scalar_lea.vmem %s4, %s716
      $region52: #{contrast_memory_queue_forward.3} parent=47 // pred_fallthru
        _
      // Predicated region
      $region53: #{contrast_memory_queue_forward.3} parent=47 // pred_check
        %p718 = pneg %p161
      $region54: #{contrast_memory_queue_forward.3} parent=47 // pred_check_branch
        %720 = sbr.rel (%p718) target = $region56
      $region55: #{contrast_memory_queue_forward.3} parent=47 // pred_region
        %s721 = smul.u32 2, %s18
        %p722 = scmp.lt.s32.totalorder %s721, 7
        %s723 = scalar_select %p722, %s721, 7
        %s724 = smul.addr %s723, 8
        %s725 = scalar_lea.vmem %s5, %s724
      $region56: #{contrast_memory_queue_forward.3} parent=47 // pred_fallthru
        _
    $region48: #{contrast_memory_queue_forward.3} parent=5 // pred_fallthru
      _
  $region6: #{contrast_memory_queue_forward.3} parent=0 // loop_footer
    %s16 = sadd.s32 1, %s12
  $region7: #{contrast_memory_queue_forward.3} parent=0 // loop_footer_branch
    %11 = sbr.rel target = $region3
  $region8: #{contrast_memory_queue_forward.3} parent=0 // loop_exit
    _

</llo_original>
